<compile_context>
chip_gen: v5e
topology: v5e:2x2
jax: 0.10.0
libtpu: 0.0.40
codegen_flags: <defaults>
</compile_context>

<pallas_src>
import jax
import jax.numpy as jnp
from jax.experimental import pallas as pl
from jax.experimental.pallas import tpu as pltpu


# ---------------------------------------------------------------------------
# Kernel
# ---------------------------------------------------------------------------
def _encoder_kernel(xcol_ref, w1_ref, b1_ref, w2_ref, b2_ref,
                    w3_ref, b3_ref, w4_ref, b4_ref, out_ref):
    cout = b1_ref.shape[-1]

    # ---- conv1 (3x3, stride 2): one matmul over the wrapper-built im2col ----
    # xcol[b, i, j, (kh*3+kw)*cin + c] = obs_nhwc[b, 2i+kh, 2j+kw, c] (bf16).
    # The /255 and -0.5 preprocessing is folded into w1/b1 by the wrapper.
    x = xcol_ref[...]
    bsz, h1, w1, k1 = x.shape
    a = jnp.dot(x.reshape(bsz * h1 * w1, k1), w1_ref[...],
                preferred_element_type=jnp.float32) + b1_ref[...]
    h = jnp.maximum(a, 0.0).astype(jnp.bfloat16).reshape(bsz, h1, w1, cout)

    # ---- conv2..4 (3x3, stride 1, VALID): kh folded into the weight N dim ---
    # One (M, 3*ci) x (3*ci, 3*co) matmul per layer over ALL hi input rows,
    # then three shifted-row / shifted-lane adds undo the kh fold on the VPU.
    def conv3x3_s1(xin, w_ref, b_ref):
        bs, hi, wi, ci = xin.shape
        co = b_ref.shape[-1]
        ho, wo = hi - 2, wi - 2
        # kw-widened input: K axis = [kw=0 | kw=1 | kw=2], ci-minor.
        xw = jnp.concatenate(
            [xin[:, :, 0:wo, :], xin[:, :, 1:1 + wo, :], xin[:, :, 2:2 + wo, :]],
            axis=-1)                                    # (bs, hi, wo, 3*ci)
        y = jnp.dot(xw.reshape(bs * hi * wo, 3 * ci), w_ref[...],
                    preferred_element_type=jnp.float32)
        y = y.reshape(bs, hi, wo, 3 * co)
        acc = (y[:, 0:ho, :, 0:co]
               + y[:, 1:1 + ho, :, co:2 * co]
               + y[:, 2:2 + ho, :, 2 * co:3 * co]) + b_ref[...]
        return jnp.maximum(acc, 0.0), ho, wo            # f32 (bs, ho, wo, co)

    a2, _, _ = conv3x3_s1(h, w2_ref, b2_ref)
    h = a2.astype(jnp.bfloat16)
    a3, _, _ = conv3x3_s1(h, w3_ref, b3_ref)
    h = a3.astype(jnp.bfloat16)
    a4, h4, w4o = conv3x3_s1(h, w4_ref, b4_ref)

    # ---- NCHW flatten folded in: one batched relayout to (bsz, cout, H*W) ---
    out_ref[...] = jnp.transpose(
        a4.reshape(bsz, h4 * w4o, cout), (0, 2, 1)).astype(out_ref.dtype)


# ---------------------------------------------------------------------------
# Per-chip configuration
# ---------------------------------------------------------------------------
def _chip_config():
    """(max_batch_block, vmem_limit_bytes, want_even_grid) per TPU generation."""
    vmem_cap = 64 * 1024 * 1024          # conservative default (v7x per-TC VMEM)
    try:
        info = pltpu.get_tpu_info()
        vmem_cap = int(getattr(info, "vmem_capacity_bytes", vmem_cap))
    except Exception:
        pass
    vmem_limit = min(100 * 1024 * 1024, vmem_cap - 8 * 1024 * 1024)
    if vmem_cap >= 96 * 1024 * 1024:
        # v5e / v6e: 128 MiB VMEM, one TensorCore -> fatter blocks, any grid.
        # (Worth sweeping max_bb up to 16 once validated at production shape.)
        return 8, vmem_limit, False
    # v7x: 64 MiB VMEM per TensorCore, two TensorCores share the grid.
    return 4, vmem_limit, True


def _pick_batch_block(n, max_b, want_even_grid):
    """Largest divisor of n (<= max_b); prefer an even number of grid steps on
    2-TC chips, and always prefer >= 2 steps so the pipeline can overlap."""
    def best(pred):
        cands = [b for b in range(1, min(n, max_b) + 1)
                 if n % b == 0 and pred(n // b)]
        return max(cands) if cands else None

    if want_even_grid:
        b = best(lambda g: g >= 2 and g % 2 == 0)
        if b is not None:
            return b
    b = best(lambda g: g >= 2)
    if b is not None:
        return b
    return best(lambda g: True) or 1


# ---------------------------------------------------------------------------
# Wrapper
# ---------------------------------------------------------------------------
def encoder_forward(obs_nchw, params, batch_block=None):
    """obs_nchw: (N, C, H, W) float32 pixel values in [0, 255]."""
    (w1, b1), (w2, b2), (w3, b3), (w4, b4) = params
    n, cin, hh, ww = obs_nchw.shape
    cout = w1.shape[0]

    oh1 = (hh - 3) // 2 + 1
    ow1 = (ww - 3) // 2 + 1
    oh4, ow4 = oh1 - 6, ow1 - 6
    assert oh4 >= 1 and ow4 >= 1, "spatial dims too small for the conv stack"
    hw = oh4 * ow4

    max_bb, vmem_limit, want_even = _chip_config()
    if batch_block is not None:
        bpg = batch_block
        assert n % bpg == 0
    else:
        bpg = _pick_batch_block(n, max_bb, want_even)
    grid = (n // bpg,)

    # Single fused XLA prepass: NCHW -> NHWC, stride-2 im2col for conv1, bf16
    # cast.  Gives the kernel a lane-dense (9*cin)-wide input and removes every
    # in-kernel relayout for conv1.
    # TODO(synk): accept NHWC uint8 observations to drop this prepass entirely.
    x = jnp.transpose(obs_nchw, (0, 2, 3, 1))
    cols = [x[:, kh:kh + 2 * oh1:2, kw:kw + 2 * ow1:2, :]
            for kh in range(3) for kw in range(3)]
    xcol = jnp.concatenate(cols, axis=-1).astype(jnp.bfloat16)  # (n, oh1, ow1, 9*cin)

    # conv1 weights: fold /255 and -0.5 (conv is linear); rows are
    # (kh, kw)-major / cin-minor to match the im2col channel order.
    w1p = (jnp.transpose(w1, (2, 3, 1, 0)) / 255.0).reshape(
        9 * cin, cout).astype(jnp.bfloat16)
    b1p = (b1 - 0.5 * jnp.sum(w1, axis=(1, 2, 3))).reshape(1, cout).astype(jnp.float32)

    def repack_s1(w):
        # OIHW -> (kw, ci, kh, co) -> (3*ci, 3*co): rows kw-major / ci-minor
        # (matches the in-kernel kw concat); cols kh-major / co-minor (kh folded
        # into the matmul N dim, un-folded by shifted-row adds in the kernel).
        co, ci = w.shape[0], w.shape[1]
        return jnp.transpose(w, (3, 1, 2, 0)).reshape(3 * ci, 3 * co).astype(jnp.bfloat16)

    w2p, w3p, w4p = repack_s1(w2), repack_s1(w3), repack_s1(w4)
    b2p = b2.reshape(1, cout).astype(jnp.float32)
    b3p = b3.reshape(1, cout).astype(jnp.float32)
    b4p = b4.reshape(1, cout).astype(jnp.float32)

    in_specs = [
        pl.BlockSpec((bpg, oh1, ow1, 9 * cin), lambda i: (i, 0, 0, 0)),
        pl.BlockSpec(w1p.shape, lambda i: (0, 0)),
        pl.BlockSpec(b1p.shape, lambda i: (0, 0)),
        pl.BlockSpec(w2p.shape, lambda i: (0, 0)),
        pl.BlockSpec(b2p.shape, lambda i: (0, 0)),
        pl.BlockSpec(w3p.shape, lambda i: (0, 0)),
        pl.BlockSpec(b3p.shape, lambda i: (0, 0)),
        pl.BlockSpec(w4p.shape, lambda i: (0, 0)),
        pl.BlockSpec(b4p.shape, lambda i: (0, 0)),
    ]

    out = pl.pallas_call(
        _encoder_kernel,
        grid=grid,
        in_specs=in_specs,
        out_specs=pl.BlockSpec((bpg, cout, hw), lambda i: (i, 0, 0)),
        out_shape=jax.ShapeDtypeStruct((n, cout, hw), jnp.float32),
        compiler_params=pltpu.CompilerParams(
            dimension_semantics=("parallel",),
            vmem_limit_bytes=vmem_limit),
    )(xcol, w1p, b1p, w2p, b2p, w3p, b3p, w4p, b4p)

    # Kernel already emitted NCHW flatten order; this reshape moves no data.
    return out.reshape(n, cout * hw)


# ---------------------------------------------------------------------------
# Plain-JAX reference (same math as the PyTorch module, full f32)
# ---------------------------------------------------------------------------
def reference_forward(obs_nchw, params):
    x = obs_nchw / 255.0 - 0.5
    strides = [2, 1, 1, 1]
    for (w, b), s in zip(params, strides):
        x = jax.lax.conv_general_dilated(
            x, w, window_strides=(s, s), padding="VALID",
            dimension_numbers=("NCHW", "OIHW", "NCHW"))
        x = jnp.maximum(x + b[None, :, None, None], 0.0)
    return x.reshape(x.shape[0], -1)


if __name__ == "__main__":
    # Small shapes; the real DrQ encoder uses obs_shape=(9,84,84) -> repr_dim 32*35*35.
    n, c, hh, ww = 2, 4, 24, 24
    key = jax.random.PRNGKey(0)
    k_obs, k1, k2, k3, k4 = jax.random.split(key, 5)
    # Integer-valued pixels (as the module expects): exact under the bf16 cast.
    obs = jax.random.randint(k_obs, (n, c, hh, ww), 0, 256).astype(jnp.float32)

    # TODO(synk): original module applies utils.weight_init (orthogonal) at __init__;
    # init is not part of the forward pass, so use deterministic random weights here.
    def make_conv(k, cin, cout):
        kw_, kb_ = jax.random.split(k)
        w = jax.random.normal(kw_, (cout, cin, 3, 3), jnp.float32) * 0.05
        b = jax.random.normal(kb_, (cout,), jnp.float32) * 0.01
        return w, b

    params = [make_conv(k1, c, 32), make_conv(k2, 32, 32),
              make_conv(k3, 32, 32), make_conv(k4, 32, 32)]

    out = jax.block_until_ready(encoder_forward(obs, params))
    ref = reference_forward(obs, params)

    h_out = (hh - 3) // 2 + 1 - 6
    w_out = (ww - 3) // 2 + 1 - 6
    assert out.shape == (n, 32 * h_out * w_out), out.shape
    max_err = float(jnp.max(jnp.abs(out - ref)))
    # bf16 MXU operands (f32 accumulation) -> loosened tolerance vs. pure-f32 ref.
    assert jnp.allclose(out, ref, atol=5e-2, rtol=5e-2), max_err
    print("KERNEL_OK")
</pallas_src>

<mosaic_0001>
module attributes {stable_mosaic.version = 11 : i64} {
  func.func @_encoder_kernel(%arg0: i32, %arg1: memref<1x11x11x36xbf16, #tpu.memory_space<vmem>>, %arg2: memref<36x32xbf16, #tpu.memory_space<vmem>>, %arg3: memref<1x32xf32, #tpu.memory_space<vmem>>, %arg4: memref<96x96xbf16, #tpu.memory_space<vmem>>, %arg5: memref<1x32xf32, #tpu.memory_space<vmem>>, %arg6: memref<96x96xbf16, #tpu.memory_space<vmem>>, %arg7: memref<1x32xf32, #tpu.memory_space<vmem>>, %arg8: memref<96x96xbf16, #tpu.memory_space<vmem>>, %arg9: memref<1x32xf32, #tpu.memory_space<vmem>>, %arg10: memref<1x32x25xf32, #tpu.memory_space<vmem>>) attributes {dimension_semantics = [#tpu.dimension_semantics<parallel>], iteration_bounds = array<i64: 2>, scalar_prefetch = 0 : i64, scratch_operands = 0 : i64, tpu.core_type = #tpu.core_type<tc>, window_params = [{transform_indices = @transform_0, window_bounds = array<i64: 1, 11, 11, 36>}, {pipeline_mode = #tpu.pipeline_mode<synchronous>, transform_indices = @transform_1, window_bounds = array<i64: 36, 32>}, {pipeline_mode = #tpu.pipeline_mode<synchronous>, transform_indices = @transform_2, window_bounds = array<i64: 1, 32>}, {pipeline_mode = #tpu.pipeline_mode<synchronous>, transform_indices = @transform_3, window_bounds = array<i64: 96, 96>}, {pipeline_mode = #tpu.pipeline_mode<synchronous>, transform_indices = @transform_4, window_bounds = array<i64: 1, 32>}, {pipeline_mode = #tpu.pipeline_mode<synchronous>, transform_indices = @transform_5, window_bounds = array<i64: 96, 96>}, {pipeline_mode = #tpu.pipeline_mode<synchronous>, transform_indices = @transform_6, window_bounds = array<i64: 1, 32>}, {pipeline_mode = #tpu.pipeline_mode<synchronous>, transform_indices = @transform_7, window_bounds = array<i64: 96, 96>}, {pipeline_mode = #tpu.pipeline_mode<synchronous>, transform_indices = @transform_8, window_bounds = array<i64: 1, 32>}, {transform_indices = @transform_9, window_bounds = array<i64: 1, 32, 25>}]} {
    %c0 = arith.constant 0 : index
    %c0_0 = arith.constant 0 : index
    %c0_1 = arith.constant 0 : index
    %c0_2 = arith.constant 0 : index
    %0 = vector.load %arg1[%c0, %c0_0, %c0_1, %c0_2] : memref<1x11x11x36xbf16, #tpu.memory_space<vmem>>, vector<1x11x11x36xbf16>
    %1 = vector.shape_cast %0 : vector<1x11x11x36xbf16> to vector<121x36xbf16>
    %c0_3 = arith.constant 0 : index
    %c0_4 = arith.constant 0 : index
    %2 = vector.load %arg2[%c0_3, %c0_4] : memref<36x32xbf16, #tpu.memory_space<vmem>>, vector<36x32xbf16>
    %cst = arith.constant dense<0.000000e+00> : vector<121x32xf32>
    %3 = tpu.matmul %1, %2, %cst {dimension_numbers = #tpu.dot_dimension_numbers<[1], [0], [0], [1], [0, 0, 1, 1], [], []>} : vector<121x36xbf16>, vector<36x32xbf16>, vector<121x32xf32> -> vector<121x32xf32>
    %c0_5 = arith.constant 0 : index
    %c0_6 = arith.constant 0 : index
    %4 = vector.load %arg3[%c0_5, %c0_6] : memref<1x32xf32, #tpu.memory_space<vmem>>, vector<1x32xf32>
    %5 = vector.broadcast %4 : vector<1x32xf32> to vector<121x32xf32>
    %6 = arith.addf %3, %5 : vector<121x32xf32>
    %cst_7 = arith.constant 0.000000e+00 : f32
    %7 = vector.broadcast %cst_7 : f32 to vector<121x32xf32>
    %8 = arith.maximumf %6, %7 : vector<121x32xf32>
    %9 = arith.truncf %8 : vector<121x32xf32> to vector<121x32xbf16>
    %10 = vector.shape_cast %9 : vector<121x32xbf16> to vector<1x11x11x32xbf16>
    %11 = vector.extract_strided_slice %10 {offsets = [0, 0, 0, 0], sizes = [1, 11, 9, 32], strides = [1, 1, 1, 1]} : vector<1x11x11x32xbf16> to vector<1x11x9x32xbf16>
    %12 = vector.extract_strided_slice %10 {offsets = [0, 0, 1, 0], sizes = [1, 11, 9, 32], strides = [1, 1, 1, 1]} : vector<1x11x11x32xbf16> to vector<1x11x9x32xbf16>
    %13 = vector.extract_strided_slice %10 {offsets = [0, 0, 2, 0], sizes = [1, 11, 9, 32], strides = [1, 1, 1, 1]} : vector<1x11x11x32xbf16> to vector<1x11x9x32xbf16>
    %14 = tpu.concatenate %11, %12, %13 in 3 : vector<1x11x9x32xbf16>, vector<1x11x9x32xbf16>, vector<1x11x9x32xbf16> -> vector<1x11x9x96xbf16>
    %15 = vector.shape_cast %14 : vector<1x11x9x96xbf16> to vector<99x96xbf16>
    %c0_8 = arith.constant 0 : index
    %c0_9 = arith.constant 0 : index
    %16 = vector.load %arg4[%c0_8, %c0_9] : memref<96x96xbf16, #tpu.memory_space<vmem>>, vector<96x96xbf16>
    %cst_10 = arith.constant dense<0.000000e+00> : vector<99x96xf32>
    %17 = tpu.matmul %15, %16, %cst_10 {dimension_numbers = #tpu.dot_dimension_numbers<[1], [0], [0], [1], [0, 0, 1, 1], [], []>} : vector<99x96xbf16>, vector<96x96xbf16>, vector<99x96xf32> -> vector<99x96xf32>
    %18 = vector.shape_cast %17 : vector<99x96xf32> to vector<1x11x9x96xf32>
    %19 = vector.extract_strided_slice %18 {offsets = [0, 0, 0, 0], sizes = [1, 9, 9, 32], strides = [1, 1, 1, 1]} : vector<1x11x9x96xf32> to vector<1x9x9x32xf32>
    %20 = vector.extract_strided_slice %18 {offsets = [0, 1, 0, 32], sizes = [1, 9, 9, 32], strides = [1, 1, 1, 1]} : vector<1x11x9x96xf32> to vector<1x9x9x32xf32>
    %21 = arith.addf %19, %20 : vector<1x9x9x32xf32>
    %22 = vector.extract_strided_slice %18 {offsets = [0, 2, 0, 64], sizes = [1, 9, 9, 32], strides = [1, 1, 1, 1]} : vector<1x11x9x96xf32> to vector<1x9x9x32xf32>
    %23 = arith.addf %21, %22 : vector<1x9x9x32xf32>
    %c0_11 = arith.constant 0 : index
    %c0_12 = arith.constant 0 : index
    %24 = vector.load %arg5[%c0_11, %c0_12] : memref<1x32xf32, #tpu.memory_space<vmem>>, vector<1x32xf32>
    %25 = vector.shape_cast %24 : vector<1x32xf32> to vector<1x1x1x32xf32>
    %26 = vector.broadcast %25 : vector<1x1x1x32xf32> to vector<1x9x9x32xf32>
    %27 = arith.addf %23, %26 : vector<1x9x9x32xf32>
    %cst_13 = arith.constant 0.000000e+00 : f32
    %28 = vector.broadcast %cst_13 : f32 to vector<1x9x9x32xf32>
    %29 = arith.maximumf %27, %28 : vector<1x9x9x32xf32>
    %30 = arith.truncf %29 : vector<1x9x9x32xf32> to vector<1x9x9x32xbf16>
    %31 = vector.extract_strided_slice %30 {offsets = [0, 0, 0, 0], sizes = [1, 9, 7, 32], strides = [1, 1, 1, 1]} : vector<1x9x9x32xbf16> to vector<1x9x7x32xbf16>
    %32 = vector.extract_strided_slice %30 {offsets = [0, 0, 1, 0], sizes = [1, 9, 7, 32], strides = [1, 1, 1, 1]} : vector<1x9x9x32xbf16> to vector<1x9x7x32xbf16>
    %33 = vector.extract_strided_slice %30 {offsets = [0, 0, 2, 0], sizes = [1, 9, 7, 32], strides = [1, 1, 1, 1]} : vector<1x9x9x32xbf16> to vector<1x9x7x32xbf16>
    %34 = tpu.concatenate %31, %32, %33 in 3 : vector<1x9x7x32xbf16>, vector<1x9x7x32xbf16>, vector<1x9x7x32xbf16> -> vector<1x9x7x96xbf16>
    %35 = vector.shape_cast %34 : vector<1x9x7x96xbf16> to vector<63x96xbf16>
    %c0_14 = arith.constant 0 : index
    %c0_15 = arith.constant 0 : index
    %36 = vector.load %arg6[%c0_14, %c0_15] : memref<96x96xbf16, #tpu.memory_space<vmem>>, vector<96x96xbf16>
    %cst_16 = arith.constant dense<0.000000e+00> : vector<63x96xf32>
    %37 = tpu.matmul %35, %36, %cst_16 {dimension_numbers = #tpu.dot_dimension_numbers<[1], [0], [0], [1], [0, 0, 1, 1], [], []>} : vector<63x96xbf16>, vector<96x96xbf16>, vector<63x96xf32> -> vector<63x96xf32>
    %38 = vector.shape_cast %37 : vector<63x96xf32> to vector<1x9x7x96xf32>
    %39 = vector.extract_strided_slice %38 {offsets = [0, 0, 0, 0], sizes = [1, 7, 7, 32], strides = [1, 1, 1, 1]} : vector<1x9x7x96xf32> to vector<1x7x7x32xf32>
    %40 = vector.extract_strided_slice %38 {offsets = [0, 1, 0, 32], sizes = [1, 7, 7, 32], strides = [1, 1, 1, 1]} : vector<1x9x7x96xf32> to vector<1x7x7x32xf32>
    %41 = arith.addf %39, %40 : vector<1x7x7x32xf32>
    %42 = vector.extract_strided_slice %38 {offsets = [0, 2, 0, 64], sizes = [1, 7, 7, 32], strides = [1, 1, 1, 1]} : vector<1x9x7x96xf32> to vector<1x7x7x32xf32>
    %43 = arith.addf %41, %42 : vector<1x7x7x32xf32>
    %c0_17 = arith.constant 0 : index
    %c0_18 = arith.constant 0 : index
    %44 = vector.load %arg7[%c0_17, %c0_18] : memref<1x32xf32, #tpu.memory_space<vmem>>, vector<1x32xf32>
    %45 = vector.shape_cast %44 : vector<1x32xf32> to vector<1x1x1x32xf32>
    %46 = vector.broadcast %45 : vector<1x1x1x32xf32> to vector<1x7x7x32xf32>
    %47 = arith.addf %43, %46 : vector<1x7x7x32xf32>
    %cst_19 = arith.constant 0.000000e+00 : f32
    %48 = vector.broadcast %cst_19 : f32 to vector<1x7x7x32xf32>
    %49 = arith.maximumf %47, %48 : vector<1x7x7x32xf32>
    %50 = arith.truncf %49 : vector<1x7x7x32xf32> to vector<1x7x7x32xbf16>
    %51 = vector.extract_strided_slice %50 {offsets = [0, 0, 0, 0], sizes = [1, 7, 5, 32], strides = [1, 1, 1, 1]} : vector<1x7x7x32xbf16> to vector<1x7x5x32xbf16>
    %52 = vector.extract_strided_slice %50 {offsets = [0, 0, 1, 0], sizes = [1, 7, 5, 32], strides = [1, 1, 1, 1]} : vector<1x7x7x32xbf16> to vector<1x7x5x32xbf16>
    %53 = vector.extract_strided_slice %50 {offsets = [0, 0, 2, 0], sizes = [1, 7, 5, 32], strides = [1, 1, 1, 1]} : vector<1x7x7x32xbf16> to vector<1x7x5x32xbf16>
    %54 = tpu.concatenate %51, %52, %53 in 3 : vector<1x7x5x32xbf16>, vector<1x7x5x32xbf16>, vector<1x7x5x32xbf16> -> vector<1x7x5x96xbf16>
    %55 = vector.shape_cast %54 : vector<1x7x5x96xbf16> to vector<35x96xbf16>
    %c0_20 = arith.constant 0 : index
    %c0_21 = arith.constant 0 : index
    %56 = vector.load %arg8[%c0_20, %c0_21] : memref<96x96xbf16, #tpu.memory_space<vmem>>, vector<96x96xbf16>
    %cst_22 = arith.constant dense<0.000000e+00> : vector<35x96xf32>
    %57 = tpu.matmul %55, %56, %cst_22 {dimension_numbers = #tpu.dot_dimension_numbers<[1], [0], [0], [1], [0, 0, 1, 1], [], []>} : vector<35x96xbf16>, vector<96x96xbf16>, vector<35x96xf32> -> vector<35x96xf32>
    %58 = vector.shape_cast %57 : vector<35x96xf32> to vector<1x7x5x96xf32>
    %59 = vector.extract_strided_slice %58 {offsets = [0, 0, 0, 0], sizes = [1, 5, 5, 32], strides = [1, 1, 1, 1]} : vector<1x7x5x96xf32> to vector<1x5x5x32xf32>
    %60 = vector.extract_strided_slice %58 {offsets = [0, 1, 0, 32], sizes = [1, 5, 5, 32], strides = [1, 1, 1, 1]} : vector<1x7x5x96xf32> to vector<1x5x5x32xf32>
    %61 = arith.addf %59, %60 : vector<1x5x5x32xf32>
    %62 = vector.extract_strided_slice %58 {offsets = [0, 2, 0, 64], sizes = [1, 5, 5, 32], strides = [1, 1, 1, 1]} : vector<1x7x5x96xf32> to vector<1x5x5x32xf32>
    %63 = arith.addf %61, %62 : vector<1x5x5x32xf32>
    %c0_23 = arith.constant 0 : index
    %c0_24 = arith.constant 0 : index
    %64 = vector.load %arg9[%c0_23, %c0_24] : memref<1x32xf32, #tpu.memory_space<vmem>>, vector<1x32xf32>
    %65 = vector.shape_cast %64 : vector<1x32xf32> to vector<1x1x1x32xf32>
    %66 = vector.broadcast %65 : vector<1x1x1x32xf32> to vector<1x5x5x32xf32>
    %67 = arith.addf %63, %66 : vector<1x5x5x32xf32>
    %cst_25 = arith.constant 0.000000e+00 : f32
    %68 = vector.broadcast %cst_25 : f32 to vector<1x5x5x32xf32>
    %69 = arith.maximumf %67, %68 : vector<1x5x5x32xf32>
    %70 = vector.shape_cast %69 : vector<1x5x5x32xf32> to vector<1x25x32xf32>
    %71 = tpu.transpose %70, [0, 2, 1] : vector<1x25x32xf32> -> vector<1x32x25xf32>
    %c0_26 = arith.constant 0 : index
    %c0_27 = arith.constant 0 : index
    %c0_28 = arith.constant 0 : index
    %72 = vector.load %arg10[%c0_26, %c0_27, %c0_28] : memref<1x32x25xf32, #tpu.memory_space<vmem>>, vector<1x32x25xf32>
    tpu.vector_store %arg10[%c0_26, %c0_27, %c0_28], %71 {strides = array<i32>} : memref<1x32x25xf32, #tpu.memory_space<vmem>>, vector<1x32x25xf32>,
    return
  }
  func.func @transform_0(%arg0: i32) -> (i32, i32, i32, i32) {
    %c0_i32 = arith.constant 0 : i32
    %c0_i32_0 = arith.constant 0 : i32
    %c0_i32_1 = arith.constant 0 : i32
    %c0_i32_2 = arith.constant 0 : i32
    return %arg0, %c0_i32, %c0_i32_0, %c0_i32_1 : i32, i32, i32, i32
  }
  func.func @transform_1(%arg0: i32) -> (i32, i32) {
    %c0_i32 = arith.constant 0 : i32
    %c0_i32_0 = arith.constant 0 : i32
    %c0_i32_1 = arith.constant 0 : i32
    return %c0_i32, %c0_i32_0 : i32, i32
  }
  func.func @transform_2(%arg0: i32) -> (i32, i32) {
    %c0_i32 = arith.constant 0 : i32
    %c0_i32_0 = arith.constant 0 : i32
    %c0_i32_1 = arith.constant 0 : i32
    return %c0_i32, %c0_i32_0 : i32, i32
  }
  func.func @transform_3(%arg0: i32) -> (i32, i32) {
    %c0_i32 = arith.constant 0 : i32
    %c0_i32_0 = arith.constant 0 : i32
    %c0_i32_1 = arith.constant 0 : i32
    return %c0_i32, %c0_i32_0 : i32, i32
  }
  func.func @transform_4(%arg0: i32) -> (i32, i32) {
    %c0_i32 = arith.constant 0 : i32
    %c0_i32_0 = arith.constant 0 : i32
    %c0_i32_1 = arith.constant 0 : i32
    return %c0_i32, %c0_i32_0 : i32, i32
  }
  func.func @transform_5(%arg0: i32) -> (i32, i32) {
    %c0_i32 = arith.constant 0 : i32
    %c0_i32_0 = arith.constant 0 : i32
    %c0_i32_1 = arith.constant 0 : i32
    return %c0_i32, %c0_i32_0 : i32, i32
  }
  func.func @transform_6(%arg0: i32) -> (i32, i32) {
    %c0_i32 = arith.constant 0 : i32
    %c0_i32_0 = arith.constant 0 : i32
    %c0_i32_1 = arith.constant 0 : i32
    return %c0_i32, %c0_i32_0 : i32, i32
  }
  func.func @transform_7(%arg0: i32) -> (i32, i32) {
    %c0_i32 = arith.constant 0 : i32
    %c0_i32_0 = arith.constant 0 : i32
    %c0_i32_1 = arith.constant 0 : i32
    return %c0_i32, %c0_i32_0 : i32, i32
  }
  func.func @transform_8(%arg0: i32) -> (i32, i32) {
    %c0_i32 = arith.constant 0 : i32
    %c0_i32_0 = arith.constant 0 : i32
    %c0_i32_1 = arith.constant 0 : i32
    return %c0_i32, %c0_i32_0 : i32, i32
  }
  func.func @transform_9(%arg0: i32) -> (i32, i32, i32) {
    %c0_i32 = arith.constant 0 : i32
    %c0_i32_0 = arith.constant 0 : i32
    %c0_i32_1 = arith.constant 0 : i32
    return %arg0, %c0_i32, %c0_i32_0 : i32, i32, i32
  }
}

</mosaic_0001>

<llo_original>
// kernel: tpu_custom_call.1
$region0: #{tpu_custom_call.1}
  #allocation0 [shape = 'u32[]', space=smem, size = 0x4, offset = 0x4, fixed_abs, tag = 'smem constant byte address 0x4 - core index']
  #allocation1 [shape = 'u32[72,128]{1,0:T(1,128)}', space=vmem, size = 0x9000, scoped, tag = 'internal scratch']
  %s0 = inlined_call_operand.vmem [shape: bf16[2,11,11,36], index: 0, kind: input, shape index: {}]
  %s1 = inlined_call_operand.vmem [shape: bf16[36,32], index: 1, kind: input, shape index: {}]
  %s2 = inlined_call_operand.vmem [shape: f32[1,32], index: 2, kind: input, shape index: {}]
  %s3 = inlined_call_operand.vmem [shape: bf16[96,96], index: 3, kind: input, shape index: {}]
  %s4 = inlined_call_operand.vmem [shape: f32[1,32], index: 4, kind: input, shape index: {}]
  %s5 = inlined_call_operand.vmem [shape: bf16[96,96], index: 5, kind: input, shape index: {}]
  %s6 = inlined_call_operand.vmem [shape: f32[1,32], index: 6, kind: input, shape index: {}]
  %s7 = inlined_call_operand.vmem [shape: bf16[96,96], index: 7, kind: input, shape index: {}]
  %s8 = inlined_call_operand.vmem [shape: f32[1,32], index: 8, kind: input, shape index: {}]
  %s9 = inlined_call_operand.vmem [shape: f32[2,32,25], index: 9, kind: output, shape index: {}]
  %s10 = sld [smem:[#allocation0]]
  $region69: #{tpu_custom_call.1} parent=0
    _
  %s12 = ssub.s32 1, %s10
  %s13 = scalar_select 0, %s12, %s10
  loop: start=0, step=1, limit=4
  $region2: #{tpu_custom_call.1} parent=0 // loop_pre_header
    _
  $region3: #{tpu_custom_call.1} parent=0 // loop_header
    %s15 = sphi 0, %s19
    %p16 = scmp.ge.s32.totalorder %s15, 4
    %s25 = sphi 0, %s27
    %s28 = sphi 0, %s25
    %s29 = sphi 0, %s28
    %s45 = sphi 0, %s29
    %s49 = sphi 0, %s49
    %s51 = sphi 0, %s49
    %s52 = sphi 0, %s51
    %s66 = sphi 0, %s52
    %s70 = sphi 0, %s70
    %s72 = sphi 0, %s70
    %s73 = sphi 0, %s72
    %s87 = sphi 0, %s73
    %s91 = sphi 0, %s91
    %s93 = sphi 0, %s91
    %s94 = sphi 0, %s93
    %s108 = sphi 0, %s94
    %s112 = sphi 0, %s112
    %s114 = sphi 0, %s112
    %s115 = sphi 0, %s114
    %s129 = sphi 0, %s115
    %s133 = sphi 0, %s133
    %s135 = sphi 0, %s133
    %s136 = sphi 0, %s135
    %s150 = sphi 0, %s136
    %s154 = sphi 0, %s154
    %s156 = sphi 0, %s154
    %s157 = sphi 0, %s156
    %s171 = sphi 0, %s157
    %s175 = sphi 0, %s175
    %s177 = sphi 0, %s175
    %s178 = sphi 0, %s177
    %s192 = sphi 0, %s178
    %s196 = sphi 0, %s196
    %s198 = sphi 0, %s196
    %s199 = sphi 0, %s198
    %s213 = sphi 0, %s199
    %s219 = sphi 0, %s221
    %s222 = sphi 0, %s219
    %s223 = sphi 0, %s222
    %s239 = sphi 0, %s223
  $region4: #{tpu_custom_call.1} parent=0 // loop_header_branch
    %18 = sbr.rel (%p16) target = $region8
  $region5: #{tpu_custom_call.1} parent=0 // loop_body
    %s20 = ssub.s32 %s15, 1
    %s21 = ssub.s32 %s15, 2
    %s22 = sadd.s32 %s15, 1
    %s23 = ssub.s32 %s15, %s22
    %p24 = scmp.eq.s32.totalorder %s23, 0
    %s26 = sadd.s32 %s25, 1
    %s27 = scalar_select %p24, %s25, %s26
    %p30 = pneg %p24
    %p31 = scmp.eq.s32.totalorder %s15, 1
    %p32 = por %p30, %p31
    %p33 = scmp.ne.s32.totalorder %s25, %s28
    %p34 = scmp.eq.s32.totalorder %s15, 0
    %p35 = por %p33, %p34
    %p36 = scmp.ne.s32.totalorder %s25, %s28
    %p37 = scmp.eq.s32.totalorder %s20, 1
    %p38 = por %p36, %p37
    %p39 = scmp.ne.s32.totalorder %s28, %s29
    %p40 = scmp.eq.s32.totalorder %s20, 0
    %p41 = por %p39, %p40
    %p42 = scmp.ne.s32.totalorder %s28, %s29
    %p43 = scmp.eq.s32.totalorder %s21, 1
    %p44 = por %p42, %p43
    %p46 = scmp.ne.s32.totalorder %s29, %s45
    %p47 = scmp.eq.s32.totalorder %s21, 0
    %p48 = por %p46, %p47
    %s50 = sadd.s32 %s49, 1
    %p53 = scmp.eq.s32.totalorder %s15, 1
    %p54 = scmp.ne.s32.totalorder %s49, %s51
    %p55 = scmp.eq.s32.totalorder %s15, 0
    %p56 = por %p54, %p55
    %p57 = scmp.ne.s32.totalorder %s49, %s51
    %p58 = scmp.eq.s32.totalorder %s20, 1
    %p59 = por %p57, %p58
    %p60 = scmp.ne.s32.totalorder %s51, %s52
    %p61 = scmp.eq.s32.totalorder %s20, 0
    %p62 = por %p60, %p61
    %p63 = scmp.ne.s32.totalorder %s51, %s52
    %p64 = scmp.eq.s32.totalorder %s21, 1
    %p65 = por %p63, %p64
    %p67 = scmp.ne.s32.totalorder %s52, %s66
    %p68 = scmp.eq.s32.totalorder %s21, 0
    %p69 = por %p67, %p68
    %s71 = sadd.s32 %s70, 1
    %p74 = scmp.eq.s32.totalorder %s15, 1
    %p75 = scmp.ne.s32.totalorder %s70, %s72
    %p76 = scmp.eq.s32.totalorder %s15, 0
    %p77 = por %p75, %p76
    %p78 = scmp.ne.s32.totalorder %s70, %s72
    %p79 = scmp.eq.s32.totalorder %s20, 1
    %p80 = por %p78, %p79
    %p81 = scmp.ne.s32.totalorder %s72, %s73
    %p82 = scmp.eq.s32.totalorder %s20, 0
    %p83 = por %p81, %p82
    %p84 = scmp.ne.s32.totalorder %s72, %s73
    %p85 = scmp.eq.s32.totalorder %s21, 1
    %p86 = por %p84, %p85
    %p88 = scmp.ne.s32.totalorder %s73, %s87
    %p89 = scmp.eq.s32.totalorder %s21, 0
    %p90 = por %p88, %p89
    %s92 = sadd.s32 %s91, 1
    %p95 = scmp.eq.s32.totalorder %s15, 1
    %p96 = scmp.ne.s32.totalorder %s91, %s93
    %p97 = scmp.eq.s32.totalorder %s15, 0
    %p98 = por %p96, %p97
    %p99 = scmp.ne.s32.totalorder %s91, %s93
    %p100 = scmp.eq.s32.totalorder %s20, 1
    %p101 = por %p99, %p100
    %p102 = scmp.ne.s32.totalorder %s93, %s94
    %p103 = scmp.eq.s32.totalorder %s20, 0
    %p104 = por %p102, %p103
    %p105 = scmp.ne.s32.totalorder %s93, %s94
    %p106 = scmp.eq.s32.totalorder %s21, 1
    %p107 = por %p105, %p106
    %p109 = scmp.ne.s32.totalorder %s94, %s108
    %p110 = scmp.eq.s32.totalorder %s21, 0
    %p111 = por %p109, %p110
    %s113 = sadd.s32 %s112, 1
    %p116 = scmp.eq.s32.totalorder %s15, 1
    %p117 = scmp.ne.s32.totalorder %s112, %s114
    %p118 = scmp.eq.s32.totalorder %s15, 0
    %p119 = por %p117, %p118
    %p120 = scmp.ne.s32.totalorder %s112, %s114
    %p121 = scmp.eq.s32.totalorder %s20, 1
    %p122 = por %p120, %p121
    %p123 = scmp.ne.s32.totalorder %s114, %s115
    %p124 = scmp.eq.s32.totalorder %s20, 0
    %p125 = por %p123, %p124
    %p126 = scmp.ne.s32.totalorder %s114, %s115
    %p127 = scmp.eq.s32.totalorder %s21, 1
    %p128 = por %p126, %p127
    %p130 = scmp.ne.s32.totalorder %s115, %s129
    %p131 = scmp.eq.s32.totalorder %s21, 0
    %p132 = por %p130, %p131
    %s134 = sadd.s32 %s133, 1
    %p137 = scmp.eq.s32.totalorder %s15, 1
    %p138 = scmp.ne.s32.totalorder %s133, %s135
    %p139 = scmp.eq.s32.totalorder %s15, 0
    %p140 = por %p138, %p139
    %p141 = scmp.ne.s32.totalorder %s133, %s135
    %p142 = scmp.eq.s32.totalorder %s20, 1
    %p143 = por %p141, %p142
    %p144 = scmp.ne.s32.totalorder %s135, %s136
    %p145 = scmp.eq.s32.totalorder %s20, 0
    %p146 = por %p144, %p145
    %p147 = scmp.ne.s32.totalorder %s135, %s136
    %p148 = scmp.eq.s32.totalorder %s21, 1
    %p149 = por %p147, %p148
    %p151 = scmp.ne.s32.totalorder %s136, %s150
    %p152 = scmp.eq.s32.totalorder %s21, 0
    %p153 = por %p151, %p152
    %s155 = sadd.s32 %s154, 1
    %p158 = scmp.eq.s32.totalorder %s15, 1
    %p159 = scmp.ne.s32.totalorder %s154, %s156
    %p160 = scmp.eq.s32.totalorder %s15, 0
    %p161 = por %p159, %p160
    %p162 = scmp.ne.s32.totalorder %s154, %s156
    %p163 = scmp.eq.s32.totalorder %s20, 1
    %p164 = por %p162, %p163
    %p165 = scmp.ne.s32.totalorder %s156, %s157
    %p166 = scmp.eq.s32.totalorder %s20, 0
    %p167 = por %p165, %p166
    %p168 = scmp.ne.s32.totalorder %s156, %s157
    %p169 = scmp.eq.s32.totalorder %s21, 1
    %p170 = por %p168, %p169
    %p172 = scmp.ne.s32.totalorder %s157, %s171
    %p173 = scmp.eq.s32.totalorder %s21, 0
    %p174 = por %p172, %p173
    %s176 = sadd.s32 %s175, 1
    %p179 = scmp.eq.s32.totalorder %s15, 1
    %p180 = scmp.ne.s32.totalorder %s175, %s177
    %p181 = scmp.eq.s32.totalorder %s15, 0
    %p182 = por %p180, %p181
    %p183 = scmp.ne.s32.totalorder %s175, %s177
    %p184 = scmp.eq.s32.totalorder %s20, 1
    %p185 = por %p183, %p184
    %p186 = scmp.ne.s32.totalorder %s177, %s178
    %p187 = scmp.eq.s32.totalorder %s20, 0
    %p188 = por %p186, %p187
    %p189 = scmp.ne.s32.totalorder %s177, %s178
    %p190 = scmp.eq.s32.totalorder %s21, 1
    %p191 = por %p189, %p190
    %p193 = scmp.ne.s32.totalorder %s178, %s192
    %p194 = scmp.eq.s32.totalorder %s21, 0
    %p195 = por %p193, %p194
    %s197 = sadd.s32 %s196, 1
    %p200 = scmp.eq.s32.totalorder %s15, 1
    %p201 = scmp.ne.s32.totalorder %s196, %s198
    %p202 = scmp.eq.s32.totalorder %s15, 0
    %p203 = por %p201, %p202
    %p204 = scmp.ne.s32.totalorder %s196, %s198
    %p205 = scmp.eq.s32.totalorder %s20, 1
    %p206 = por %p204, %p205
    %p207 = scmp.ne.s32.totalorder %s198, %s199
    %p208 = scmp.eq.s32.totalorder %s20, 0
    %p209 = por %p207, %p208
    %p210 = scmp.ne.s32.totalorder %s198, %s199
    %p211 = scmp.eq.s32.totalorder %s21, 1
    %p212 = por %p210, %p211
    %p214 = scmp.ne.s32.totalorder %s199, %s213
    %p215 = scmp.eq.s32.totalorder %s21, 0
    %p216 = por %p214, %p215
    %s217 = ssub.s32 %s15, %s22
    %p218 = scmp.eq.s32.totalorder %s217, 0
    %s220 = sadd.s32 %s219, 1
    %s221 = scalar_select %p218, %s219, %s220
    %p224 = pneg %p218
    %p225 = scmp.eq.s32.totalorder %s15, 1
    %p226 = por %p224, %p225
    %p227 = scmp.ne.s32.totalorder %s219, %s222
    %p228 = scmp.eq.s32.totalorder %s15, 0
    %p229 = por %p227, %p228
    %p230 = scmp.ne.s32.totalorder %s219, %s222
    %p231 = scmp.eq.s32.totalorder %s20, 1
    %p232 = por %p230, %p231
    %p233 = scmp.ne.s32.totalorder %s222, %s223
    %p234 = scmp.eq.s32.totalorder %s20, 0
    %p235 = por %p233, %p234
    %p236 = scmp.ne.s32.totalorder %s222, %s223
    %p237 = scmp.eq.s32.totalorder %s21, 1
    %p238 = por %p236, %p237
    %p240 = scmp.ne.s32.totalorder %s223, %s239
    %p241 = scmp.eq.s32.totalorder %s21, 0
    %p242 = por %p240, %p241
    %p243 = scmp.le.s32.totalorder 1, %s15
    %p244 = scmp.lt.s32.totalorder %s15, 3
    %p245 = pnand %p243, %p244
    %p246 = pneg %p245
    // Predicated region
    $region9: #{tpu_custom_call.1} parent=5 // pred_check
      _
    $region10: #{tpu_custom_call.1} parent=5 // pred_check_branch
      %248 = sbr.rel (%p245) target = $region12
    $region11: #{tpu_custom_call.1} parent=5 // pred_region
      %s249 = ssub.s32 %s15, 1
      // Predicated region
      $region13: #{tpu_custom_call.1} parent=11 // pred_check
        %p250 = pneg %p62
      $region14: #{tpu_custom_call.1} parent=11 // pred_check_branch
        %252 = sbr.rel (%p250) target = $region16
      $region15: #{tpu_custom_call.1} parent=11 // pred_region
        _
      $region16: #{tpu_custom_call.1} parent=11 // pred_fallthru
        _
      // Predicated region
      $region17: #{tpu_custom_call.1} parent=11 // pred_check
        %p253 = pneg %p83
      $region18: #{tpu_custom_call.1} parent=11 // pred_check_branch
        %255 = sbr.rel (%p253) target = $region20
      $region19: #{tpu_custom_call.1} parent=11 // pred_region
        _
      $region20: #{tpu_custom_call.1} parent=11 // pred_fallthru
        _
      // Predicated region
      $region21: #{tpu_custom_call.1} parent=11 // pred_check
        %p256 = pneg %p104
      $region22: #{tpu_custom_call.1} parent=11 // pred_check_branch
        %258 = sbr.rel (%p256) target = $region24
      $region23: #{tpu_custom_call.1} parent=11 // pred_region
        _
      $region24: #{tpu_custom_call.1} parent=11 // pred_fallthru
        _
      // Predicated region
      $region25: #{tpu_custom_call.1} parent=11 // pred_check
        %p259 = pneg %p125
      $region26: #{tpu_custom_call.1} parent=11 // pred_check_branch
        %261 = sbr.rel (%p259) target = $region28
      $region27: #{tpu_custom_call.1} parent=11 // pred_region
        _
      $region28: #{tpu_custom_call.1} parent=11 // pred_fallthru
        _
      // Predicated region
      $region29: #{tpu_custom_call.1} parent=11 // pred_check
        %p262 = pneg %p146
      $region30: #{tpu_custom_call.1} parent=11 // pred_check_branch
        %264 = sbr.rel (%p262) target = $region32
      $region31: #{tpu_custom_call.1} parent=11 // pred_region
        _
      $region32: #{tpu_custom_call.1} parent=11 // pred_fallthru
        _
      // Predicated region
      $region33: #{tpu_custom_call.1} parent=11 // pred_check
        %p265 = pneg %p167
      $region34: #{tpu_custom_call.1} parent=11 // pred_check_branch
        %267 = sbr.rel (%p265) target = $region36
      $region35: #{tpu_custom_call.1} parent=11 // pred_region
        _
      $region36: #{tpu_custom_call.1} parent=11 // pred_fallthru
        _
      // Predicated region
      $region37: #{tpu_custom_call.1} parent=11 // pred_check
        %p268 = pneg %p188
      $region38: #{tpu_custom_call.1} parent=11 // pred_check_branch
        %270 = sbr.rel (%p268) target = $region40
      $region39: #{tpu_custom_call.1} parent=11 // pred_region
        _
      $region40: #{tpu_custom_call.1} parent=11 // pred_fallthru
        _
      // Predicated region
      $region41: #{tpu_custom_call.1} parent=11 // pred_check
        %p271 = pneg %p209
      $region42: #{tpu_custom_call.1} parent=11 // pred_check_branch
        %273 = sbr.rel (%p271) target = $region44
      $region43: #{tpu_custom_call.1} parent=11 // pred_region
        _
      $region44: #{tpu_custom_call.1} parent=11 // pred_fallthru
        _
    $region12: #{tpu_custom_call.1} parent=5 // pred_fallthru
      _
    %p274 = scmp.lt.s32.totalorder %s15, 2
    // Predicated region
    $region45: #{tpu_custom_call.1} parent=5 // pred_check
      %p275 = pneg %p274
    $region46: #{tpu_custom_call.1} parent=5 // pred_check_branch
      %277 = sbr.rel (%p275) target = $region48
    $region47: #{tpu_custom_call.1} parent=5 // pred_region
      // Predicated region
      $region49: #{tpu_custom_call.1} parent=47 // pred_check
        %p278 = pneg %p35
      $region50: #{tpu_custom_call.1} parent=47 // pred_check_branch
        %280 = sbr.rel (%p278) target = $region52
      $region51: #{tpu_custom_call.1} parent=47 // pred_region
        %p281 = scmp.lt.s32.totalorder %s15, 1
        %s282 = scalar_select %p281, %s15, 1
        %s283 = smul.addr %s282, 22
        %s284 = smul.addr %s283, 4
        %s285 = scalar_lea.vmem %s0, %s284
      $region52: #{tpu_custom_call.1} parent=47 // pred_fallthru
        _
    $region48: #{tpu_custom_call.1} parent=5 // pred_fallthru
      _
    %p286 = scmp.le.s32.totalorder 1, %s15
    %p287 = scmp.lt.s32.totalorder %s15, 3
    %p288 = pnand %p286, %p287
    %p289 = pneg %p288
    // Predicated region
    $region53: #{tpu_custom_call.1} parent=5 // pred_check
      _
    $region54: #{tpu_custom_call.1} parent=5 // pred_check_branch
      %291 = sbr.rel (%p288) target = $region56
    $region55: #{tpu_custom_call.1} parent=5 // pred_region
      %s292 = ssub.s32 %s15, 1
      %p293 = scmp.lt.s32.totalorder %s20, 1
      %s294 = scalar_select %p293, %s20, 1
      %s295 = smul.addr %s294, 22
      %s296 = smul.addr %s295, 4
      %s297 = scalar_lea.vmem %s0, %s296
      %p298 = pneg %p41
      %p299 = pneg %p38
      %p300 = pneg %p62
      %p301 = pneg %p59
      %p302 = pneg %p83
      %p303 = pneg %p80
      %p304 = pneg %p104
      %p305 = pneg %p101
      %p306 = pneg %p125
      %p307 = pneg %p122
      %p308 = pneg %p146
      %p309 = pneg %p143
      %p310 = pneg %p167
      %p311 = pneg %p164
      %p312 = pneg %p188
      %p313 = pneg %p185
      %p314 = pneg %p209
      %p315 = pneg %p206
      %p316 = pneg %p235
      %p317 = pneg %p232
      %p318 = scmp.lt.s32.totalorder %s20, 1
      %s319 = scalar_select %p318, %s20, 1
      %s320 = smul.addr %s319, 4
      %s321 = smul.addr %s320, 8
      %s322 = scalar_lea.vmem %s9, %s321
      %p323 = scmp.lt.s32.totalorder %s20, 1
      %s324 = scalar_select %p323, %s20, 1
      %s325 = smul.addr %s324, 22
      %s326 = smul.addr %s325, 4
      %s327 = scalar_lea.vmem %s0, %s326
      %p328 = scmp.lt.s32.totalorder %s20, 1
      %s329 = scalar_select %p328, %s20, 1
      %s330 = smul.addr %s329, 4
      %s331 = smul.addr %s330, 8
      %s332 = scalar_lea.vmem %s9, %s331
      %v334 = vld [vmem:[%s327] sm:$0xf]
      %v335 = vld [vmem:[%s327 + $0x4] sm:$0x3]
      %v336 = vld [vmem:[%s327 + $0x8] sm:$0xf]
      %v337 = vld [vmem:[%s327 + $0xc] sm:$0x3]
      %v338 = vld [vmem:[%s327 + $0x10] sm:$0xf]
      %v339 = vld [vmem:[%s327 + $0x14] sm:$0x3]
      %v340 = vld [vmem:[%s327 + $0x18] sm:$0xf]
      %v341 = vld [vmem:[%s327 + $0x1c] sm:$0x3]
      %v342 = vld [vmem:[%s327 + $0x20] sm:$0xf]
      %v343 = vld [vmem:[%s327 + $0x24] sm:$0x3]
      %v344 = vld [vmem:[%s327 + $0x28] sm:$0xf]
      %v345 = vld [vmem:[%s327 + $0x2c] sm:$0x3]
      %v346 = vld [vmem:[%s327 + $0x30] sm:$0xf]
      %v347 = vld [vmem:[%s327 + $0x34] sm:$0x3]
      %v348 = vld [vmem:[%s327 + $0x38] sm:$0xf]
      %v349 = vld [vmem:[%s327 + $0x3c] sm:$0x3]
      %v350 = vld [vmem:[%s327 + $0x40] sm:$0xf]
      %v351 = vld [vmem:[%s327 + $0x44] sm:$0x3]
      %v352 = vld [vmem:[%s327 + $0x48] sm:$0xf]
      %v353 = vld [vmem:[%s327 + $0x4c] sm:$0x3]
      %v354 = vld [vmem:[%s327 + $0x50] sm:$0xf]
      %v355 = vld [vmem:[%s327 + $0x54] sm:$0x3]
      %v378 = vrot.slane %v334, 3
      %v379 = vrot.slane %v335, 3
      %v380 = vrot.slane %v336, 3
      %v381 = vrot.slane %v337, 3
      %v382 = vrot.slane %v338, 3
      %v383 = vrot.slane %v339, 3
      %v384 = vrot.slane %v340, 3
      %v385 = vrot.slane %v341, 3
      %v386 = vrot.slane %v342, 3
      %v387 = vrot.slane %v343, 3
      %v388 = vrot.slane %v344, 3
      %v389 = vrot.slane %v345, 3
      %v390 = vrot.slane %v346, 3
      %v391 = vrot.slane %v347, 3
      %v392 = vrot.slane %v348, 3
      %v393 = vrot.slane %v349, 3
      %v394 = vrot.slane %v350, 3
      %v395 = vrot.slane %v351, 3
      %v396 = vrot.slane %v352, 3
      %v397 = vrot.slane %v353, 3
      %v398 = vrot.slane %v354, 3
      %v399 = vrot.slane %v355, 3
      %vm400 = vcmask 1040384
      %v403 = vsel %vm400, %v334, %v378
      %vm405 = vcmask 1041409
      %v406 = vsel %vm405, %v334, %v378
      %v408 = vrot.slane %v406, 1
      %vm409 = vcmask 1042434
      %v410 = vsel %vm409, %v334, %v378
      %v412 = vrot.slane %v410, 2
      %vm413 = vcmask 1043459
      %v414 = vsel %vm413, %v334, %v378
      %v416 = vrot.slane %v414, 3
      %v419 = vsel %vm400, %v335, %v379
      %v421 = vsel %vm405, %v335, %v379
      %v423 = vrot.slane %v421, 1
      %v426 = vsel %vm400, %v336, %v380
      %v428 = vsel %vm405, %v336, %v380
      %v430 = vrot.slane %v428, 1
      %v431 = vsel %vm409, %v336, %v380
      %v433 = vrot.slane %v431, 2
      %v434 = vsel %vm413, %v336, %v380
      %v436 = vrot.slane %v434, 3
      %v439 = vsel %vm400, %v337, %v381
      %v441 = vsel %vm405, %v337, %v381
      %v443 = vrot.slane %v441, 1
      %v446 = vsel %vm400, %v338, %v382
      %v448 = vsel %vm405, %v338, %v382
      %v450 = vrot.slane %v448, 1
      %v451 = vsel %vm409, %v338, %v382
      %v453 = vrot.slane %v451, 2
      %v454 = vsel %vm413, %v338, %v382
      %v456 = vrot.slane %v454, 3
      %v459 = vsel %vm400, %v339, %v383
      %v461 = vsel %vm405, %v339, %v383
      %v463 = vrot.slane %v461, 1
      %v466 = vsel %vm400, %v340, %v384
      %v468 = vsel %vm405, %v340, %v384
      %v470 = vrot.slane %v468, 1
      %v471 = vsel %vm409, %v340, %v384
      %v473 = vrot.slane %v471, 2
      %v474 = vsel %vm413, %v340, %v384
      %v476 = vrot.slane %v474, 3
      %v479 = vsel %vm400, %v341, %v385
      %v481 = vsel %vm405, %v341, %v385
      %v483 = vrot.slane %v481, 1
      %v486 = vsel %vm400, %v342, %v386
      %v488 = vsel %vm405, %v342, %v386
      %v490 = vrot.slane %v488, 1
      %v491 = vsel %vm409, %v342, %v386
      %v493 = vrot.slane %v491, 2
      %v494 = vsel %vm413, %v342, %v386
      %v496 = vrot.slane %v494, 3
      %v499 = vsel %vm400, %v343, %v387
      %v501 = vsel %vm405, %v343, %v387
      %v503 = vrot.slane %v501, 1
      %v506 = vsel %vm400, %v344, %v388
      %v508 = vsel %vm405, %v344, %v388
      %v510 = vrot.slane %v508, 1
      %v511 = vsel %vm409, %v344, %v388
      %v513 = vrot.slane %v511, 2
      %v514 = vsel %vm413, %v344, %v388
      %v516 = vrot.slane %v514, 3
      %v519 = vsel %vm400, %v345, %v389
      %v521 = vsel %vm405, %v345, %v389
      %v523 = vrot.slane %v521, 1
      %v526 = vsel %vm400, %v346, %v390
      %v528 = vsel %vm405, %v346, %v390
      %v530 = vrot.slane %v528, 1
      %v531 = vsel %vm409, %v346, %v390
      %v533 = vrot.slane %v531, 2
      %v534 = vsel %vm413, %v346, %v390
      %v536 = vrot.slane %v534, 3
      %v539 = vsel %vm400, %v347, %v391
      %v541 = vsel %vm405, %v347, %v391
      %v543 = vrot.slane %v541, 1
      %v546 = vsel %vm400, %v348, %v392
      %v548 = vsel %vm405, %v348, %v392
      %v550 = vrot.slane %v548, 1
      %v551 = vsel %vm409, %v348, %v392
      %v553 = vrot.slane %v551, 2
      %v554 = vsel %vm413, %v348, %v392
      %v556 = vrot.slane %v554, 3
      %v559 = vsel %vm400, %v349, %v393
      %v561 = vsel %vm405, %v349, %v393
      %v563 = vrot.slane %v561, 1
      %v566 = vsel %vm400, %v350, %v394
      %v568 = vsel %vm405, %v350, %v394
      %v570 = vrot.slane %v568, 1
      %v571 = vsel %vm409, %v350, %v394
      %v573 = vrot.slane %v571, 2
      %v574 = vsel %vm413, %v350, %v394
      %v576 = vrot.slane %v574, 3
      %v579 = vsel %vm400, %v351, %v395
      %v581 = vsel %vm405, %v351, %v395
      %v583 = vrot.slane %v581, 1
      %v586 = vsel %vm400, %v352, %v396
      %v588 = vsel %vm405, %v352, %v396
      %v590 = vrot.slane %v588, 1
      %v591 = vsel %vm409, %v352, %v396
      %v593 = vrot.slane %v591, 2
      %v594 = vsel %vm413, %v352, %v396
      %v596 = vrot.slane %v594, 3
      %v599 = vsel %vm400, %v353, %v397
      %v601 = vsel %vm405, %v353, %v397
      %v603 = vrot.slane %v601, 1
      %v606 = vsel %vm400, %v354, %v398
      %v608 = vsel %vm405, %v354, %v398
      %v610 = vrot.slane %v608, 1
      %v611 = vsel %vm409, %v354, %v398
      %v613 = vrot.slane %v611, 2
      %v614 = vsel %vm413, %v354, %v398
      %v616 = vrot.slane %v614, 3
      %v619 = vsel %vm400, %v355, %v399
      %v621 = vsel %vm405, %v355, %v399
      %v623 = vrot.slane %v621, 1
      %v624 = vunpack.i.l.s16 %v403
      %v625 = vunpack.i.h.s16 %v403
      %v626 = vunpack.i.l.s16 %v408
      %v627 = vunpack.i.h.s16 %v408
      %v628 = vunpack.i.l.s16 %v412
      %v629 = vunpack.i.h.s16 %v412
      %v630 = vunpack.i.l.s16 %v416
      %v631 = vunpack.i.h.s16 %v416
      %v632 = vunpack.i.l.s16 %v419
      %v633 = vunpack.i.h.s16 %v419
      %v634 = vunpack.i.l.s16 %v423
      %v635 = vunpack.i.l.s16 %v426
      %v636 = vunpack.i.h.s16 %v426
      %v637 = vunpack.i.l.s16 %v430
      %v638 = vunpack.i.h.s16 %v430
      %v639 = vunpack.i.l.s16 %v433
      %v640 = vunpack.i.h.s16 %v433
      %v641 = vunpack.i.l.s16 %v436
      %v642 = vunpack.i.h.s16 %v436
      %v643 = vunpack.i.l.s16 %v439
      %v644 = vunpack.i.h.s16 %v439
      %v645 = vunpack.i.l.s16 %v443
      %v646 = vunpack.i.l.s16 %v446
      %v647 = vunpack.i.h.s16 %v446
      %v648 = vunpack.i.l.s16 %v450
      %v649 = vunpack.i.h.s16 %v450
      %v650 = vunpack.i.l.s16 %v453
      %v651 = vunpack.i.h.s16 %v453
      %v652 = vunpack.i.l.s16 %v456
      %v653 = vunpack.i.h.s16 %v456
      %v654 = vunpack.i.l.s16 %v459
      %v655 = vunpack.i.h.s16 %v459
      %v656 = vunpack.i.l.s16 %v463
      %v657 = vunpack.i.l.s16 %v466
      %v658 = vunpack.i.h.s16 %v466
      %v659 = vunpack.i.l.s16 %v470
      %v660 = vunpack.i.h.s16 %v470
      %v661 = vunpack.i.l.s16 %v473
      %v662 = vunpack.i.h.s16 %v473
      %v663 = vunpack.i.l.s16 %v476
      %v664 = vunpack.i.h.s16 %v476
      %v665 = vunpack.i.l.s16 %v479
      %v666 = vunpack.i.h.s16 %v479
      %v667 = vunpack.i.l.s16 %v483
      %v668 = vunpack.i.l.s16 %v486
      %v669 = vunpack.i.h.s16 %v486
      %v670 = vunpack.i.l.s16 %v490
      %v671 = vunpack.i.h.s16 %v490
      %v672 = vunpack.i.l.s16 %v493
      %v673 = vunpack.i.h.s16 %v493
      %v674 = vunpack.i.l.s16 %v496
      %v675 = vunpack.i.h.s16 %v496
      %v676 = vunpack.i.l.s16 %v499
      %v677 = vunpack.i.h.s16 %v499
      %v678 = vunpack.i.l.s16 %v503
      %v679 = vunpack.i.l.s16 %v506
      %v680 = vunpack.i.h.s16 %v506
      %v681 = vunpack.i.l.s16 %v510
      %v682 = vunpack.i.h.s16 %v510
      %v683 = vunpack.i.l.s16 %v513
      %v684 = vunpack.i.h.s16 %v513
      %v685 = vunpack.i.l.s16 %v516
      %v686 = vunpack.i.h.s16 %v516
      %v687 = vunpack.i.l.s16 %v519
      %v688 = vunpack.i.h.s16 %v519
      %v689 = vunpack.i.l.s16 %v523
      %v690 = vunpack.i.l.s16 %v526
      %v691 = vunpack.i.h.s16 %v526
      %v692 = vunpack.i.l.s16 %v530
      %v693 = vunpack.i.h.s16 %v530
      %v694 = vunpack.i.l.s16 %v533
      %v695 = vunpack.i.h.s16 %v533
      %v696 = vunpack.i.l.s16 %v536
      %v697 = vunpack.i.h.s16 %v536
      %v698 = vunpack.i.l.s16 %v539
      %v699 = vunpack.i.h.s16 %v539
      %v700 = vunpack.i.l.s16 %v543
      %v701 = vunpack.i.l.s16 %v546
      %v702 = vunpack.i.h.s16 %v546
      %v703 = vunpack.i.l.s16 %v550
      %v704 = vunpack.i.h.s16 %v550
      %v705 = vunpack.i.l.s16 %v553
      %v706 = vunpack.i.h.s16 %v553
      %v707 = vunpack.i.l.s16 %v556
      %v708 = vunpack.i.h.s16 %v556
      %v709 = vunpack.i.l.s16 %v559
      %v710 = vunpack.i.h.s16 %v559
      %v711 = vunpack.i.l.s16 %v563
      %v712 = vunpack.i.l.s16 %v566
      %v713 = vunpack.i.h.s16 %v566
      %v714 = vunpack.i.l.s16 %v570
      %v715 = vunpack.i.h.s16 %v570
      %v716 = vunpack.i.l.s16 %v573
      %v717 = vunpack.i.h.s16 %v573
      %v718 = vunpack.i.l.s16 %v576
      %v719 = vunpack.i.h.s16 %v576
      %v720 = vunpack.i.l.s16 %v579
      %v721 = vunpack.i.h.s16 %v579
      %v722 = vunpack.i.l.s16 %v583
      %v723 = vunpack.i.l.s16 %v586
      %v724 = vunpack.i.h.s16 %v586
      %v725 = vunpack.i.l.s16 %v590
      %v726 = vunpack.i.h.s16 %v590
      %v727 = vunpack.i.l.s16 %v593
      %v728 = vunpack.i.h.s16 %v593
      %v729 = vunpack.i.l.s16 %v596
      %v730 = vunpack.i.h.s16 %v596
      %v731 = vunpack.i.l.s16 %v599
      %v732 = vunpack.i.h.s16 %v599
      %v733 = vunpack.i.l.s16 %v603
      %v734 = vunpack.i.l.s16 %v606
      %v735 = vunpack.i.h.s16 %v606
      %v736 = vunpack.i.l.s16 %v610
      %v737 = vunpack.i.h.s16 %v610
      %v738 = vunpack.i.l.s16 %v613
      %v739 = vunpack.i.h.s16 %v613
      %v740 = vunpack.i.l.s16 %v616
      %v741 = vunpack.i.h.s16 %v616
      %v742 = vunpack.i.l.s16 %v619
      %v743 = vunpack.i.h.s16 %v619
      %v744 = vunpack.i.l.s16 %v623
      %v745 = vld [vmem:[%s1] sm:$0xf]
      %v746 = vld [vmem:[%s1 + $0x4] sm:$0xf]
      %v747 = vld [vmem:[%s1 + $0x8] sm:$0xf]
      %v748 = vld [vmem:[%s1 + $0xc] sm:$0xf]
      %v749 = vld [vmem:[%s1 + $0x10] sm:$0x3]
      %v750 = vld [vmem:[%s2] sm:$0x1]
      %v752 = vperm.slane %v750, 0
      %v754 = vpack.i.b16 %v625, %v624
      %v755 = vpack.i.b16 %v627, %v626
      %v756 = vpack.i.b16 %v629, %v628
      %v757 = vpack.i.b16 %v631, %v630
      %v758 = vpack.i.b16 %v633, %v632
      %v759 = vpack.i.b16 %v635, %v634
      %v760 = vpack.i.b16 %v637, %v636
      %v761 = vpack.i.b16 %v639, %v638
      %v762 = vpack.i.b16 %v641, %v640
      %v763 = vpack.i.b16 %v643, %v642
      %v764 = vpack.i.b16 %v645, %v644
      %v765 = vpack.i.b16 %v647, %v646
      %v766 = vpack.i.b16 %v649, %v648
      %v767 = vpack.i.b16 %v651, %v650
      %v768 = vpack.i.b16 %v653, %v652
      %v769 = vpack.i.b16 %v655, %v654
      %v770 = vpack.i.b16 %v657, %v656
      %v771 = vpack.i.b16 %v659, %v658
      %v772 = vpack.i.b16 %v661, %v660
      %v773 = vpack.i.b16 %v663, %v662
      %v774 = vpack.i.b16 %v665, %v664
      %v775 = vpack.i.b16 %v667, %v666
      %v776 = vpack.i.b16 %v669, %v668
      %v777 = vpack.i.b16 %v671, %v670
      %v778 = vpack.i.b16 %v673, %v672
      %v779 = vpack.i.b16 %v675, %v674
      %v780 = vpack.i.b16 %v677, %v676
      %v781 = vpack.i.b16 %v679, %v678
      %v782 = vpack.i.b16 %v681, %v680
      %v783 = vpack.i.b16 %v683, %v682
      %v784 = vpack.i.b16 %v685, %v684
      %v785 = vpack.i.b16 %v687, %v686
      %v786 = vpack.i.b16 %v689, %v688
      %v787 = vpack.i.b16 %v691, %v690
      %v788 = vpack.i.b16 %v693, %v692
      %v789 = vpack.i.b16 %v695, %v694
      %v790 = vpack.i.b16 %v697, %v696
      %v791 = vpack.i.b16 %v699, %v698
      %v792 = vpack.i.b16 %v701, %v700
      %v793 = vpack.i.b16 %v703, %v702
      %v794 = vpack.i.b16 %v705, %v704
      %v795 = vpack.i.b16 %v707, %v706
      %v796 = vpack.i.b16 %v709, %v708
      %v797 = vpack.i.b16 %v711, %v710
      %v798 = vpack.i.b16 %v713, %v712
      %v799 = vpack.i.b16 %v715, %v714
      %v800 = vpack.i.b16 %v717, %v716
      %v801 = vpack.i.b16 %v719, %v718
      %v802 = vpack.i.b16 %v721, %v720
      %v803 = vpack.i.b16 %v723, %v722
      %v804 = vpack.i.b16 %v725, %v724
      %v805 = vpack.i.b16 %v727, %v726
      %v806 = vpack.i.b16 %v729, %v728
      %v807 = vpack.i.b16 %v731, %v730
      %v808 = vpack.i.b16 %v733, %v732
      %v809 = vpack.i.b16 %v735, %v734
      %v810 = vpack.i.b16 %v737, %v736
      %v811 = vpack.i.b16 %v739, %v738
      %v812 = vpack.i.b16 %v741, %v740
      %v813 = vpack.i.b16 %v743, %v742
      %816 = vst [vmem:[#allocation1] ss:$9 sm:$0xff] %v754
      %s818 = scalar_lea.vmem [#allocation1], 1
      %819 = vst [vmem:[%s818] ss:$9 sm:$0xff] %v755
      %s821 = scalar_lea.vmem [#allocation1], 2
      %822 = vst [vmem:[%s821] ss:$9 sm:$0xff] %v756
      %s824 = scalar_lea.vmem [#allocation1], 3
      %825 = vst [vmem:[%s824] ss:$9 sm:$0xff] %v757
      %s827 = scalar_lea.vmem [#allocation1], 4
      %828 = vst [vmem:[%s827] ss:$9 sm:$0xff] %v758
      %s830 = scalar_lea.vmem [#allocation1], 5
      %831 = vst [vmem:[%s830] ss:$9 sm:$0xff] %v759
      %s833 = scalar_lea.vmem [#allocation1], 6
      %834 = vst [vmem:[%s833] ss:$9 sm:$0xff] %v760
      %s836 = scalar_lea.vmem [#allocation1], 7
      %837 = vst [vmem:[%s836] ss:$9 sm:$0xff] %v761
      %v838 = vld [vmem:[#allocation1] sm:$0xff]
      %840 = vst [vmem:[#allocation1] ss:$9 sm:$0xff] %v762
      %842 = vst [vmem:[%s818] ss:$9 sm:$0xff] %v763
      %844 = vst [vmem:[%s821] ss:$9 sm:$0xff] %v764
      %846 = vst [vmem:[%s824] ss:$9 sm:$0xff] %v765
      %848 = vst [vmem:[%s827] ss:$9 sm:$0xff] %v766
      %850 = vst [vmem:[%s830] ss:$9 sm:$0xff] %v767
      %852 = vst [vmem:[%s833] ss:$9 sm:$0xff] %v768
      %854 = vst [vmem:[%s836] ss:$9 sm:$0xff] %v769
      %v855 = vld [vmem:[#allocation1] sm:$0xff]
      %857 = vst [vmem:[#allocation1] ss:$9 sm:$0xff] %v770
      %859 = vst [vmem:[%s818] ss:$9 sm:$0xff] %v771
      %861 = vst [vmem:[%s821] ss:$9 sm:$0xff] %v772
      %863 = vst [vmem:[%s824] ss:$9 sm:$0xff] %v773
      %865 = vst [vmem:[%s827] ss:$9 sm:$0xff] %v774
      %867 = vst [vmem:[%s830] ss:$9 sm:$0xff] %v775
      %869 = vst [vmem:[%s833] ss:$9 sm:$0xff] %v776
      %871 = vst [vmem:[%s836] ss:$9 sm:$0xff] %v777
      %v872 = vld [vmem:[#allocation1] sm:$0xff]
      %874 = vst [vmem:[#allocation1] ss:$9 sm:$0xff] %v778
      %876 = vst [vmem:[%s818] ss:$9 sm:$0xff] %v779
      %878 = vst [vmem:[%s821] ss:$9 sm:$0xff] %v780
      %880 = vst [vmem:[%s824] ss:$9 sm:$0xff] %v781
      %882 = vst [vmem:[%s827] ss:$9 sm:$0xff] %v782
      %884 = vst [vmem:[%s830] ss:$9 sm:$0xff] %v783
      %886 = vst [vmem:[%s833] ss:$9 sm:$0xff] %v784
      %888 = vst [vmem:[%s836] ss:$9 sm:$0xff] %v785
      %v889 = vld [vmem:[#allocation1] sm:$0xff]
      %891 = vst [vmem:[#allocation1] ss:$9 sm:$0xff] %v786
      %893 = vst [vmem:[%s818] ss:$9 sm:$0xff] %v787
      %895 = vst [vmem:[%s821] ss:$9 sm:$0xff] %v788
      %897 = vst [vmem:[%s824] ss:$9 sm:$0xff] %v789
      %899 = vst [vmem:[%s827] ss:$9 sm:$0xff] %v790
      %901 = vst [vmem:[%s830] ss:$9 sm:$0xff] %v791
      %903 = vst [vmem:[%s833] ss:$9 sm:$0xff] %v792
      %905 = vst [vmem:[%s836] ss:$9 sm:$0xff] %v793
      %v906 = vld [vmem:[#allocation1] sm:$0xff]
      %908 = vst [vmem:[#allocation1] ss:$9 sm:$0xff] %v794
      %910 = vst [vmem:[%s818] ss:$9 sm:$0xff] %v795
      %912 = vst [vmem:[%s821] ss:$9 sm:$0xff] %v796
      %914 = vst [vmem:[%s824] ss:$9 sm:$0xff] %v797
      %916 = vst [vmem:[%s827] ss:$9 sm:$0xff] %v798
      %918 = vst [vmem:[%s830] ss:$9 sm:$0xff] %v799
      %920 = vst [vmem:[%s833] ss:$9 sm:$0xff] %v800
      %922 = vst [vmem:[%s836] ss:$9 sm:$0xff] %v801
      %v923 = vld [vmem:[#allocation1] sm:$0xff]
      %925 = vst [vmem:[#allocation1] ss:$9 sm:$0xff] %v802
      %927 = vst [vmem:[%s818] ss:$9 sm:$0xff] %v803
      %929 = vst [vmem:[%s821] ss:$9 sm:$0xff] %v804
      %931 = vst [vmem:[%s824] ss:$9 sm:$0xff] %v805
      %933 = vst [vmem:[%s827] ss:$9 sm:$0xff] %v806
      %935 = vst [vmem:[%s830] ss:$9 sm:$0xff] %v807
      %937 = vst [vmem:[%s833] ss:$9 sm:$0xff] %v808
      %939 = vst [vmem:[%s836] ss:$9 sm:$0xff] %v809
      %v940 = vld [vmem:[#allocation1] sm:$0xff]
      %942 = vst [vmem:[#allocation1] ss:$9 sm:$0xff] %v810
      %944 = vst [vmem:[%s818] ss:$9 sm:$0xff] %v811
      %946 = vst [vmem:[%s821] ss:$9 sm:$0xff] %v812
      %948 = vst [vmem:[%s824] ss:$9 sm:$0xff] %v813
      %950 = vst [vmem:[%s827] ss:$9 sm:$0xff] %v744
      %v951 = vld [vmem:[#allocation1] sm:$0xff]
      %v957 = vunpack.c.l.b16 %v745
      %v958 = vunpack.c.l.b16 %v746
      %v959 = vunpack.c.l.b16 %v747
      %v960 = vunpack.c.l.b16 %v748
      %v961 = vunpack.c.l.b16 %v749
      %v962 = vpack.c.b16 %v958, %v957
      %v963 = vpack.c.b16 %v960, %v959
      %v964 = vpack.c.b16 %v961, %v961
      %vm967 = vcmask 293888
      %v968 = vsel %vm967, %v838, 0
      %v970 = vsel %vm967, %v855, 0
      %v972 = vsel %vm967, %v872, 0
      %v974 = vsel %vm967, %v889, 0
      %v976 = vsel %vm967, %v906, 0
      %v978 = vsel %vm967, %v923, 0
      %v980 = vsel %vm967, %v940, 0
      %v982 = vsel %vm967, %v951, 0
      %vm984 = vcmask 1041408
      %v986 = vsel %vm984, %v964, 0
      %988 = vmatpush.bf16.msra.mxu0 0
      %989 = vmatpush.bf16.msra.mxu0 0
      %990 = vmatpush.bf16.msra.mxu0 0
      %991 = vmatpush.bf16.msra.mxu0 0
      %992 = vmatpush.bf16.msra.mxu0 0
      %993 = vmatpush.bf16.msra.mxu0 %v986
      %994 = vmatpush.bf16.msra.mxu0 %v963
      %995 = vmatpush.bf16.msra.mxu0 %v962
      %996 = vmatmul.bf16.gmra.mxu0 %v968
      %v997 = vpop.f32.mrf.mxu0
      %v998 = vadd.f32 %v752, %v997
      %v999 = vpop.f32.mrf.mxu0
      %v1000 = vadd.f32 %v752, %v999
      %1001 = vmatmul.bf16.gmra.mxu0 %v970
      %v1002 = vpop.f32.mrf.mxu0
      %v1003 = vadd.f32 %v752, %v1002
      %v1004 = vpop.f32.mrf.mxu0
      %v1005 = vadd.f32 %v752, %v1004
      %1006 = vmatmul.bf16.gmra.mxu0 %v972
      %v1007 = vpop.f32.mrf.mxu0
      %v1008 = vadd.f32 %v752, %v1007
      %v1009 = vpop.f32.mrf.mxu0
      %v1010 = vadd.f32 %v752, %v1009
      %1011 = vmatmul.bf16.gmra.mxu0 %v974
      %v1012 = vpop.f32.mrf.mxu0
      %v1013 = vadd.f32 %v752, %v1012
      %v1014 = vpop.f32.mrf.mxu0
      %v1015 = vadd.f32 %v752, %v1014
      %1016 = vmatmul.bf16.gmra.mxu0 %v976
      %v1017 = vpop.f32.mrf.mxu0
      %v1018 = vadd.f32 %v752, %v1017
      %v1019 = vpop.f32.mrf.mxu0
      %v1020 = vadd.f32 %v752, %v1019
      %1021 = vmatmul.bf16.gmra.mxu0 %v978
      %v1022 = vpop.f32.mrf.mxu0
      %v1023 = vadd.f32 %v752, %v1022
      %v1024 = vpop.f32.mrf.mxu0
      %v1025 = vadd.f32 %v752, %v1024
      %1026 = vmatmul.bf16.gmra.mxu0 %v980
      %v1027 = vpop.f32.mrf.mxu0
      %v1028 = vadd.f32 %v752, %v1027
      %v1029 = vpop.f32.mrf.mxu0
      %v1030 = vadd.f32 %v752, %v1029
      %1031 = vmatmul.bf16.gmra.mxu0 %v982
      %v1032 = vpop.f32.mrf.mxu0
      %v1033 = vadd.f32 %v752, %v1032
      %v1034 = vpop.f32.mrf.mxu0
      %v1035 = vadd.f32 %v752, %v1034
      %1036 = vdwg.mxu0
      %v1037 = vmax.f32 %v998, 0.0
      %v1038 = vmax.f32 %v1000, 0.0
      %v1039 = vmax.f32 %v1003, 0.0
      %v1040 = vmax.f32 %v1005, 0.0
      %v1041 = vmax.f32 %v1008, 0.0
      %v1042 = vmax.f32 %v1010, 0.0
      %v1043 = vmax.f32 %v1013, 0.0
      %v1044 = vmax.f32 %v1015, 0.0
      %v1045 = vmax.f32 %v1018, 0.0
      %v1046 = vmax.f32 %v1020, 0.0
      %v1047 = vmax.f32 %v1023, 0.0
      %v1048 = vmax.f32 %v1025, 0.0
      %v1049 = vmax.f32 %v1028, 0.0
      %v1050 = vmax.f32 %v1030, 0.0
      %v1051 = vmax.f32 %v1033, 0.0
      %v1052 = vmax.f32 %v1035, 0.0
      %v1053 = vpack.c.bf16 %v1037, %v1037
      %v1054 = vpack.c.bf16 %v1038, %v1038
      %v1055 = vpack.c.bf16 %v1039, %v1039
      %v1056 = vpack.c.bf16 %v1040, %v1040
      %v1057 = vpack.c.bf16 %v1041, %v1041
      %v1058 = vpack.c.bf16 %v1042, %v1042
      %v1059 = vpack.c.bf16 %v1043, %v1043
      %v1060 = vpack.c.bf16 %v1044, %v1044
      %v1061 = vpack.c.bf16 %v1045, %v1045
      %v1062 = vpack.c.bf16 %v1046, %v1046
      %v1063 = vpack.c.bf16 %v1047, %v1047
      %v1064 = vpack.c.bf16 %v1048, %v1048
      %v1065 = vpack.c.bf16 %v1049, %v1049
      %v1066 = vpack.c.bf16 %v1050, %v1050
      %v1067 = vpack.c.bf16 %v1051, %v1051
      %v1068 = vpack.c.bf16 %v1052, %v1052
      %v1085 = vrot.slane %v1053, 3
      %v1086 = vrot.slane %v1054, 3
      %v1087 = vrot.slane %v1055, 3
      %v1088 = vrot.slane %v1056, 3
      %v1089 = vrot.slane %v1057, 3
      %v1090 = vrot.slane %v1058, 3
      %v1091 = vrot.slane %v1059, 3
      %v1092 = vrot.slane %v1060, 3
      %v1093 = vrot.slane %v1061, 3
      %v1094 = vrot.slane %v1062, 3
      %v1095 = vrot.slane %v1063, 3
      %v1096 = vrot.slane %v1064, 3
      %v1097 = vrot.slane %v1065, 3
      %v1098 = vrot.slane %v1066, 3
      %v1099 = vrot.slane %v1067, 3
      %v1100 = vrot.slane %v1068, 3
      %v1103 = vsel %vm400, %v1053, %v1085
      %v1105 = vsel %vm405, %v1053, %v1085
      %v1107 = vrot.slane %v1105, 1
      %v1108 = vsel %vm409, %v1053, %v1085
      %v1110 = vrot.slane %v1108, 2
      %v1111 = vsel %vm413, %v1053, %v1085
      %v1113 = vrot.slane %v1111, 3
      %v1116 = vsel %vm400, %v1054, %v1086
      %v1118 = vsel %vm405, %v1054, %v1086
      %v1120 = vrot.slane %v1118, 1
      %v1121 = vsel %vm409, %v1054, %v1086
      %v1123 = vrot.slane %v1121, 2
      %v1124 = vsel %vm413, %v1054, %v1086
      %v1126 = vrot.slane %v1124, 3
      %v1129 = vsel %vm400, %v1055, %v1087
      %v1131 = vsel %vm405, %v1055, %v1087
      %v1133 = vrot.slane %v1131, 1
      %v1134 = vsel %vm409, %v1055, %v1087
      %v1136 = vrot.slane %v1134, 2
      %v1137 = vsel %vm413, %v1055, %v1087
      %v1139 = vrot.slane %v1137, 3
      %v1142 = vsel %vm400, %v1056, %v1088
      %v1144 = vsel %vm405, %v1056, %v1088
      %v1146 = vrot.slane %v1144, 1
      %v1147 = vsel %vm409, %v1056, %v1088
      %v1149 = vrot.slane %v1147, 2
      %v1150 = vsel %vm413, %v1056, %v1088
      %v1152 = vrot.slane %v1150, 3
      %v1155 = vsel %vm400, %v1057, %v1089
      %v1157 = vsel %vm405, %v1057, %v1089
      %v1159 = vrot.slane %v1157, 1
      %v1160 = vsel %vm409, %v1057, %v1089
      %v1162 = vrot.slane %v1160, 2
      %v1163 = vsel %vm413, %v1057, %v1089
      %v1165 = vrot.slane %v1163, 3
      %v1168 = vsel %vm400, %v1058, %v1090
      %v1170 = vsel %vm405, %v1058, %v1090
      %v1172 = vrot.slane %v1170, 1
      %v1173 = vsel %vm409, %v1058, %v1090
      %v1175 = vrot.slane %v1173, 2
      %v1176 = vsel %vm413, %v1058, %v1090
      %v1178 = vrot.slane %v1176, 3
      %v1181 = vsel %vm400, %v1059, %v1091
      %v1183 = vsel %vm405, %v1059, %v1091
      %v1185 = vrot.slane %v1183, 1
      %v1186 = vsel %vm409, %v1059, %v1091
      %v1188 = vrot.slane %v1186, 2
      %v1189 = vsel %vm413, %v1059, %v1091
      %v1191 = vrot.slane %v1189, 3
      %v1194 = vsel %vm400, %v1060, %v1092
      %v1196 = vsel %vm405, %v1060, %v1092
      %v1198 = vrot.slane %v1196, 1
      %v1199 = vsel %vm409, %v1060, %v1092
      %v1201 = vrot.slane %v1199, 2
      %v1202 = vsel %vm413, %v1060, %v1092
      %v1204 = vrot.slane %v1202, 3
      %v1207 = vsel %vm400, %v1061, %v1093
      %v1209 = vsel %vm405, %v1061, %v1093
      %v1211 = vrot.slane %v1209, 1
      %v1212 = vsel %vm409, %v1061, %v1093
      %v1214 = vrot.slane %v1212, 2
      %v1215 = vsel %vm413, %v1061, %v1093
      %v1217 = vrot.slane %v1215, 3
      %v1220 = vsel %vm400, %v1062, %v1094
      %v1222 = vsel %vm405, %v1062, %v1094
      %v1224 = vrot.slane %v1222, 1
      %v1225 = vsel %vm409, %v1062, %v1094
      %v1227 = vrot.slane %v1225, 2
      %v1228 = vsel %vm413, %v1062, %v1094
      %v1230 = vrot.slane %v1228, 3
      %v1233 = vsel %vm400, %v1063, %v1095
      %v1235 = vsel %vm405, %v1063, %v1095
      %v1237 = vrot.slane %v1235, 1
      %v1238 = vsel %vm409, %v1063, %v1095
      %v1240 = vrot.slane %v1238, 2
      %v1241 = vsel %vm413, %v1063, %v1095
      %v1243 = vrot.slane %v1241, 3
      %v1246 = vsel %vm400, %v1064, %v1096
      %v1248 = vsel %vm405, %v1064, %v1096
      %v1250 = vrot.slane %v1248, 1
      %v1251 = vsel %vm409, %v1064, %v1096
      %v1253 = vrot.slane %v1251, 2
      %v1254 = vsel %vm413, %v1064, %v1096
      %v1256 = vrot.slane %v1254, 3
      %v1259 = vsel %vm400, %v1065, %v1097
      %v1261 = vsel %vm405, %v1065, %v1097
      %v1263 = vrot.slane %v1261, 1
      %v1264 = vsel %vm409, %v1065, %v1097
      %v1266 = vrot.slane %v1264, 2
      %v1267 = vsel %vm413, %v1065, %v1097
      %v1269 = vrot.slane %v1267, 3
      %v1272 = vsel %vm400, %v1066, %v1098
      %v1274 = vsel %vm405, %v1066, %v1098
      %v1276 = vrot.slane %v1274, 1
      %v1277 = vsel %vm409, %v1066, %v1098
      %v1279 = vrot.slane %v1277, 2
      %v1280 = vsel %vm413, %v1066, %v1098
      %v1282 = vrot.slane %v1280, 3
      %v1285 = vsel %vm400, %v1067, %v1099
      %v1287 = vsel %vm405, %v1067, %v1099
      %v1289 = vrot.slane %v1287, 1
      %v1290 = vsel %vm409, %v1067, %v1099
      %v1292 = vrot.slane %v1290, 2
      %v1293 = vsel %vm413, %v1067, %v1099
      %v1295 = vrot.slane %v1293, 3
      %v1298 = vsel %vm400, %v1068, %v1100
      %v1300 = vunpack.i.l.s16 %v1103
      %v1301 = vunpack.i.h.s16 %v1103
      %v1302 = vunpack.i.l.s16 %v1107
      %v1303 = vunpack.i.h.s16 %v1107
      %v1304 = vunpack.i.l.s16 %v1110
      %v1305 = vunpack.i.h.s16 %v1110
      %v1306 = vunpack.i.l.s16 %v1113
      %v1307 = vunpack.i.h.s16 %v1113
      %v1308 = vunpack.i.l.s16 %v1116
      %v1309 = vunpack.i.h.s16 %v1116
      %v1310 = vunpack.i.l.s16 %v1120
      %v1311 = vunpack.i.h.s16 %v1120
      %v1312 = vunpack.i.l.s16 %v1123
      %v1313 = vunpack.i.h.s16 %v1123
      %v1314 = vunpack.i.l.s16 %v1126
      %v1315 = vunpack.i.h.s16 %v1126
      %v1316 = vunpack.i.l.s16 %v1129
      %v1317 = vunpack.i.h.s16 %v1129
      %v1318 = vunpack.i.l.s16 %v1133
      %v1319 = vunpack.i.h.s16 %v1133
      %v1320 = vunpack.i.l.s16 %v1136
      %v1321 = vunpack.i.h.s16 %v1136
      %v1322 = vunpack.i.l.s16 %v1139
      %v1323 = vunpack.i.h.s16 %v1139
      %v1324 = vunpack.i.l.s16 %v1142
      %v1325 = vunpack.i.h.s16 %v1142
      %v1326 = vunpack.i.l.s16 %v1146
      %v1327 = vunpack.i.h.s16 %v1146
      %v1328 = vunpack.i.l.s16 %v1149
      %v1329 = vunpack.i.h.s16 %v1149
      %v1330 = vunpack.i.l.s16 %v1152
      %v1331 = vunpack.i.h.s16 %v1152
      %v1332 = vunpack.i.l.s16 %v1155
      %v1333 = vunpack.i.h.s16 %v1155
      %v1334 = vunpack.i.l.s16 %v1159
      %v1335 = vunpack.i.h.s16 %v1159
      %v1336 = vunpack.i.l.s16 %v1162
      %v1337 = vunpack.i.h.s16 %v1162
      %v1338 = vunpack.i.l.s16 %v1165
      %v1339 = vunpack.i.h.s16 %v1165
      %v1340 = vunpack.i.l.s16 %v1168
      %v1341 = vunpack.i.h.s16 %v1168
      %v1342 = vunpack.i.l.s16 %v1172
      %v1343 = vunpack.i.h.s16 %v1172
      %v1344 = vunpack.i.l.s16 %v1175
      %v1345 = vunpack.i.h.s16 %v1175
      %v1346 = vunpack.i.l.s16 %v1178
      %v1347 = vunpack.i.h.s16 %v1178
      %v1348 = vunpack.i.l.s16 %v1181
      %v1349 = vunpack.i.h.s16 %v1181
      %v1350 = vunpack.i.l.s16 %v1185
      %v1351 = vunpack.i.h.s16 %v1185
      %v1352 = vunpack.i.l.s16 %v1188
      %v1353 = vunpack.i.h.s16 %v1188
      %v1354 = vunpack.i.l.s16 %v1191
      %v1355 = vunpack.i.h.s16 %v1191
      %v1356 = vunpack.i.l.s16 %v1194
      %v1357 = vunpack.i.h.s16 %v1194
      %v1358 = vunpack.i.l.s16 %v1198
      %v1359 = vunpack.i.h.s16 %v1198
      %v1360 = vunpack.i.l.s16 %v1201
      %v1361 = vunpack.i.h.s16 %v1201
      %v1362 = vunpack.i.l.s16 %v1204
      %v1363 = vunpack.i.h.s16 %v1204
      %v1364 = vunpack.i.l.s16 %v1207
      %v1365 = vunpack.i.h.s16 %v1207
      %v1366 = vunpack.i.l.s16 %v1211
      %v1367 = vunpack.i.h.s16 %v1211
      %v1368 = vunpack.i.l.s16 %v1214
      %v1369 = vunpack.i.h.s16 %v1214
      %v1370 = vunpack.i.l.s16 %v1217
      %v1371 = vunpack.i.h.s16 %v1217
      %v1372 = vunpack.i.l.s16 %v1220
      %v1373 = vunpack.i.h.s16 %v1220
      %v1374 = vunpack.i.l.s16 %v1224
      %v1375 = vunpack.i.h.s16 %v1224
      %v1376 = vunpack.i.l.s16 %v1227
      %v1377 = vunpack.i.h.s16 %v1227
      %v1378 = vunpack.i.l.s16 %v1230
      %v1379 = vunpack.i.h.s16 %v1230
      %v1380 = vunpack.i.l.s16 %v1233
      %v1381 = vunpack.i.h.s16 %v1233
      %v1382 = vunpack.i.l.s16 %v1237
      %v1383 = vunpack.i.h.s16 %v1237
      %v1384 = vunpack.i.l.s16 %v1240
      %v1385 = vunpack.i.h.s16 %v1240
      %v1386 = vunpack.i.l.s16 %v1243
      %v1387 = vunpack.i.h.s16 %v1243
      %v1388 = vunpack.i.l.s16 %v1246
      %v1389 = vunpack.i.h.s16 %v1246
      %v1390 = vunpack.i.l.s16 %v1250
      %v1391 = vunpack.i.h.s16 %v1250
      %v1392 = vunpack.i.l.s16 %v1253
      %v1393 = vunpack.i.h.s16 %v1253
      %v1394 = vunpack.i.l.s16 %v1256
      %v1395 = vunpack.i.h.s16 %v1256
      %v1396 = vunpack.i.l.s16 %v1259
      %v1397 = vunpack.i.h.s16 %v1259
      %v1398 = vunpack.i.l.s16 %v1263
      %v1399 = vunpack.i.h.s16 %v1263
      %v1400 = vunpack.i.l.s16 %v1266
      %v1401 = vunpack.i.h.s16 %v1266
      %v1402 = vunpack.i.l.s16 %v1269
      %v1403 = vunpack.i.h.s16 %v1269
      %v1404 = vunpack.i.l.s16 %v1272
      %v1405 = vunpack.i.h.s16 %v1272
      %v1406 = vunpack.i.l.s16 %v1276
      %v1407 = vunpack.i.h.s16 %v1276
      %v1408 = vunpack.i.l.s16 %v1279
      %v1409 = vunpack.i.h.s16 %v1279
      %v1410 = vunpack.i.l.s16 %v1282
      %v1411 = vunpack.i.h.s16 %v1282
      %v1412 = vunpack.i.l.s16 %v1285
      %v1413 = vunpack.i.h.s16 %v1285
      %v1414 = vunpack.i.l.s16 %v1289
      %v1415 = vunpack.i.h.s16 %v1289
      %v1416 = vunpack.i.l.s16 %v1292
      %v1417 = vunpack.i.h.s16 %v1292
      %v1418 = vunpack.i.l.s16 %v1295
      %v1419 = vunpack.i.h.s16 %v1295
      %v1420 = vunpack.i.l.s16 %v1298
      %v1421 = vpack.i.b16 %v1301, %v1300
      %v1422 = vpack.i.b16 %v1303, %v1302
      %v1423 = vpack.i.b16 %v1305, %v1304
      %v1424 = vpack.i.b16 %v1307, %v1306
      %v1426 = vpack.i.b16 %v1312, %v1311
      %v1427 = vpack.i.b16 %v1314, %v1313
      %v1428 = vpack.i.b16 %v1316, %v1315
      %v1429 = vpack.i.b16 %v1318, %v1317
      %v1431 = vpack.i.b16 %v1323, %v1322
      %v1432 = vpack.i.b16 %v1325, %v1324
      %v1433 = vpack.i.b16 %v1327, %v1326
      %v1434 = vpack.i.b16 %v1329, %v1328
      %v1436 = vpack.i.b16 %v1334, %v1333
      %v1437 = vpack.i.b16 %v1336, %v1335
      %v1438 = vpack.i.b16 %v1338, %v1337
      %v1439 = vpack.i.b16 %v1340, %v1339
      %v1441 = vpack.i.b16 %v1345, %v1344
      %v1442 = vpack.i.b16 %v1347, %v1346
      %v1443 = vpack.i.b16 %v1349, %v1348
      %v1444 = vpack.i.b16 %v1351, %v1350
      %v1446 = vpack.i.b16 %v1356, %v1355
      %v1447 = vpack.i.b16 %v1358, %v1357
      %v1448 = vpack.i.b16 %v1360, %v1359
      %v1449 = vpack.i.b16 %v1362, %v1361
      %v1451 = vpack.i.b16 %v1367, %v1366
      %v1452 = vpack.i.b16 %v1369, %v1368
      %v1453 = vpack.i.b16 %v1371, %v1370
      %v1454 = vpack.i.b16 %v1373, %v1372
      %v1456 = vpack.i.b16 %v1378, %v1377
      %v1457 = vpack.i.b16 %v1380, %v1379
      %v1458 = vpack.i.b16 %v1382, %v1381
      %v1459 = vpack.i.b16 %v1384, %v1383
      %v1461 = vpack.i.b16 %v1389, %v1388
      %v1462 = vpack.i.b16 %v1391, %v1390
      %v1463 = vpack.i.b16 %v1393, %v1392
      %v1464 = vpack.i.b16 %v1395, %v1394
      %v1466 = vpack.i.b16 %v1400, %v1399
      %v1467 = vpack.i.b16 %v1402, %v1401
      %v1468 = vpack.i.b16 %v1404, %v1403
      %v1469 = vpack.i.b16 %v1406, %v1405
      %v1471 = vpack.i.b16 %v1411, %v1410
      %v1472 = vpack.i.b16 %v1413, %v1412
      %v1473 = vpack.i.b16 %v1415, %v1414
      %v1474 = vpack.i.b16 %v1417, %v1416
      %1477 = vst [vmem:[#allocation1] ss:$9 sm:$0xff] %v1421
      %s1479 = scalar_lea.vmem [#allocation1], 1
      %1480 = vst [vmem:[%s1479] ss:$9 sm:$0xff] %v1422
      %s1482 = scalar_lea.vmem [#allocation1], 2
      %1483 = vst [vmem:[%s1482] ss:$9 sm:$0xff] %v1423
      %s1485 = scalar_lea.vmem [#allocation1], 3
      %1486 = vst [vmem:[%s1485] ss:$9 sm:$0xff] %v1424
      %s1488 = scalar_lea.vmem [#allocation1], 4
      %1489 = vst [vmem:[%s1488] ss:$9 sm:$0xff] %v1308
      %v1490 = vld [vmem:[#allocation1] sm:$0xff]
      %1492 = vst [vmem:[#allocation1] ss:$9 sm:$0xff] %v1426
      %1494 = vst [vmem:[%s1479] ss:$9 sm:$0xff] %v1427
      %1496 = vst [vmem:[%s1482] ss:$9 sm:$0xff] %v1428
      %1498 = vst [vmem:[%s1485] ss:$9 sm:$0xff] %v1429
      %1500 = vst [vmem:[%s1488] ss:$9 sm:$0xff] %v1319
      %v1501 = vld [vmem:[#allocation1] sm:$0xff]
      %1503 = vst [vmem:[#allocation1] ss:$9 sm:$0xff] %v1431
      %1505 = vst [vmem:[%s1479] ss:$9 sm:$0xff] %v1432
      %1507 = vst [vmem:[%s1482] ss:$9 sm:$0xff] %v1433
      %1509 = vst [vmem:[%s1485] ss:$9 sm:$0xff] %v1434
      %1511 = vst [vmem:[%s1488] ss:$9 sm:$0xff] %v1330
      %v1512 = vld [vmem:[#allocation1] sm:$0xff]
      %1514 = vst [vmem:[#allocation1] ss:$9 sm:$0xff] %v1436
      %1516 = vst [vmem:[%s1479] ss:$9 sm:$0xff] %v1437
      %1518 = vst [vmem:[%s1482] ss:$9 sm:$0xff] %v1438
      %1520 = vst [vmem:[%s1485] ss:$9 sm:$0xff] %v1439
      %1522 = vst [vmem:[%s1488] ss:$9 sm:$0xff] %v1341
      %v1523 = vld [vmem:[#allocation1] sm:$0xff]
      %1525 = vst [vmem:[#allocation1] ss:$9 sm:$0xff] %v1441
      %1527 = vst [vmem:[%s1479] ss:$9 sm:$0xff] %v1442
      %1529 = vst [vmem:[%s1482] ss:$9 sm:$0xff] %v1443
      %1531 = vst [vmem:[%s1485] ss:$9 sm:$0xff] %v1444
      %1533 = vst [vmem:[%s1488] ss:$9 sm:$0xff] %v1352
      %v1534 = vld [vmem:[#allocation1] sm:$0xff]
      %1536 = vst [vmem:[#allocation1] ss:$9 sm:$0xff] %v1446
      %1538 = vst [vmem:[%s1479] ss:$9 sm:$0xff] %v1447
      %1540 = vst [vmem:[%s1482] ss:$9 sm:$0xff] %v1448
      %1542 = vst [vmem:[%s1485] ss:$9 sm:$0xff] %v1449
      %1544 = vst [vmem:[%s1488] ss:$9 sm:$0xff] %v1363
      %v1545 = vld [vmem:[#allocation1] sm:$0xff]
      %1547 = vst [vmem:[#allocation1] ss:$9 sm:$0xff] %v1451
      %1549 = vst [vmem:[%s1479] ss:$9 sm:$0xff] %v1452
      %1551 = vst [vmem:[%s1482] ss:$9 sm:$0xff] %v1453
      %1553 = vst [vmem:[%s1485] ss:$9 sm:$0xff] %v1454
      %1555 = vst [vmem:[%s1488] ss:$9 sm:$0xff] %v1374
      %v1556 = vld [vmem:[#allocation1] sm:$0xff]
      %1558 = vst [vmem:[#allocation1] ss:$9 sm:$0xff] %v1456
      %1560 = vst [vmem:[%s1479] ss:$9 sm:$0xff] %v1457
      %1562 = vst [vmem:[%s1482] ss:$9 sm:$0xff] %v1458
      %1564 = vst [vmem:[%s1485] ss:$9 sm:$0xff] %v1459
      %1566 = vst [vmem:[%s1488] ss:$9 sm:$0xff] %v1385
      %v1567 = vld [vmem:[#allocation1] sm:$0xff]
      %1569 = vst [vmem:[#allocation1] ss:$9 sm:$0xff] %v1461
      %1571 = vst [vmem:[%s1479] ss:$9 sm:$0xff] %v1462
      %1573 = vst [vmem:[%s1482] ss:$9 sm:$0xff] %v1463
      %1575 = vst [vmem:[%s1485] ss:$9 sm:$0xff] %v1464
      %1577 = vst [vmem:[%s1488] ss:$9 sm:$0xff] %v1396
      %v1578 = vld [vmem:[#allocation1] sm:$0xff]
      %1580 = vst [vmem:[#allocation1] ss:$9 sm:$0xff] %v1466
      %1582 = vst [vmem:[%s1479] ss:$9 sm:$0xff] %v1467
      %1584 = vst [vmem:[%s1482] ss:$9 sm:$0xff] %v1468
      %1586 = vst [vmem:[%s1485] ss:$9 sm:$0xff] %v1469
      %1588 = vst [vmem:[%s1488] ss:$9 sm:$0xff] %v1407
      %v1589 = vld [vmem:[#allocation1] sm:$0xff]
      %1591 = vst [vmem:[#allocation1] ss:$9 sm:$0xff] %v1471
      %1593 = vst [vmem:[%s1479] ss:$9 sm:$0xff] %v1472
      %1595 = vst [vmem:[%s1482] ss:$9 sm:$0xff] %v1473
      %1597 = vst [vmem:[%s1485] ss:$9 sm:$0xff] %v1474
      %1599 = vst [vmem:[%s1488] ss:$9 sm:$0xff] %v1418
      %v1600 = vld [vmem:[#allocation1] sm:$0xff]
      %v1601 = vpack.i.b16 %v1302, %v1301
      %v1602 = vpack.i.b16 %v1304, %v1303
      %v1603 = vpack.i.b16 %v1306, %v1305
      %v1604 = vpack.i.b16 %v1308, %v1307
      %v1606 = vpack.i.b16 %v1313, %v1312
      %v1607 = vpack.i.b16 %v1315, %v1314
      %v1608 = vpack.i.b16 %v1317, %v1316
      %v1609 = vpack.i.b16 %v1319, %v1318
      %v1611 = vpack.i.b16 %v1324, %v1323
      %v1612 = vpack.i.b16 %v1326, %v1325
      %v1613 = vpack.i.b16 %v1328, %v1327
      %v1614 = vpack.i.b16 %v1330, %v1329
      %v1616 = vpack.i.b16 %v1335, %v1334
      %v1617 = vpack.i.b16 %v1337, %v1336
      %v1618 = vpack.i.b16 %v1339, %v1338
      %v1619 = vpack.i.b16 %v1341, %v1340
      %v1621 = vpack.i.b16 %v1346, %v1345
      %v1622 = vpack.i.b16 %v1348, %v1347
      %v1623 = vpack.i.b16 %v1350, %v1349
      %v1624 = vpack.i.b16 %v1352, %v1351
      %v1626 = vpack.i.b16 %v1357, %v1356
      %v1627 = vpack.i.b16 %v1359, %v1358
      %v1628 = vpack.i.b16 %v1361, %v1360
      %v1629 = vpack.i.b16 %v1363, %v1362
      %v1631 = vpack.i.b16 %v1368, %v1367
      %v1632 = vpack.i.b16 %v1370, %v1369
      %v1633 = vpack.i.b16 %v1372, %v1371
      %v1634 = vpack.i.b16 %v1374, %v1373
      %v1636 = vpack.i.b16 %v1379, %v1378
      %v1637 = vpack.i.b16 %v1381, %v1380
      %v1638 = vpack.i.b16 %v1383, %v1382
      %v1639 = vpack.i.b16 %v1385, %v1384
      %v1641 = vpack.i.b16 %v1390, %v1389
      %v1642 = vpack.i.b16 %v1392, %v1391
      %v1643 = vpack.i.b16 %v1394, %v1393
      %v1644 = vpack.i.b16 %v1396, %v1395
      %v1646 = vpack.i.b16 %v1401, %v1400
      %v1647 = vpack.i.b16 %v1403, %v1402
      %v1648 = vpack.i.b16 %v1405, %v1404
      %v1649 = vpack.i.b16 %v1407, %v1406
      %v1651 = vpack.i.b16 %v1412, %v1411
      %v1652 = vpack.i.b16 %v1414, %v1413
      %v1653 = vpack.i.b16 %v1416, %v1415
      %v1654 = vpack.i.b16 %v1418, %v1417
      %1657 = vst [vmem:[#allocation1] ss:$9 sm:$0xff] %v1601
      %s1659 = scalar_lea.vmem [#allocation1], 1
      %1660 = vst [vmem:[%s1659] ss:$9 sm:$0xff] %v1602
      %s1662 = scalar_lea.vmem [#allocation1], 2
      %1663 = vst [vmem:[%s1662] ss:$9 sm:$0xff] %v1603
      %s1665 = scalar_lea.vmem [#allocation1], 3
      %1666 = vst [vmem:[%s1665] ss:$9 sm:$0xff] %v1604
      %s1668 = scalar_lea.vmem [#allocation1], 4
      %1669 = vst [vmem:[%s1668] ss:$9 sm:$0xff] %v1309
      %v1670 = vld [vmem:[#allocation1] sm:$0xff]
      %1673 = vst [vmem:[#allocation1] ss:$9 sm:$0xff] %v1606
      %1675 = vst [vmem:[%s1659] ss:$9 sm:$0xff] %v1607
      %1677 = vst [vmem:[%s1662] ss:$9 sm:$0xff] %v1608
      %1679 = vst [vmem:[%s1665] ss:$9 sm:$0xff] %v1609
      %1681 = vst [vmem:[%s1668] ss:$9 sm:$0xff] %v1320
      %v1682 = vld [vmem:[#allocation1] sm:$0xff]
      %1685 = vst [vmem:[#allocation1] ss:$9 sm:$0xff] %v1611
      %1687 = vst [vmem:[%s1659] ss:$9 sm:$0xff] %v1612
      %1689 = vst [vmem:[%s1662] ss:$9 sm:$0xff] %v1613
      %1691 = vst [vmem:[%s1665] ss:$9 sm:$0xff] %v1614
      %1693 = vst [vmem:[%s1668] ss:$9 sm:$0xff] %v1331
      %v1694 = vld [vmem:[#allocation1] sm:$0xff]
      %1697 = vst [vmem:[#allocation1] ss:$9 sm:$0xff] %v1616
      %1699 = vst [vmem:[%s1659] ss:$9 sm:$0xff] %v1617
      %1701 = vst [vmem:[%s1662] ss:$9 sm:$0xff] %v1618
      %1703 = vst [vmem:[%s1665] ss:$9 sm:$0xff] %v1619
      %1705 = vst [vmem:[%s1668] ss:$9 sm:$0xff] %v1342
      %v1706 = vld [vmem:[#allocation1] sm:$0xff]
      %1709 = vst [vmem:[#allocation1] ss:$9 sm:$0xff] %v1621
      %1711 = vst [vmem:[%s1659] ss:$9 sm:$0xff] %v1622
      %1713 = vst [vmem:[%s1662] ss:$9 sm:$0xff] %v1623
      %1715 = vst [vmem:[%s1665] ss:$9 sm:$0xff] %v1624
      %1717 = vst [vmem:[%s1668] ss:$9 sm:$0xff] %v1353
      %v1718 = vld [vmem:[#allocation1] sm:$0xff]
      %1721 = vst [vmem:[#allocation1] ss:$9 sm:$0xff] %v1626
      %1723 = vst [vmem:[%s1659] ss:$9 sm:$0xff] %v1627
      %1725 = vst [vmem:[%s1662] ss:$9 sm:$0xff] %v1628
      %1727 = vst [vmem:[%s1665] ss:$9 sm:$0xff] %v1629
      %1729 = vst [vmem:[%s1668] ss:$9 sm:$0xff] %v1364
      %v1730 = vld [vmem:[#allocation1] sm:$0xff]
      %1733 = vst [vmem:[#allocation1] ss:$9 sm:$0xff] %v1631
      %1735 = vst [vmem:[%s1659] ss:$9 sm:$0xff] %v1632
      %1737 = vst [vmem:[%s1662] ss:$9 sm:$0xff] %v1633
      %1739 = vst [vmem:[%s1665] ss:$9 sm:$0xff] %v1634
      %1741 = vst [vmem:[%s1668] ss:$9 sm:$0xff] %v1375
      %v1742 = vld [vmem:[#allocation1] sm:$0xff]
      %1745 = vst [vmem:[#allocation1] ss:$9 sm:$0xff] %v1636
      %1747 = vst [vmem:[%s1659] ss:$9 sm:$0xff] %v1637
      %1749 = vst [vmem:[%s1662] ss:$9 sm:$0xff] %v1638
      %1751 = vst [vmem:[%s1665] ss:$9 sm:$0xff] %v1639
      %1753 = vst [vmem:[%s1668] ss:$9 sm:$0xff] %v1386
      %v1754 = vld [vmem:[#allocation1] sm:$0xff]
      %1757 = vst [vmem:[#allocation1] ss:$9 sm:$0xff] %v1641
      %1759 = vst [vmem:[%s1659] ss:$9 sm:$0xff] %v1642
      %1761 = vst [vmem:[%s1662] ss:$9 sm:$0xff] %v1643
      %1763 = vst [vmem:[%s1665] ss:$9 sm:$0xff] %v1644
      %1765 = vst [vmem:[%s1668] ss:$9 sm:$0xff] %v1397
      %v1766 = vld [vmem:[#allocation1] sm:$0xff]
      %1769 = vst [vmem:[#allocation1] ss:$9 sm:$0xff] %v1646
      %1771 = vst [vmem:[%s1659] ss:$9 sm:$0xff] %v1647
      %1773 = vst [vmem:[%s1662] ss:$9 sm:$0xff] %v1648
      %1775 = vst [vmem:[%s1665] ss:$9 sm:$0xff] %v1649
      %1777 = vst [vmem:[%s1668] ss:$9 sm:$0xff] %v1408
      %v1778 = vld [vmem:[#allocation1] sm:$0xff]
      %1781 = vst [vmem:[#allocation1] ss:$9 sm:$0xff] %v1651
      %1783 = vst [vmem:[%s1659] ss:$9 sm:$0xff] %v1652
      %1785 = vst [vmem:[%s1662] ss:$9 sm:$0xff] %v1653
      %1787 = vst [vmem:[%s1665] ss:$9 sm:$0xff] %v1654
      %1789 = vst [vmem:[%s1668] ss:$9 sm:$0xff] %v1419
      %v1790 = vld [vmem:[#allocation1] sm:$0xff]
      %1792 = vrot.lane.b32.xlu0 %v1670, 32
      %v1793 = vpop.permute.xlu0 %1792
      %1794 = vrot.lane.b32.xlu0 %v1682, 32
      %v1795 = vpop.permute.xlu0 %1794
      %1796 = vrot.lane.b32.xlu0 %v1694, 32
      %v1797 = vpop.permute.xlu0 %1796
      %1798 = vrot.lane.b32.xlu0 %v1706, 32
      %v1799 = vpop.permute.xlu0 %1798
      %1800 = vrot.lane.b32.xlu0 %v1718, 32
      %v1801 = vpop.permute.xlu0 %1800
      %1802 = vrot.lane.b32.xlu0 %v1730, 32
      %v1803 = vpop.permute.xlu0 %1802
      %1804 = vrot.lane.b32.xlu0 %v1742, 32
      %v1805 = vpop.permute.xlu0 %1804
      %1806 = vrot.lane.b32.xlu0 %v1754, 32
      %v1807 = vpop.permute.xlu0 %1806
      %1808 = vrot.lane.b32.xlu0 %v1766, 32
      %v1809 = vpop.permute.xlu0 %1808
      %1810 = vrot.lane.b32.xlu0 %v1778, 32
      %v1811 = vpop.permute.xlu0 %1810
      %1812 = vrot.lane.b32.xlu0 %v1790, 32
      %v1813 = vpop.permute.xlu0 %1812
      %v1814 = vpack.i.b16 %v1309, %v1308
      %v1816 = vpack.i.b16 %v1320, %v1319
      %v1818 = vpack.i.b16 %v1331, %v1330
      %v1820 = vpack.i.b16 %v1342, %v1341
      %v1822 = vpack.i.b16 %v1353, %v1352
      %v1824 = vpack.i.b16 %v1364, %v1363
      %v1826 = vpack.i.b16 %v1375, %v1374
      %v1828 = vpack.i.b16 %v1386, %v1385
      %v1830 = vpack.i.b16 %v1397, %v1396
      %v1832 = vpack.i.b16 %v1408, %v1407
      %v1834 = vpack.i.b16 %v1419, %v1418
      %1836 = vst [vmem:[#allocation1] ss:$9 sm:$0xff] %v1422
      %s1837 = scalar_lea.vmem [#allocation1], 1
      %1838 = vst [vmem:[%s1837] ss:$9 sm:$0xff] %v1423
      %s1839 = scalar_lea.vmem [#allocation1], 2
      %1840 = vst [vmem:[%s1839] ss:$9 sm:$0xff] %v1424
      %s1842 = scalar_lea.vmem [#allocation1], 3
      %1843 = vst [vmem:[%s1842] ss:$9 sm:$0xff] %v1814
      %s1845 = scalar_lea.vmem [#allocation1], 4
      %1846 = vst [vmem:[%s1845] ss:$9 sm:$0xff] %v1310
      %v1847 = vld [vmem:[#allocation1] sm:$0xff]
      %1849 = vst [vmem:[#allocation1] ss:$9 sm:$0xff] %v1427
      %1850 = vst [vmem:[%s1837] ss:$9 sm:$0xff] %v1428
      %1851 = vst [vmem:[%s1839] ss:$9 sm:$0xff] %v1429
      %1853 = vst [vmem:[%s1842] ss:$9 sm:$0xff] %v1816
      %1855 = vst [vmem:[%s1845] ss:$9 sm:$0xff] %v1321
      %v1856 = vld [vmem:[#allocation1] sm:$0xff]
      %1858 = vst [vmem:[#allocation1] ss:$9 sm:$0xff] %v1432
      %1859 = vst [vmem:[%s1837] ss:$9 sm:$0xff] %v1433
      %1860 = vst [vmem:[%s1839] ss:$9 sm:$0xff] %v1434
      %1862 = vst [vmem:[%s1842] ss:$9 sm:$0xff] %v1818
      %1864 = vst [vmem:[%s1845] ss:$9 sm:$0xff] %v1332
      %v1865 = vld [vmem:[#allocation1] sm:$0xff]
      %1867 = vst [vmem:[#allocation1] ss:$9 sm:$0xff] %v1437
      %1868 = vst [vmem:[%s1837] ss:$9 sm:$0xff] %v1438
      %1869 = vst [vmem:[%s1839] ss:$9 sm:$0xff] %v1439
      %1871 = vst [vmem:[%s1842] ss:$9 sm:$0xff] %v1820
      %1873 = vst [vmem:[%s1845] ss:$9 sm:$0xff] %v1343
      %v1874 = vld [vmem:[#allocation1] sm:$0xff]
      %1876 = vst [vmem:[#allocation1] ss:$9 sm:$0xff] %v1442
      %1877 = vst [vmem:[%s1837] ss:$9 sm:$0xff] %v1443
      %1878 = vst [vmem:[%s1839] ss:$9 sm:$0xff] %v1444
      %1880 = vst [vmem:[%s1842] ss:$9 sm:$0xff] %v1822
      %1882 = vst [vmem:[%s1845] ss:$9 sm:$0xff] %v1354
      %v1883 = vld [vmem:[#allocation1] sm:$0xff]
      %1885 = vst [vmem:[#allocation1] ss:$9 sm:$0xff] %v1447
      %1886 = vst [vmem:[%s1837] ss:$9 sm:$0xff] %v1448
      %1887 = vst [vmem:[%s1839] ss:$9 sm:$0xff] %v1449
      %1889 = vst [vmem:[%s1842] ss:$9 sm:$0xff] %v1824
      %1891 = vst [vmem:[%s1845] ss:$9 sm:$0xff] %v1365
      %v1892 = vld [vmem:[#allocation1] sm:$0xff]
      %1894 = vst [vmem:[#allocation1] ss:$9 sm:$0xff] %v1452
      %1895 = vst [vmem:[%s1837] ss:$9 sm:$0xff] %v1453
      %1896 = vst [vmem:[%s1839] ss:$9 sm:$0xff] %v1454
      %1898 = vst [vmem:[%s1842] ss:$9 sm:$0xff] %v1826
      %1900 = vst [vmem:[%s1845] ss:$9 sm:$0xff] %v1376
      %v1901 = vld [vmem:[#allocation1] sm:$0xff]
      %1903 = vst [vmem:[#allocation1] ss:$9 sm:$0xff] %v1457
      %1904 = vst [vmem:[%s1837] ss:$9 sm:$0xff] %v1458
      %1905 = vst [vmem:[%s1839] ss:$9 sm:$0xff] %v1459
      %1907 = vst [vmem:[%s1842] ss:$9 sm:$0xff] %v1828
      %1909 = vst [vmem:[%s1845] ss:$9 sm:$0xff] %v1387
      %v1910 = vld [vmem:[#allocation1] sm:$0xff]
      %1912 = vst [vmem:[#allocation1] ss:$9 sm:$0xff] %v1462
      %1913 = vst [vmem:[%s1837] ss:$9 sm:$0xff] %v1463
      %1914 = vst [vmem:[%s1839] ss:$9 sm:$0xff] %v1464
      %1916 = vst [vmem:[%s1842] ss:$9 sm:$0xff] %v1830
      %1918 = vst [vmem:[%s1845] ss:$9 sm:$0xff] %v1398
      %v1919 = vld [vmem:[#allocation1] sm:$0xff]
      %1921 = vst [vmem:[#allocation1] ss:$9 sm:$0xff] %v1467
      %1922 = vst [vmem:[%s1837] ss:$9 sm:$0xff] %v1468
      %1923 = vst [vmem:[%s1839] ss:$9 sm:$0xff] %v1469
      %1925 = vst [vmem:[%s1842] ss:$9 sm:$0xff] %v1832
      %1927 = vst [vmem:[%s1845] ss:$9 sm:$0xff] %v1409
      %v1928 = vld [vmem:[#allocation1] sm:$0xff]
      %1930 = vst [vmem:[#allocation1] ss:$9 sm:$0xff] %v1472
      %1931 = vst [vmem:[%s1837] ss:$9 sm:$0xff] %v1473
      %1932 = vst [vmem:[%s1839] ss:$9 sm:$0xff] %v1474
      %1934 = vst [vmem:[%s1842] ss:$9 sm:$0xff] %v1834
      %1936 = vst [vmem:[%s1845] ss:$9 sm:$0xff] %v1420
      %v1937 = vld [vmem:[#allocation1] sm:$0xff]
      %1939 = vrot.lane.b32.xlu0 %v1847, 64
      %v1940 = vpop.permute.xlu0 %1939
      %1941 = vrot.lane.b32.xlu0 %v1856, 64
      %v1942 = vpop.permute.xlu0 %1941
      %1943 = vrot.lane.b32.xlu0 %v1865, 64
      %v1944 = vpop.permute.xlu0 %1943
      %1945 = vrot.lane.b32.xlu0 %v1874, 64
      %v1946 = vpop.permute.xlu0 %1945
      %1947 = vrot.lane.b32.xlu0 %v1883, 64
      %v1948 = vpop.permute.xlu0 %1947
      %1949 = vrot.lane.b32.xlu0 %v1892, 64
      %v1950 = vpop.permute.xlu0 %1949
      %1951 = vrot.lane.b32.xlu0 %v1901, 64
      %v1952 = vpop.permute.xlu0 %1951
      %1953 = vrot.lane.b32.xlu0 %v1910, 64
      %v1954 = vpop.permute.xlu0 %1953
      %1955 = vrot.lane.b32.xlu0 %v1919, 64
      %v1956 = vpop.permute.xlu0 %1955
      %1957 = vrot.lane.b32.xlu0 %v1928, 64
      %v1958 = vpop.permute.xlu0 %1957
      %1959 = vrot.lane.b32.xlu0 %v1937, 64
      %v1960 = vpop.permute.xlu0 %1959
      %vm1961 = vcmask 261120
      %v1963 = vsel %vm1961, %v1490, %v1793
      %v1965 = vsel %vm1961, %v1501, %v1795
      %v1967 = vsel %vm1961, %v1512, %v1797
      %v1969 = vsel %vm1961, %v1523, %v1799
      %v1971 = vsel %vm1961, %v1534, %v1801
      %v1973 = vsel %vm1961, %v1545, %v1803
      %v1975 = vsel %vm1961, %v1556, %v1805
      %v1977 = vsel %vm1961, %v1567, %v1807
      %v1979 = vsel %vm1961, %v1578, %v1809
      %v1981 = vsel %vm1961, %v1589, %v1811
      %v1983 = vsel %vm1961, %v1600, %v1813
      %vm1984 = vcmask 523264
      %v1986 = vsel %vm1984, %v1963, %v1940
      %v1988 = vsel %vm1984, %v1965, %v1942
      %v1990 = vsel %vm1984, %v1967, %v1944
      %v1992 = vsel %vm1984, %v1969, %v1946
      %v1994 = vsel %vm1984, %v1971, %v1948
      %v1996 = vsel %vm1984, %v1973, %v1950
      %v1998 = vsel %vm1984, %v1975, %v1952
      %v2000 = vsel %vm1984, %v1977, %v1954
      %v2002 = vsel %vm1984, %v1979, %v1956
      %v2004 = vsel %vm1984, %v1981, %v1958
      %v2006 = vsel %vm1984, %v1983, %v1960
      %v2018 = vrot.slane %v1986, 1
      %v2019 = vrot.slane %v1986, 2
      %v2020 = vrot.slane %v1986, 3
      %v2021 = vrot.slane %v1986, 4
      %v2022 = vrot.slane %v1988, 1
      %v2023 = vrot.slane %v1988, 2
      %v2024 = vrot.slane %v1988, 3
      %v2025 = vrot.slane %v1988, 4
      %v2026 = vrot.slane %v1990, 1
      %v2027 = vrot.slane %v1990, 2
      %v2028 = vrot.slane %v1990, 3
      %v2029 = vrot.slane %v1990, 4
      %v2030 = vrot.slane %v1992, 1
      %v2031 = vrot.slane %v1992, 2
      %v2032 = vrot.slane %v1992, 3
      %v2033 = vrot.slane %v1992, 4
      %v2034 = vrot.slane %v1994, 1
      %v2035 = vrot.slane %v1994, 2
      %v2036 = vrot.slane %v1994, 3
      %v2037 = vrot.slane %v1994, 4
      %v2038 = vrot.slane %v1996, 1
      %v2039 = vrot.slane %v1996, 2
      %v2040 = vrot.slane %v1996, 3
      %v2041 = vrot.slane %v1996, 4
      %v2042 = vrot.slane %v1998, 1
      %v2043 = vrot.slane %v1998, 2
      %v2044 = vrot.slane %v1998, 3
      %v2045 = vrot.slane %v1998, 4
      %v2046 = vrot.slane %v2000, 1
      %v2047 = vrot.slane %v2000, 2
      %v2048 = vrot.slane %v2000, 3
      %v2049 = vrot.slane %v2000, 4
      %v2050 = vrot.slane %v2002, 1
      %v2051 = vrot.slane %v2002, 2
      %v2052 = vrot.slane %v2002, 3
      %v2053 = vrot.slane %v2002, 4
      %v2054 = vrot.slane %v2004, 1
      %v2055 = vrot.slane %v2004, 2
      %v2056 = vrot.slane %v2004, 3
      %v2057 = vrot.slane %v2004, 4
      %v2058 = vrot.slane %v2006, 1
      %v2059 = vrot.slane %v2006, 2
      %v2060 = vrot.slane %v2006, 3
      %v2061 = vrot.slane %v2006, 4
      %v2062 = vunpack.i.l.s16 %v1986
      %v2063 = vunpack.i.h.s16 %v1986
      %v2064 = vunpack.i.l.s16 %v2018
      %v2065 = vunpack.i.h.s16 %v2018
      %v2066 = vunpack.i.l.s16 %v2019
      %v2067 = vunpack.i.h.s16 %v2019
      %v2068 = vunpack.i.l.s16 %v2020
      %v2069 = vunpack.i.h.s16 %v2020
      %v2070 = vunpack.i.l.s16 %v2021
      %v2071 = vunpack.i.l.s16 %v1988
      %v2072 = vunpack.i.h.s16 %v1988
      %v2073 = vunpack.i.l.s16 %v2022
      %v2074 = vunpack.i.h.s16 %v2022
      %v2075 = vunpack.i.l.s16 %v2023
      %v2076 = vunpack.i.h.s16 %v2023
      %v2077 = vunpack.i.l.s16 %v2024
      %v2078 = vunpack.i.h.s16 %v2024
      %v2079 = vunpack.i.l.s16 %v2025
      %v2080 = vunpack.i.l.s16 %v1990
      %v2081 = vunpack.i.h.s16 %v1990
      %v2082 = vunpack.i.l.s16 %v2026
      %v2083 = vunpack.i.h.s16 %v2026
      %v2084 = vunpack.i.l.s16 %v2027
      %v2085 = vunpack.i.h.s16 %v2027
      %v2086 = vunpack.i.l.s16 %v2028
      %v2087 = vunpack.i.h.s16 %v2028
      %v2088 = vunpack.i.l.s16 %v2029
      %v2089 = vunpack.i.l.s16 %v1992
      %v2090 = vunpack.i.h.s16 %v1992
      %v2091 = vunpack.i.l.s16 %v2030
      %v2092 = vunpack.i.h.s16 %v2030
      %v2093 = vunpack.i.l.s16 %v2031
      %v2094 = vunpack.i.h.s16 %v2031
      %v2095 = vunpack.i.l.s16 %v2032
      %v2096 = vunpack.i.h.s16 %v2032
      %v2097 = vunpack.i.l.s16 %v2033
      %v2098 = vunpack.i.l.s16 %v1994
      %v2099 = vunpack.i.h.s16 %v1994
      %v2100 = vunpack.i.l.s16 %v2034
      %v2101 = vunpack.i.h.s16 %v2034
      %v2102 = vunpack.i.l.s16 %v2035
      %v2103 = vunpack.i.h.s16 %v2035
      %v2104 = vunpack.i.l.s16 %v2036
      %v2105 = vunpack.i.h.s16 %v2036
      %v2106 = vunpack.i.l.s16 %v2037
      %v2107 = vunpack.i.l.s16 %v1996
      %v2108 = vunpack.i.h.s16 %v1996
      %v2109 = vunpack.i.l.s16 %v2038
      %v2110 = vunpack.i.h.s16 %v2038
      %v2111 = vunpack.i.l.s16 %v2039
      %v2112 = vunpack.i.h.s16 %v2039
      %v2113 = vunpack.i.l.s16 %v2040
      %v2114 = vunpack.i.h.s16 %v2040
      %v2115 = vunpack.i.l.s16 %v2041
      %v2116 = vunpack.i.l.s16 %v1998
      %v2117 = vunpack.i.h.s16 %v1998
      %v2118 = vunpack.i.l.s16 %v2042
      %v2119 = vunpack.i.h.s16 %v2042
      %v2120 = vunpack.i.l.s16 %v2043
      %v2121 = vunpack.i.h.s16 %v2043
      %v2122 = vunpack.i.l.s16 %v2044
      %v2123 = vunpack.i.h.s16 %v2044
      %v2124 = vunpack.i.l.s16 %v2045
      %v2125 = vunpack.i.l.s16 %v2000
      %v2126 = vunpack.i.h.s16 %v2000
      %v2127 = vunpack.i.l.s16 %v2046
      %v2128 = vunpack.i.h.s16 %v2046
      %v2129 = vunpack.i.l.s16 %v2047
      %v2130 = vunpack.i.h.s16 %v2047
      %v2131 = vunpack.i.l.s16 %v2048
      %v2132 = vunpack.i.h.s16 %v2048
      %v2133 = vunpack.i.l.s16 %v2049
      %v2134 = vunpack.i.l.s16 %v2002
      %v2135 = vunpack.i.h.s16 %v2002
      %v2136 = vunpack.i.l.s16 %v2050
      %v2137 = vunpack.i.h.s16 %v2050
      %v2138 = vunpack.i.l.s16 %v2051
      %v2139 = vunpack.i.h.s16 %v2051
      %v2140 = vunpack.i.l.s16 %v2052
      %v2141 = vunpack.i.h.s16 %v2052
      %v2142 = vunpack.i.l.s16 %v2053
      %v2143 = vunpack.i.l.s16 %v2004
      %v2144 = vunpack.i.h.s16 %v2004
      %v2145 = vunpack.i.l.s16 %v2054
      %v2146 = vunpack.i.h.s16 %v2054
      %v2147 = vunpack.i.l.s16 %v2055
      %v2148 = vunpack.i.h.s16 %v2055
      %v2149 = vunpack.i.l.s16 %v2056
      %v2150 = vunpack.i.h.s16 %v2056
      %v2151 = vunpack.i.l.s16 %v2057
      %v2152 = vunpack.i.l.s16 %v2006
      %v2153 = vunpack.i.h.s16 %v2006
      %v2154 = vunpack.i.l.s16 %v2058
      %v2155 = vunpack.i.h.s16 %v2058
      %v2156 = vunpack.i.l.s16 %v2059
      %v2157 = vunpack.i.h.s16 %v2059
      %v2158 = vunpack.i.l.s16 %v2060
      %v2159 = vunpack.i.h.s16 %v2060
      %v2160 = vunpack.i.l.s16 %v2061
      %v2161 = vld [vmem:[%s3] sm:$0xf]
      %v2162 = vld [vmem:[%s3 + $0x4] sm:$0xf]
      %v2163 = vld [vmem:[%s3 + $0x8] sm:$0xf]
      %v2164 = vld [vmem:[%s3 + $0xc] sm:$0xf]
      %v2165 = vld [vmem:[%s3 + $0x10] sm:$0xf]
      %v2166 = vld [vmem:[%s3 + $0x14] sm:$0xf]
      %v2167 = vld [vmem:[%s3 + $0x18] sm:$0xf]
      %v2168 = vld [vmem:[%s3 + $0x1c] sm:$0xf]
      %v2169 = vld [vmem:[%s3 + $0x20] sm:$0xf]
      %v2170 = vld [vmem:[%s3 + $0x24] sm:$0xf]
      %v2171 = vld [vmem:[%s3 + $0x28] sm:$0xf]
      %v2172 = vld [vmem:[%s3 + $0x2c] sm:$0xf]
      %v2173 = vpack.i.b16 %v2063, %v2062
      %v2174 = vpack.i.b16 %v2065, %v2064
      %v2175 = vpack.i.b16 %v2067, %v2066
      %v2176 = vpack.i.b16 %v2069, %v2068
      %v2177 = vpack.i.b16 %v2071, %v2070
      %v2178 = vpack.i.b16 %v2073, %v2072
      %v2179 = vpack.i.b16 %v2075, %v2074
      %v2180 = vpack.i.b16 %v2077, %v2076
      %v2181 = vpack.i.b16 %v2079, %v2078
      %v2182 = vpack.i.b16 %v2081, %v2080
      %v2183 = vpack.i.b16 %v2083, %v2082
      %v2184 = vpack.i.b16 %v2085, %v2084
      %v2185 = vpack.i.b16 %v2087, %v2086
      %v2186 = vpack.i.b16 %v2089, %v2088
      %v2187 = vpack.i.b16 %v2091, %v2090
      %v2188 = vpack.i.b16 %v2093, %v2092
      %v2189 = vpack.i.b16 %v2095, %v2094
      %v2190 = vpack.i.b16 %v2097, %v2096
      %v2191 = vpack.i.b16 %v2099, %v2098
      %v2192 = vpack.i.b16 %v2101, %v2100
      %v2193 = vpack.i.b16 %v2103, %v2102
      %v2194 = vpack.i.b16 %v2105, %v2104
      %v2195 = vpack.i.b16 %v2107, %v2106
      %v2196 = vpack.i.b16 %v2109, %v2108
      %v2197 = vpack.i.b16 %v2111, %v2110
      %v2198 = vpack.i.b16 %v2113, %v2112
      %v2199 = vpack.i.b16 %v2115, %v2114
      %v2200 = vpack.i.b16 %v2117, %v2116
      %v2201 = vpack.i.b16 %v2119, %v2118
      %v2202 = vpack.i.b16 %v2121, %v2120
      %v2203 = vpack.i.b16 %v2123, %v2122
      %v2204 = vpack.i.b16 %v2125, %v2124
      %v2205 = vpack.i.b16 %v2127, %v2126
      %v2206 = vpack.i.b16 %v2129, %v2128
      %v2207 = vpack.i.b16 %v2131, %v2130
      %v2208 = vpack.i.b16 %v2133, %v2132
      %v2209 = vpack.i.b16 %v2135, %v2134
      %v2210 = vpack.i.b16 %v2137, %v2136
      %v2211 = vpack.i.b16 %v2139, %v2138
      %v2212 = vpack.i.b16 %v2141, %v2140
      %v2213 = vpack.i.b16 %v2143, %v2142
      %v2214 = vpack.i.b16 %v2145, %v2144
      %v2215 = vpack.i.b16 %v2147, %v2146
      %v2216 = vpack.i.b16 %v2149, %v2148
      %v2217 = vpack.i.b16 %v2151, %v2150
      %v2218 = vpack.i.b16 %v2153, %v2152
      %v2219 = vpack.i.b16 %v2155, %v2154
      %v2220 = vpack.i.b16 %v2157, %v2156
      %v2221 = vpack.i.b16 %v2159, %v2158
      %2224 = vst [vmem:[#allocation1] ss:$9 sm:$0xff] %v2173
      %s2226 = scalar_lea.vmem [#allocation1], 1
      %2227 = vst [vmem:[%s2226] ss:$9 sm:$0xff] %v2174
      %s2229 = scalar_lea.vmem [#allocation1], 2
      %2230 = vst [vmem:[%s2229] ss:$9 sm:$0xff] %v2175
      %s2232 = scalar_lea.vmem [#allocation1], 3
      %2233 = vst [vmem:[%s2232] ss:$9 sm:$0xff] %v2176
      %s2235 = scalar_lea.vmem [#allocation1], 4
      %2236 = vst [vmem:[%s2235] ss:$9 sm:$0xff] %v2177
      %s2238 = scalar_lea.vmem [#allocation1], 5
      %2239 = vst [vmem:[%s2238] ss:$9 sm:$0xff] %v2178
      %s2241 = scalar_lea.vmem [#allocation1], 6
      %2242 = vst [vmem:[%s2241] ss:$9 sm:$0xff] %v2179
      %s2244 = scalar_lea.vmem [#allocation1], 7
      %2245 = vst [vmem:[%s2244] ss:$9 sm:$0xff] %v2180
      %v2246 = vld [vmem:[#allocation1] sm:$0xff]
      %2248 = vst [vmem:[#allocation1] ss:$9 sm:$0xff] %v2181
      %2250 = vst [vmem:[%s2226] ss:$9 sm:$0xff] %v2182
      %2252 = vst [vmem:[%s2229] ss:$9 sm:$0xff] %v2183
      %2254 = vst [vmem:[%s2232] ss:$9 sm:$0xff] %v2184
      %2256 = vst [vmem:[%s2235] ss:$9 sm:$0xff] %v2185
      %2258 = vst [vmem:[%s2238] ss:$9 sm:$0xff] %v2186
      %2260 = vst [vmem:[%s2241] ss:$9 sm:$0xff] %v2187
      %2262 = vst [vmem:[%s2244] ss:$9 sm:$0xff] %v2188
      %v2263 = vld [vmem:[#allocation1] sm:$0xff]
      %2265 = vst [vmem:[#allocation1] ss:$9 sm:$0xff] %v2189
      %2267 = vst [vmem:[%s2226] ss:$9 sm:$0xff] %v2190
      %2269 = vst [vmem:[%s2229] ss:$9 sm:$0xff] %v2191
      %2271 = vst [vmem:[%s2232] ss:$9 sm:$0xff] %v2192
      %2273 = vst [vmem:[%s2235] ss:$9 sm:$0xff] %v2193
      %2275 = vst [vmem:[%s2238] ss:$9 sm:$0xff] %v2194
      %2277 = vst [vmem:[%s2241] ss:$9 sm:$0xff] %v2195
      %2279 = vst [vmem:[%s2244] ss:$9 sm:$0xff] %v2196
      %v2280 = vld [vmem:[#allocation1] sm:$0xff]
      %2282 = vst [vmem:[#allocation1] ss:$9 sm:$0xff] %v2197
      %2284 = vst [vmem:[%s2226] ss:$9 sm:$0xff] %v2198
      %2286 = vst [vmem:[%s2229] ss:$9 sm:$0xff] %v2199
      %2288 = vst [vmem:[%s2232] ss:$9 sm:$0xff] %v2200
      %2290 = vst [vmem:[%s2235] ss:$9 sm:$0xff] %v2201
      %2292 = vst [vmem:[%s2238] ss:$9 sm:$0xff] %v2202
      %2294 = vst [vmem:[%s2241] ss:$9 sm:$0xff] %v2203
      %2296 = vst [vmem:[%s2244] ss:$9 sm:$0xff] %v2204
      %v2297 = vld [vmem:[#allocation1] sm:$0xff]
      %2299 = vst [vmem:[#allocation1] ss:$9 sm:$0xff] %v2205
      %2301 = vst [vmem:[%s2226] ss:$9 sm:$0xff] %v2206
      %2303 = vst [vmem:[%s2229] ss:$9 sm:$0xff] %v2207
      %2305 = vst [vmem:[%s2232] ss:$9 sm:$0xff] %v2208
      %2307 = vst [vmem:[%s2235] ss:$9 sm:$0xff] %v2209
      %2309 = vst [vmem:[%s2238] ss:$9 sm:$0xff] %v2210
      %2311 = vst [vmem:[%s2241] ss:$9 sm:$0xff] %v2211
      %2313 = vst [vmem:[%s2244] ss:$9 sm:$0xff] %v2212
      %v2314 = vld [vmem:[#allocation1] sm:$0xff]
      %2316 = vst [vmem:[#allocation1] ss:$9 sm:$0xff] %v2213
      %2318 = vst [vmem:[%s2226] ss:$9 sm:$0xff] %v2214
      %2320 = vst [vmem:[%s2229] ss:$9 sm:$0xff] %v2215
      %2322 = vst [vmem:[%s2232] ss:$9 sm:$0xff] %v2216
      %2324 = vst [vmem:[%s2235] ss:$9 sm:$0xff] %v2217
      %2326 = vst [vmem:[%s2238] ss:$9 sm:$0xff] %v2218
      %2328 = vst [vmem:[%s2241] ss:$9 sm:$0xff] %v2219
      %2330 = vst [vmem:[%s2244] ss:$9 sm:$0xff] %v2220
      %v2331 = vld [vmem:[#allocation1] sm:$0xff]
      %2333 = vst [vmem:[#allocation1] ss:$9 sm:$0xff] %v2221
      %2335 = vst [vmem:[%s2226] ss:$9 sm:$0xff] %v2160
      %v2336 = vld [vmem:[#allocation1] sm:$0xff]
      %v2349 = vunpack.c.l.b16 %v2161
      %v2350 = vunpack.c.l.b16 %v2162
      %v2351 = vunpack.c.l.b16 %v2163
      %v2352 = vunpack.c.l.b16 %v2164
      %v2353 = vunpack.c.l.b16 %v2165
      %v2354 = vunpack.c.l.b16 %v2166
      %v2355 = vunpack.c.l.b16 %v2167
      %v2356 = vunpack.c.l.b16 %v2168
      %v2357 = vunpack.c.l.b16 %v2169
      %v2358 = vunpack.c.l.b16 %v2170
      %v2359 = vunpack.c.l.b16 %v2171
      %v2360 = vunpack.c.l.b16 %v2172
      %v2361 = vpack.c.b16 %v2350, %v2349
      %v2362 = vpack.c.b16 %v2352, %v2351
      %v2363 = vpack.c.b16 %v2354, %v2353
      %v2364 = vpack.c.b16 %v2356, %v2355
      %v2365 = vpack.c.b16 %v2358, %v2357
      %v2366 = vpack.c.b16 %v2360, %v2359
      %vm2373 = vcmask 785408
      %v2374 = vsel %vm2373, %v2246, 0
      %v2376 = vsel %vm2373, %v2263, 0
      %v2378 = vsel %vm2373, %v2280, 0
      %v2380 = vsel %vm2373, %v2297, 0
      %v2382 = vsel %vm2373, %v2314, 0
      %v2384 = vsel %vm2373, %v2331, 0
      %v2386 = vsel %vm2373, %v2336, 0
      %2388 = vmatpush.bf16.msra.mxu0 0
      %2389 = vmatpush.bf16.msra.mxu0 0
      %2390 = vmatpush.bf16.msra.mxu0 %v2366
      %2391 = vmatpush.bf16.msra.mxu0 %v2365
      %2392 = vmatpush.bf16.msra.mxu0 %v2364
      %2393 = vmatpush.bf16.msra.mxu0 %v2363
      %2394 = vmatpush.bf16.msra.mxu0 %v2362
      %2395 = vmatpush.bf16.msra.mxu0 %v2361
      %2396 = vmatmul.bf16.gmra.mxu0 %v2374
      %v2397 = vpop.f32.mrf.mxu0
      %v2398 = vadd.f32 0.0, %v2397
      %v2399 = vpop.f32.mrf.mxu0
      %v2400 = vadd.f32 0.0, %v2399
      %2401 = vmatmul.bf16.gmra.mxu0 %v2376
      %v2402 = vpop.f32.mrf.mxu0
      %v2403 = vadd.f32 0.0, %v2402
      %v2404 = vpop.f32.mrf.mxu0
      %v2405 = vadd.f32 0.0, %v2404
      %2406 = vmatmul.bf16.gmra.mxu0 %v2378
      %v2407 = vpop.f32.mrf.mxu0
      %v2408 = vadd.f32 0.0, %v2407
      %v2409 = vpop.f32.mrf.mxu0
      %v2410 = vadd.f32 0.0, %v2409
      %2411 = vmatmul.bf16.gmra.mxu0 %v2380
      %v2412 = vpop.f32.mrf.mxu0
      %v2413 = vadd.f32 0.0, %v2412
      %v2414 = vpop.f32.mrf.mxu0
      %v2415 = vadd.f32 0.0, %v2414
      %2416 = vmatmul.bf16.gmra.mxu0 %v2382
      %v2417 = vpop.f32.mrf.mxu0
      %v2418 = vadd.f32 0.0, %v2417
      %v2419 = vpop.f32.mrf.mxu0
      %v2420 = vadd.f32 0.0, %v2419
      %2421 = vmatmul.bf16.gmra.mxu0 %v2384
      %v2422 = vpop.f32.mrf.mxu0
      %v2423 = vadd.f32 0.0, %v2422
      %v2424 = vpop.f32.mrf.mxu0
      %v2425 = vadd.f32 0.0, %v2424
      %2426 = vmatmul.bf16.gmra.mxu0 %v2386
      %v2427 = vpop.f32.mrf.mxu0
      %v2428 = vadd.f32 0.0, %v2427
      %v2429 = vpop.f32.mrf.mxu0
      %2430 = vdwg.mxu0
      %v2444 = vrot.slane %v2398, 1
      %v2445 = vrot.slane %v2398, 2
      %v2446 = vrot.slane %v2398, 3
      %v2447 = vrot.slane %v2398, 4
      %v2448 = vrot.slane %v2398, 5
      %v2449 = vrot.slane %v2398, 6
      %v2450 = vrot.slane %v2398, 7
      %v2451 = vrot.slane %v2400, 1
      %v2452 = vrot.slane %v2400, 2
      %v2453 = vrot.slane %v2400, 3
      %v2454 = vrot.slane %v2400, 4
      %v2455 = vrot.slane %v2400, 5
      %v2456 = vrot.slane %v2400, 6
      %v2457 = vrot.slane %v2400, 7
      %v2458 = vrot.slane %v2403, 1
      %v2459 = vrot.slane %v2403, 2
      %v2460 = vrot.slane %v2403, 3
      %v2461 = vrot.slane %v2403, 4
      %v2462 = vrot.slane %v2403, 5
      %v2463 = vrot.slane %v2403, 6
      %v2464 = vrot.slane %v2403, 7
      %v2465 = vrot.slane %v2405, 1
      %v2466 = vrot.slane %v2405, 2
      %v2467 = vrot.slane %v2405, 3
      %v2468 = vrot.slane %v2405, 4
      %v2469 = vrot.slane %v2405, 5
      %v2470 = vrot.slane %v2405, 6
      %v2471 = vrot.slane %v2405, 7
      %v2472 = vrot.slane %v2408, 1
      %v2473 = vrot.slane %v2408, 2
      %v2474 = vrot.slane %v2408, 3
      %v2475 = vrot.slane %v2408, 4
      %v2476 = vrot.slane %v2408, 5
      %v2477 = vrot.slane %v2408, 6
      %v2478 = vrot.slane %v2408, 7
      %v2479 = vrot.slane %v2410, 1
      %v2480 = vrot.slane %v2410, 2
      %v2481 = vrot.slane %v2410, 3
      %v2482 = vrot.slane %v2410, 4
      %v2483 = vrot.slane %v2410, 5
      %v2484 = vrot.slane %v2410, 6
      %v2485 = vrot.slane %v2410, 7
      %v2486 = vrot.slane %v2413, 1
      %v2487 = vrot.slane %v2413, 2
      %v2488 = vrot.slane %v2413, 3
      %v2489 = vrot.slane %v2413, 4
      %v2490 = vrot.slane %v2413, 5
      %v2491 = vrot.slane %v2413, 6
      %v2492 = vrot.slane %v2413, 7
      %v2493 = vrot.slane %v2415, 1
      %v2494 = vrot.slane %v2415, 2
      %v2495 = vrot.slane %v2415, 3
      %v2496 = vrot.slane %v2415, 4
      %v2497 = vrot.slane %v2415, 5
      %v2498 = vrot.slane %v2415, 6
      %v2499 = vrot.slane %v2415, 7
      %v2500 = vrot.slane %v2418, 1
      %v2501 = vrot.slane %v2418, 2
      %v2502 = vrot.slane %v2418, 3
      %v2503 = vrot.slane %v2418, 4
      %v2504 = vrot.slane %v2418, 5
      %v2505 = vrot.slane %v2418, 6
      %v2506 = vrot.slane %v2418, 7
      %v2507 = vrot.slane %v2420, 1
      %v2508 = vrot.slane %v2420, 2
      %v2509 = vrot.slane %v2420, 3
      %v2510 = vrot.slane %v2420, 4
      %v2511 = vrot.slane %v2420, 5
      %v2512 = vrot.slane %v2420, 6
      %v2513 = vrot.slane %v2420, 7
      %v2514 = vrot.slane %v2423, 1
      %v2515 = vrot.slane %v2423, 2
      %v2516 = vrot.slane %v2423, 3
      %v2517 = vrot.slane %v2423, 4
      %v2518 = vrot.slane %v2423, 5
      %v2519 = vrot.slane %v2423, 6
      %v2520 = vrot.slane %v2423, 7
      %v2521 = vrot.slane %v2425, 1
      %v2522 = vrot.slane %v2425, 2
      %v2523 = vrot.slane %v2425, 3
      %v2524 = vrot.slane %v2425, 4
      %v2525 = vrot.slane %v2425, 5
      %v2526 = vrot.slane %v2425, 6
      %v2527 = vrot.slane %v2425, 7
      %v2528 = vrot.slane %v2428, 1
      %v2529 = vrot.slane %v2428, 2
      %2600 = vrot.lane.b32.xlu0 %v2451, 96
      %v2601 = vpop.permute.xlu0 %2600
      %2602 = vrot.lane.b32.xlu0 %v2452, 96
      %v2603 = vpop.permute.xlu0 %2602
      %2604 = vrot.lane.b32.xlu0 %v2453, 96
      %v2605 = vpop.permute.xlu0 %2604
      %2606 = vrot.lane.b32.xlu0 %v2454, 96
      %v2607 = vpop.permute.xlu0 %2606
      %2608 = vrot.lane.b32.xlu0 %v2455, 96
      %v2609 = vpop.permute.xlu0 %2608
      %2610 = vrot.lane.b32.xlu0 %v2456, 96
      %v2611 = vpop.permute.xlu0 %2610
      %2612 = vrot.lane.b32.xlu0 %v2457, 96
      %v2613 = vpop.permute.xlu0 %2612
      %2614 = vrot.lane.b32.xlu0 %v2403, 96
      %v2615 = vpop.permute.xlu0 %2614
      %2616 = vrot.lane.b32.xlu0 %v2458, 96
      %v2617 = vpop.permute.xlu0 %2616
      %2618 = vrot.lane.b32.xlu0 %v2459, 96
      %v2619 = vpop.permute.xlu0 %2618
      %2620 = vrot.lane.b32.xlu0 %v2460, 96
      %v2621 = vpop.permute.xlu0 %2620
      %2622 = vrot.lane.b32.xlu0 %v2461, 96
      %v2623 = vpop.permute.xlu0 %2622
      %2624 = vrot.lane.b32.xlu0 %v2462, 96
      %v2625 = vpop.permute.xlu0 %2624
      %2626 = vrot.lane.b32.xlu0 %v2463, 96
      %v2627 = vpop.permute.xlu0 %2626
      %2628 = vrot.lane.b32.xlu0 %v2464, 96
      %v2629 = vpop.permute.xlu0 %2628
      %2630 = vrot.lane.b32.xlu0 %v2405, 96
      %v2631 = vpop.permute.xlu0 %2630
      %2632 = vrot.lane.b32.xlu0 %v2465, 96
      %v2633 = vpop.permute.xlu0 %2632
      %2634 = vrot.lane.b32.xlu0 %v2466, 96
      %v2635 = vpop.permute.xlu0 %2634
      %2636 = vrot.lane.b32.xlu0 %v2467, 96
      %v2637 = vpop.permute.xlu0 %2636
      %2638 = vrot.lane.b32.xlu0 %v2468, 96
      %v2639 = vpop.permute.xlu0 %2638
      %2640 = vrot.lane.b32.xlu0 %v2469, 96
      %v2641 = vpop.permute.xlu0 %2640
      %2642 = vrot.lane.b32.xlu0 %v2470, 96
      %v2643 = vpop.permute.xlu0 %2642
      %2644 = vrot.lane.b32.xlu0 %v2471, 96
      %v2645 = vpop.permute.xlu0 %2644
      %2646 = vrot.lane.b32.xlu0 %v2408, 96
      %v2647 = vpop.permute.xlu0 %2646
      %2648 = vrot.lane.b32.xlu0 %v2472, 96
      %v2649 = vpop.permute.xlu0 %2648
      %2650 = vrot.lane.b32.xlu0 %v2473, 96
      %v2651 = vpop.permute.xlu0 %2650
      %2652 = vrot.lane.b32.xlu0 %v2474, 96
      %v2653 = vpop.permute.xlu0 %2652
      %2654 = vrot.lane.b32.xlu0 %v2475, 96
      %v2655 = vpop.permute.xlu0 %2654
      %2656 = vrot.lane.b32.xlu0 %v2476, 96
      %v2657 = vpop.permute.xlu0 %2656
      %2658 = vrot.lane.b32.xlu0 %v2477, 96
      %v2659 = vpop.permute.xlu0 %2658
      %2660 = vrot.lane.b32.xlu0 %v2478, 96
      %v2661 = vpop.permute.xlu0 %2660
      %2662 = vrot.lane.b32.xlu0 %v2410, 96
      %v2663 = vpop.permute.xlu0 %2662
      %2664 = vrot.lane.b32.xlu0 %v2479, 96
      %v2665 = vpop.permute.xlu0 %2664
      %2666 = vrot.lane.b32.xlu0 %v2480, 96
      %v2667 = vpop.permute.xlu0 %2666
      %2668 = vrot.lane.b32.xlu0 %v2481, 96
      %v2669 = vpop.permute.xlu0 %2668
      %2670 = vrot.lane.b32.xlu0 %v2482, 96
      %v2671 = vpop.permute.xlu0 %2670
      %2672 = vrot.lane.b32.xlu0 %v2483, 96
      %v2673 = vpop.permute.xlu0 %2672
      %2674 = vrot.lane.b32.xlu0 %v2484, 96
      %v2675 = vpop.permute.xlu0 %2674
      %2676 = vrot.lane.b32.xlu0 %v2485, 96
      %v2677 = vpop.permute.xlu0 %2676
      %2678 = vrot.lane.b32.xlu0 %v2413, 96
      %v2679 = vpop.permute.xlu0 %2678
      %2680 = vrot.lane.b32.xlu0 %v2486, 96
      %v2681 = vpop.permute.xlu0 %2680
      %2682 = vrot.lane.b32.xlu0 %v2487, 96
      %v2683 = vpop.permute.xlu0 %2682
      %2684 = vrot.lane.b32.xlu0 %v2488, 96
      %v2685 = vpop.permute.xlu0 %2684
      %2686 = vrot.lane.b32.xlu0 %v2489, 96
      %v2687 = vpop.permute.xlu0 %2686
      %2688 = vrot.lane.b32.xlu0 %v2490, 96
      %v2689 = vpop.permute.xlu0 %2688
      %2690 = vrot.lane.b32.xlu0 %v2491, 96
      %v2691 = vpop.permute.xlu0 %2690
      %2692 = vrot.lane.b32.xlu0 %v2492, 96
      %v2693 = vpop.permute.xlu0 %2692
      %2694 = vrot.lane.b32.xlu0 %v2415, 96
      %v2695 = vpop.permute.xlu0 %2694
      %2696 = vrot.lane.b32.xlu0 %v2493, 96
      %v2697 = vpop.permute.xlu0 %2696
      %2698 = vrot.lane.b32.xlu0 %v2494, 96
      %v2699 = vpop.permute.xlu0 %2698
      %2700 = vrot.lane.b32.xlu0 %v2495, 96
      %v2701 = vpop.permute.xlu0 %2700
      %2702 = vrot.lane.b32.xlu0 %v2496, 96
      %v2703 = vpop.permute.xlu0 %2702
      %2704 = vrot.lane.b32.xlu0 %v2497, 96
      %v2705 = vpop.permute.xlu0 %2704
      %2706 = vrot.lane.b32.xlu0 %v2498, 96
      %v2707 = vpop.permute.xlu0 %2706
      %2708 = vrot.lane.b32.xlu0 %v2499, 96
      %v2709 = vpop.permute.xlu0 %2708
      %2710 = vrot.lane.b32.xlu0 %v2418, 96
      %v2711 = vpop.permute.xlu0 %2710
      %2712 = vrot.lane.b32.xlu0 %v2500, 96
      %v2713 = vpop.permute.xlu0 %2712
      %2714 = vrot.lane.b32.xlu0 %v2501, 96
      %v2715 = vpop.permute.xlu0 %2714
      %2716 = vrot.lane.b32.xlu0 %v2502, 96
      %v2717 = vpop.permute.xlu0 %2716
      %2718 = vrot.lane.b32.xlu0 %v2503, 96
      %v2719 = vpop.permute.xlu0 %2718
      %2720 = vrot.lane.b32.xlu0 %v2504, 96
      %v2721 = vpop.permute.xlu0 %2720
      %2722 = vrot.lane.b32.xlu0 %v2505, 96
      %v2723 = vpop.permute.xlu0 %2722
      %2724 = vrot.lane.b32.xlu0 %v2506, 96
      %v2725 = vpop.permute.xlu0 %2724
      %2726 = vrot.lane.b32.xlu0 %v2420, 96
      %v2727 = vpop.permute.xlu0 %2726
      %2728 = vrot.lane.b32.xlu0 %v2507, 96
      %v2729 = vpop.permute.xlu0 %2728
      %2730 = vrot.lane.b32.xlu0 %v2508, 96
      %v2731 = vpop.permute.xlu0 %2730
      %2732 = vrot.lane.b32.xlu0 %v2509, 96
      %v2733 = vpop.permute.xlu0 %2732
      %2734 = vrot.lane.b32.xlu0 %v2510, 96
      %v2735 = vpop.permute.xlu0 %2734
      %2736 = vrot.lane.b32.xlu0 %v2511, 96
      %v2737 = vpop.permute.xlu0 %2736
      %2738 = vrot.lane.b32.xlu0 %v2512, 96
      %v2739 = vpop.permute.xlu0 %2738
      %2740 = vrot.lane.b32.xlu0 %v2513, 96
      %v2741 = vpop.permute.xlu0 %2740
      %2742 = vrot.lane.b32.xlu0 %v2423, 96
      %v2743 = vpop.permute.xlu0 %2742
      %2744 = vrot.lane.b32.xlu0 %v2514, 96
      %v2745 = vpop.permute.xlu0 %2744
      %2746 = vrot.lane.b32.xlu0 %v2515, 96
      %v2747 = vpop.permute.xlu0 %2746
      %2748 = vrot.lane.b32.xlu0 %v2516, 96
      %v2749 = vpop.permute.xlu0 %2748
      %2750 = vrot.lane.b32.xlu0 %v2517, 96
      %v2751 = vpop.permute.xlu0 %2750
      %2752 = vrot.lane.b32.xlu0 %v2518, 96
      %v2753 = vpop.permute.xlu0 %2752
      %2754 = vrot.lane.b32.xlu0 %v2519, 96
      %v2755 = vpop.permute.xlu0 %2754
      %2756 = vrot.lane.b32.xlu0 %v2520, 96
      %v2757 = vpop.permute.xlu0 %2756
      %2758 = vrot.lane.b32.xlu0 %v2425, 96
      %v2759 = vpop.permute.xlu0 %2758
      %2760 = vrot.lane.b32.xlu0 %v2521, 96
      %v2761 = vpop.permute.xlu0 %2760
      %v2843 = vadd.f32 %v2398, %v2601
      %v2844 = vadd.f32 %v2444, %v2603
      %v2845 = vadd.f32 %v2445, %v2605
      %v2846 = vadd.f32 %v2446, %v2607
      %v2847 = vadd.f32 %v2447, %v2609
      %v2848 = vadd.f32 %v2448, %v2611
      %v2849 = vadd.f32 %v2449, %v2613
      %v2850 = vadd.f32 %v2450, %v2615
      %v2851 = vadd.f32 %v2400, %v2617
      %v2852 = vadd.f32 %v2451, %v2619
      %v2853 = vadd.f32 %v2452, %v2621
      %v2854 = vadd.f32 %v2453, %v2623
      %v2855 = vadd.f32 %v2454, %v2625
      %v2856 = vadd.f32 %v2455, %v2627
      %v2857 = vadd.f32 %v2456, %v2629
      %v2858 = vadd.f32 %v2457, %v2631
      %v2859 = vadd.f32 %v2403, %v2633
      %v2860 = vadd.f32 %v2458, %v2635
      %v2861 = vadd.f32 %v2459, %v2637
      %v2862 = vadd.f32 %v2460, %v2639
      %v2863 = vadd.f32 %v2461, %v2641
      %v2864 = vadd.f32 %v2462, %v2643
      %v2865 = vadd.f32 %v2463, %v2645
      %v2866 = vadd.f32 %v2464, %v2647
      %v2867 = vadd.f32 %v2405, %v2649
      %v2868 = vadd.f32 %v2465, %v2651
      %v2869 = vadd.f32 %v2466, %v2653
      %v2870 = vadd.f32 %v2467, %v2655
      %v2871 = vadd.f32 %v2468, %v2657
      %v2872 = vadd.f32 %v2469, %v2659
      %v2873 = vadd.f32 %v2470, %v2661
      %v2874 = vadd.f32 %v2471, %v2663
      %v2875 = vadd.f32 %v2408, %v2665
      %v2876 = vadd.f32 %v2472, %v2667
      %v2877 = vadd.f32 %v2473, %v2669
      %v2878 = vadd.f32 %v2474, %v2671
      %v2879 = vadd.f32 %v2475, %v2673
      %v2880 = vadd.f32 %v2476, %v2675
      %v2881 = vadd.f32 %v2477, %v2677
      %v2882 = vadd.f32 %v2478, %v2679
      %v2883 = vadd.f32 %v2410, %v2681
      %v2884 = vadd.f32 %v2479, %v2683
      %v2885 = vadd.f32 %v2480, %v2685
      %v2886 = vadd.f32 %v2481, %v2687
      %v2887 = vadd.f32 %v2482, %v2689
      %v2888 = vadd.f32 %v2483, %v2691
      %v2889 = vadd.f32 %v2484, %v2693
      %v2890 = vadd.f32 %v2485, %v2695
      %v2891 = vadd.f32 %v2413, %v2697
      %v2892 = vadd.f32 %v2486, %v2699
      %v2893 = vadd.f32 %v2487, %v2701
      %v2894 = vadd.f32 %v2488, %v2703
      %v2895 = vadd.f32 %v2489, %v2705
      %v2896 = vadd.f32 %v2490, %v2707
      %v2897 = vadd.f32 %v2491, %v2709
      %v2898 = vadd.f32 %v2492, %v2711
      %v2899 = vadd.f32 %v2415, %v2713
      %v2900 = vadd.f32 %v2493, %v2715
      %v2901 = vadd.f32 %v2494, %v2717
      %v2902 = vadd.f32 %v2495, %v2719
      %v2903 = vadd.f32 %v2496, %v2721
      %v2904 = vadd.f32 %v2497, %v2723
      %v2905 = vadd.f32 %v2498, %v2725
      %v2906 = vadd.f32 %v2499, %v2727
      %v2907 = vadd.f32 %v2418, %v2729
      %v2908 = vadd.f32 %v2500, %v2731
      %v2909 = vadd.f32 %v2501, %v2733
      %v2910 = vadd.f32 %v2502, %v2735
      %v2911 = vadd.f32 %v2503, %v2737
      %v2912 = vadd.f32 %v2504, %v2739
      %v2913 = vadd.f32 %v2505, %v2741
      %v2914 = vadd.f32 %v2506, %v2743
      %v2915 = vadd.f32 %v2420, %v2745
      %v2916 = vadd.f32 %v2507, %v2747
      %v2917 = vadd.f32 %v2508, %v2749
      %v2918 = vadd.f32 %v2509, %v2751
      %v2919 = vadd.f32 %v2510, %v2753
      %v2920 = vadd.f32 %v2511, %v2755
      %v2921 = vadd.f32 %v2512, %v2757
      %v2922 = vadd.f32 %v2513, %v2759
      %v2923 = vadd.f32 %v2423, %v2761
      %2924 = vrot.lane.b32.xlu0 %v2459, 64
      %v2925 = vpop.permute.xlu0 %2924
      %2926 = vrot.lane.b32.xlu0 %v2460, 64
      %v2927 = vpop.permute.xlu0 %2926
      %2928 = vrot.lane.b32.xlu0 %v2461, 64
      %v2929 = vpop.permute.xlu0 %2928
      %2930 = vrot.lane.b32.xlu0 %v2462, 64
      %v2931 = vpop.permute.xlu0 %2930
      %2932 = vrot.lane.b32.xlu0 %v2463, 64
      %v2933 = vpop.permute.xlu0 %2932
      %2934 = vrot.lane.b32.xlu0 %v2464, 64
      %v2935 = vpop.permute.xlu0 %2934
      %2936 = vrot.lane.b32.xlu0 %v2405, 64
      %v2937 = vpop.permute.xlu0 %2936
      %2938 = vrot.lane.b32.xlu0 %v2465, 64
      %v2939 = vpop.permute.xlu0 %2938
      %2940 = vrot.lane.b32.xlu0 %v2466, 64
      %v2941 = vpop.permute.xlu0 %2940
      %2942 = vrot.lane.b32.xlu0 %v2467, 64
      %v2943 = vpop.permute.xlu0 %2942
      %2944 = vrot.lane.b32.xlu0 %v2468, 64
      %v2945 = vpop.permute.xlu0 %2944
      %2946 = vrot.lane.b32.xlu0 %v2469, 64
      %v2947 = vpop.permute.xlu0 %2946
      %2948 = vrot.lane.b32.xlu0 %v2470, 64
      %v2949 = vpop.permute.xlu0 %2948
      %2950 = vrot.lane.b32.xlu0 %v2471, 64
      %v2951 = vpop.permute.xlu0 %2950
      %2952 = vrot.lane.b32.xlu0 %v2408, 64
      %v2953 = vpop.permute.xlu0 %2952
      %2954 = vrot.lane.b32.xlu0 %v2472, 64
      %v2955 = vpop.permute.xlu0 %2954
      %2956 = vrot.lane.b32.xlu0 %v2473, 64
      %v2957 = vpop.permute.xlu0 %2956
      %2958 = vrot.lane.b32.xlu0 %v2474, 64
      %v2959 = vpop.permute.xlu0 %2958
      %2960 = vrot.lane.b32.xlu0 %v2475, 64
      %v2961 = vpop.permute.xlu0 %2960
      %2962 = vrot.lane.b32.xlu0 %v2476, 64
      %v2963 = vpop.permute.xlu0 %2962
      %2964 = vrot.lane.b32.xlu0 %v2477, 64
      %v2965 = vpop.permute.xlu0 %2964
      %2966 = vrot.lane.b32.xlu0 %v2478, 64
      %v2967 = vpop.permute.xlu0 %2966
      %2968 = vrot.lane.b32.xlu0 %v2410, 64
      %v2969 = vpop.permute.xlu0 %2968
      %2970 = vrot.lane.b32.xlu0 %v2479, 64
      %v2971 = vpop.permute.xlu0 %2970
      %2972 = vrot.lane.b32.xlu0 %v2480, 64
      %v2973 = vpop.permute.xlu0 %2972
      %2974 = vrot.lane.b32.xlu0 %v2481, 64
      %v2975 = vpop.permute.xlu0 %2974
      %2976 = vrot.lane.b32.xlu0 %v2482, 64
      %v2977 = vpop.permute.xlu0 %2976
      %2978 = vrot.lane.b32.xlu0 %v2483, 64
      %v2979 = vpop.permute.xlu0 %2978
      %2980 = vrot.lane.b32.xlu0 %v2484, 64
      %v2981 = vpop.permute.xlu0 %2980
      %2982 = vrot.lane.b32.xlu0 %v2485, 64
      %v2983 = vpop.permute.xlu0 %2982
      %2984 = vrot.lane.b32.xlu0 %v2413, 64
      %v2985 = vpop.permute.xlu0 %2984
      %2986 = vrot.lane.b32.xlu0 %v2486, 64
      %v2987 = vpop.permute.xlu0 %2986
      %2988 = vrot.lane.b32.xlu0 %v2487, 64
      %v2989 = vpop.permute.xlu0 %2988
      %2990 = vrot.lane.b32.xlu0 %v2488, 64
      %v2991 = vpop.permute.xlu0 %2990
      %2992 = vrot.lane.b32.xlu0 %v2489, 64
      %v2993 = vpop.permute.xlu0 %2992
      %2994 = vrot.lane.b32.xlu0 %v2490, 64
      %v2995 = vpop.permute.xlu0 %2994
      %2996 = vrot.lane.b32.xlu0 %v2491, 64
      %v2997 = vpop.permute.xlu0 %2996
      %2998 = vrot.lane.b32.xlu0 %v2492, 64
      %v2999 = vpop.permute.xlu0 %2998
      %3000 = vrot.lane.b32.xlu0 %v2415, 64
      %v3001 = vpop.permute.xlu0 %3000
      %3002 = vrot.lane.b32.xlu0 %v2493, 64
      %v3003 = vpop.permute.xlu0 %3002
      %3004 = vrot.lane.b32.xlu0 %v2494, 64
      %v3005 = vpop.permute.xlu0 %3004
      %3006 = vrot.lane.b32.xlu0 %v2495, 64
      %v3007 = vpop.permute.xlu0 %3006
      %3008 = vrot.lane.b32.xlu0 %v2496, 64
      %v3009 = vpop.permute.xlu0 %3008
      %3010 = vrot.lane.b32.xlu0 %v2497, 64
      %v3011 = vpop.permute.xlu0 %3010
      %3012 = vrot.lane.b32.xlu0 %v2498, 64
      %v3013 = vpop.permute.xlu0 %3012
      %3014 = vrot.lane.b32.xlu0 %v2499, 64
      %v3015 = vpop.permute.xlu0 %3014
      %3016 = vrot.lane.b32.xlu0 %v2418, 64
      %v3017 = vpop.permute.xlu0 %3016
      %3018 = vrot.lane.b32.xlu0 %v2500, 64
      %v3019 = vpop.permute.xlu0 %3018
      %3020 = vrot.lane.b32.xlu0 %v2501, 64
      %v3021 = vpop.permute.xlu0 %3020
      %3022 = vrot.lane.b32.xlu0 %v2502, 64
      %v3023 = vpop.permute.xlu0 %3022
      %3024 = vrot.lane.b32.xlu0 %v2503, 64
      %v3025 = vpop.permute.xlu0 %3024
      %3026 = vrot.lane.b32.xlu0 %v2504, 64
      %v3027 = vpop.permute.xlu0 %3026
      %3028 = vrot.lane.b32.xlu0 %v2505, 64
      %v3029 = vpop.permute.xlu0 %3028
      %3030 = vrot.lane.b32.xlu0 %v2506, 64
      %v3031 = vpop.permute.xlu0 %3030
      %3032 = vrot.lane.b32.xlu0 %v2420, 64
      %v3033 = vpop.permute.xlu0 %3032
      %3034 = vrot.lane.b32.xlu0 %v2507, 64
      %v3035 = vpop.permute.xlu0 %3034
      %3036 = vrot.lane.b32.xlu0 %v2508, 64
      %v3037 = vpop.permute.xlu0 %3036
      %3038 = vrot.lane.b32.xlu0 %v2509, 64
      %v3039 = vpop.permute.xlu0 %3038
      %3040 = vrot.lane.b32.xlu0 %v2510, 64
      %v3041 = vpop.permute.xlu0 %3040
      %3042 = vrot.lane.b32.xlu0 %v2511, 64
      %v3043 = vpop.permute.xlu0 %3042
      %3044 = vrot.lane.b32.xlu0 %v2512, 64
      %v3045 = vpop.permute.xlu0 %3044
      %3046 = vrot.lane.b32.xlu0 %v2513, 64
      %v3047 = vpop.permute.xlu0 %3046
      %3048 = vrot.lane.b32.xlu0 %v2423, 64
      %v3049 = vpop.permute.xlu0 %3048
      %3050 = vrot.lane.b32.xlu0 %v2514, 64
      %v3051 = vpop.permute.xlu0 %3050
      %3052 = vrot.lane.b32.xlu0 %v2515, 64
      %v3053 = vpop.permute.xlu0 %3052
      %3054 = vrot.lane.b32.xlu0 %v2516, 64
      %v3055 = vpop.permute.xlu0 %3054
      %3056 = vrot.lane.b32.xlu0 %v2517, 64
      %v3057 = vpop.permute.xlu0 %3056
      %3058 = vrot.lane.b32.xlu0 %v2518, 64
      %v3059 = vpop.permute.xlu0 %3058
      %3060 = vrot.lane.b32.xlu0 %v2519, 64
      %v3061 = vpop.permute.xlu0 %3060
      %3062 = vrot.lane.b32.xlu0 %v2520, 64
      %v3063 = vpop.permute.xlu0 %3062
      %3064 = vrot.lane.b32.xlu0 %v2425, 64
      %v3065 = vpop.permute.xlu0 %3064
      %3066 = vrot.lane.b32.xlu0 %v2521, 64
      %v3067 = vpop.permute.xlu0 %3066
      %3068 = vrot.lane.b32.xlu0 %v2522, 64
      %v3069 = vpop.permute.xlu0 %3068
      %3070 = vrot.lane.b32.xlu0 %v2523, 64
      %v3071 = vpop.permute.xlu0 %3070
      %3072 = vrot.lane.b32.xlu0 %v2524, 64
      %v3073 = vpop.permute.xlu0 %3072
      %3074 = vrot.lane.b32.xlu0 %v2525, 64
      %v3075 = vpop.permute.xlu0 %3074
      %3076 = vrot.lane.b32.xlu0 %v2526, 64
      %v3077 = vpop.permute.xlu0 %3076
      %3078 = vrot.lane.b32.xlu0 %v2527, 64
      %v3079 = vpop.permute.xlu0 %3078
      %3080 = vrot.lane.b32.xlu0 %v2428, 64
      %v3081 = vpop.permute.xlu0 %3080
      %3082 = vrot.lane.b32.xlu0 %v2528, 64
      %v3083 = vpop.permute.xlu0 %3082
      %3084 = vrot.lane.b32.xlu0 %v2529, 64
      %v3085 = vpop.permute.xlu0 %3084
      %v3167 = vadd.f32 %v2843, %v2925
      %v3168 = vadd.f32 %v2844, %v2927
      %v3169 = vadd.f32 %v2845, %v2929
      %v3170 = vadd.f32 %v2846, %v2931
      %v3171 = vadd.f32 %v2847, %v2933
      %v3172 = vadd.f32 %v2848, %v2935
      %v3173 = vadd.f32 %v2849, %v2937
      %v3174 = vadd.f32 %v2850, %v2939
      %v3175 = vadd.f32 %v2851, %v2941
      %v3176 = vadd.f32 %v2852, %v2943
      %v3177 = vadd.f32 %v2853, %v2945
      %v3178 = vadd.f32 %v2854, %v2947
      %v3179 = vadd.f32 %v2855, %v2949
      %v3180 = vadd.f32 %v2856, %v2951
      %v3181 = vadd.f32 %v2857, %v2953
      %v3182 = vadd.f32 %v2858, %v2955
      %v3183 = vadd.f32 %v2859, %v2957
      %v3184 = vadd.f32 %v2860, %v2959
      %v3185 = vadd.f32 %v2861, %v2961
      %v3186 = vadd.f32 %v2862, %v2963
      %v3187 = vadd.f32 %v2863, %v2965
      %v3188 = vadd.f32 %v2864, %v2967
      %v3189 = vadd.f32 %v2865, %v2969
      %v3190 = vadd.f32 %v2866, %v2971
      %v3191 = vadd.f32 %v2867, %v2973
      %v3192 = vadd.f32 %v2868, %v2975
      %v3193 = vadd.f32 %v2869, %v2977
      %v3194 = vadd.f32 %v2870, %v2979
      %v3195 = vadd.f32 %v2871, %v2981
      %v3196 = vadd.f32 %v2872, %v2983
      %v3197 = vadd.f32 %v2873, %v2985
      %v3198 = vadd.f32 %v2874, %v2987
      %v3199 = vadd.f32 %v2875, %v2989
      %v3200 = vadd.f32 %v2876, %v2991
      %v3201 = vadd.f32 %v2877, %v2993
      %v3202 = vadd.f32 %v2878, %v2995
      %v3203 = vadd.f32 %v2879, %v2997
      %v3204 = vadd.f32 %v2880, %v2999
      %v3205 = vadd.f32 %v2881, %v3001
      %v3206 = vadd.f32 %v2882, %v3003
      %v3207 = vadd.f32 %v2883, %v3005
      %v3208 = vadd.f32 %v2884, %v3007
      %v3209 = vadd.f32 %v2885, %v3009
      %v3210 = vadd.f32 %v2886, %v3011
      %v3211 = vadd.f32 %v2887, %v3013
      %v3212 = vadd.f32 %v2888, %v3015
      %v3213 = vadd.f32 %v2889, %v3017
      %v3214 = vadd.f32 %v2890, %v3019
      %v3215 = vadd.f32 %v2891, %v3021
      %v3216 = vadd.f32 %v2892, %v3023
      %v3217 = vadd.f32 %v2893, %v3025
      %v3218 = vadd.f32 %v2894, %v3027
      %v3219 = vadd.f32 %v2895, %v3029
      %v3220 = vadd.f32 %v2896, %v3031
      %v3221 = vadd.f32 %v2897, %v3033
      %v3222 = vadd.f32 %v2898, %v3035
      %v3223 = vadd.f32 %v2899, %v3037
      %v3224 = vadd.f32 %v2900, %v3039
      %v3225 = vadd.f32 %v2901, %v3041
      %v3226 = vadd.f32 %v2902, %v3043
      %v3227 = vadd.f32 %v2903, %v3045
      %v3228 = vadd.f32 %v2904, %v3047
      %v3229 = vadd.f32 %v2905, %v3049
      %v3230 = vadd.f32 %v2906, %v3051
      %v3231 = vadd.f32 %v2907, %v3053
      %v3232 = vadd.f32 %v2908, %v3055
      %v3233 = vadd.f32 %v2909, %v3057
      %v3234 = vadd.f32 %v2910, %v3059
      %v3235 = vadd.f32 %v2911, %v3061
      %v3236 = vadd.f32 %v2912, %v3063
      %v3237 = vadd.f32 %v2913, %v3065
      %v3238 = vadd.f32 %v2914, %v3067
      %v3239 = vadd.f32 %v2915, %v3069
      %v3240 = vadd.f32 %v2916, %v3071
      %v3241 = vadd.f32 %v2917, %v3073
      %v3242 = vadd.f32 %v2918, %v3075
      %v3243 = vadd.f32 %v2919, %v3077
      %v3244 = vadd.f32 %v2920, %v3079
      %v3245 = vadd.f32 %v2921, %v3081
      %v3246 = vadd.f32 %v2922, %v3083
      %v3247 = vadd.f32 %v2923, %v3085
      %v3248 = vld [vmem:[%s4] sm:$0x1]
      %v3250 = vperm.slane %v3248, 0
      %v3252 = vrot.slane %v3250, 1
      %v3253 = vrot.slane %v3250, 2
      %v3254 = vrot.slane %v3250, 3
      %v3255 = vrot.slane %v3250, 4
      %v3256 = vrot.slane %v3250, 5
      %v3257 = vrot.slane %v3250, 6
      %v3258 = vrot.slane %v3250, 7
      %v3266 = vadd.f32 %v3167, %v3250
      %v3267 = vadd.f32 %v3168, %v3252
      %v3268 = vadd.f32 %v3169, %v3253
      %v3269 = vadd.f32 %v3170, %v3254
      %v3270 = vadd.f32 %v3171, %v3255
      %v3271 = vadd.f32 %v3172, %v3256
      %v3272 = vadd.f32 %v3173, %v3257
      %v3273 = vadd.f32 %v3174, %v3258
      %v3274 = vadd.f32 %v3175, %v3250
      %v3275 = vadd.f32 %v3176, %v3250
      %v3276 = vadd.f32 %v3177, %v3252
      %v3277 = vadd.f32 %v3178, %v3253
      %v3278 = vadd.f32 %v3179, %v3254
      %v3279 = vadd.f32 %v3180, %v3255
      %v3280 = vadd.f32 %v3181, %v3256
      %v3281 = vadd.f32 %v3182, %v3257
      %v3282 = vadd.f32 %v3183, %v3258
      %v3283 = vadd.f32 %v3184, %v3250
      %v3284 = vadd.f32 %v3185, %v3250
      %v3285 = vadd.f32 %v3186, %v3252
      %v3286 = vadd.f32 %v3187, %v3253
      %v3287 = vadd.f32 %v3188, %v3254
      %v3288 = vadd.f32 %v3189, %v3255
      %v3289 = vadd.f32 %v3190, %v3256
      %v3290 = vadd.f32 %v3191, %v3257
      %v3291 = vadd.f32 %v3192, %v3258
      %v3292 = vadd.f32 %v3193, %v3250
      %v3293 = vadd.f32 %v3194, %v3250
      %v3294 = vadd.f32 %v3195, %v3252
      %v3295 = vadd.f32 %v3196, %v3253
      %v3296 = vadd.f32 %v3197, %v3254
      %v3297 = vadd.f32 %v3198, %v3255
      %v3298 = vadd.f32 %v3199, %v3256
      %v3299 = vadd.f32 %v3200, %v3257
      %v3300 = vadd.f32 %v3201, %v3258
      %v3301 = vadd.f32 %v3202, %v3250
      %v3302 = vadd.f32 %v3203, %v3250
      %v3303 = vadd.f32 %v3204, %v3252
      %v3304 = vadd.f32 %v3205, %v3253
      %v3305 = vadd.f32 %v3206, %v3254
      %v3306 = vadd.f32 %v3207, %v3255
      %v3307 = vadd.f32 %v3208, %v3256
      %v3308 = vadd.f32 %v3209, %v3257
      %v3309 = vadd.f32 %v3210, %v3258
      %v3310 = vadd.f32 %v3211, %v3250
      %v3311 = vadd.f32 %v3212, %v3250
      %v3312 = vadd.f32 %v3213, %v3252
      %v3313 = vadd.f32 %v3214, %v3253
      %v3314 = vadd.f32 %v3215, %v3254
      %v3315 = vadd.f32 %v3216, %v3255
      %v3316 = vadd.f32 %v3217, %v3256
      %v3317 = vadd.f32 %v3218, %v3257
      %v3318 = vadd.f32 %v3219, %v3258
      %v3319 = vadd.f32 %v3220, %v3250
      %v3320 = vadd.f32 %v3221, %v3250
      %v3321 = vadd.f32 %v3222, %v3252
      %v3322 = vadd.f32 %v3223, %v3253
      %v3323 = vadd.f32 %v3224, %v3254
      %v3324 = vadd.f32 %v3225, %v3255
      %v3325 = vadd.f32 %v3226, %v3256
      %v3326 = vadd.f32 %v3227, %v3257
      %v3327 = vadd.f32 %v3228, %v3258
      %v3328 = vadd.f32 %v3229, %v3250
      %v3329 = vadd.f32 %v3230, %v3250
      %v3330 = vadd.f32 %v3231, %v3252
      %v3331 = vadd.f32 %v3232, %v3253
      %v3332 = vadd.f32 %v3233, %v3254
      %v3333 = vadd.f32 %v3234, %v3255
      %v3334 = vadd.f32 %v3235, %v3256
      %v3335 = vadd.f32 %v3236, %v3257
      %v3336 = vadd.f32 %v3237, %v3258
      %v3337 = vadd.f32 %v3238, %v3250
      %v3338 = vadd.f32 %v3239, %v3250
      %v3339 = vadd.f32 %v3240, %v3252
      %v3340 = vadd.f32 %v3241, %v3253
      %v3341 = vadd.f32 %v3242, %v3254
      %v3342 = vadd.f32 %v3243, %v3255
      %v3343 = vadd.f32 %v3244, %v3256
      %v3344 = vadd.f32 %v3245, %v3257
      %v3345 = vadd.f32 %v3246, %v3258
      %v3346 = vadd.f32 %v3247, %v3250
      %v3347 = vmax.f32 %v3266, 0.0
      %v3348 = vmax.f32 %v3267, 0.0
      %v3349 = vmax.f32 %v3268, 0.0
      %v3350 = vmax.f32 %v3269, 0.0
      %v3351 = vmax.f32 %v3270, 0.0
      %v3352 = vmax.f32 %v3271, 0.0
      %v3353 = vmax.f32 %v3272, 0.0
      %v3354 = vmax.f32 %v3273, 0.0
      %v3355 = vmax.f32 %v3274, 0.0
      %v3356 = vmax.f32 %v3275, 0.0
      %v3357 = vmax.f32 %v3276, 0.0
      %v3358 = vmax.f32 %v3277, 0.0
      %v3359 = vmax.f32 %v3278, 0.0
      %v3360 = vmax.f32 %v3279, 0.0
      %v3361 = vmax.f32 %v3280, 0.0
      %v3362 = vmax.f32 %v3281, 0.0
      %v3363 = vmax.f32 %v3282, 0.0
      %v3364 = vmax.f32 %v3283, 0.0
      %v3365 = vmax.f32 %v3284, 0.0
      %v3366 = vmax.f32 %v3285, 0.0
      %v3367 = vmax.f32 %v3286, 0.0
      %v3368 = vmax.f32 %v3287, 0.0
      %v3369 = vmax.f32 %v3288, 0.0
      %v3370 = vmax.f32 %v3289, 0.0
      %v3371 = vmax.f32 %v3290, 0.0
      %v3372 = vmax.f32 %v3291, 0.0
      %v3373 = vmax.f32 %v3292, 0.0
      %v3374 = vmax.f32 %v3293, 0.0
      %v3375 = vmax.f32 %v3294, 0.0
      %v3376 = vmax.f32 %v3295, 0.0
      %v3377 = vmax.f32 %v3296, 0.0
      %v3378 = vmax.f32 %v3297, 0.0
      %v3379 = vmax.f32 %v3298, 0.0
      %v3380 = vmax.f32 %v3299, 0.0
      %v3381 = vmax.f32 %v3300, 0.0
      %v3382 = vmax.f32 %v3301, 0.0
      %v3383 = vmax.f32 %v3302, 0.0
      %v3384 = vmax.f32 %v3303, 0.0
      %v3385 = vmax.f32 %v3304, 0.0
      %v3386 = vmax.f32 %v3305, 0.0
      %v3387 = vmax.f32 %v3306, 0.0
      %v3388 = vmax.f32 %v3307, 0.0
      %v3389 = vmax.f32 %v3308, 0.0
      %v3390 = vmax.f32 %v3309, 0.0
      %v3391 = vmax.f32 %v3310, 0.0
      %v3392 = vmax.f32 %v3311, 0.0
      %v3393 = vmax.f32 %v3312, 0.0
      %v3394 = vmax.f32 %v3313, 0.0
      %v3395 = vmax.f32 %v3314, 0.0
      %v3396 = vmax.f32 %v3315, 0.0
      %v3397 = vmax.f32 %v3316, 0.0
      %v3398 = vmax.f32 %v3317, 0.0
      %v3399 = vmax.f32 %v3318, 0.0
      %v3400 = vmax.f32 %v3319, 0.0
      %v3401 = vmax.f32 %v3320, 0.0
      %v3402 = vmax.f32 %v3321, 0.0
      %v3403 = vmax.f32 %v3322, 0.0
      %v3404 = vmax.f32 %v3323, 0.0
      %v3405 = vmax.f32 %v3324, 0.0
      %v3406 = vmax.f32 %v3325, 0.0
      %v3407 = vmax.f32 %v3326, 0.0
      %v3408 = vmax.f32 %v3327, 0.0
      %v3409 = vmax.f32 %v3328, 0.0
      %v3410 = vmax.f32 %v3329, 0.0
      %v3411 = vmax.f32 %v3330, 0.0
      %v3412 = vmax.f32 %v3331, 0.0
      %v3413 = vmax.f32 %v3332, 0.0
      %v3414 = vmax.f32 %v3333, 0.0
      %v3415 = vmax.f32 %v3334, 0.0
      %v3416 = vmax.f32 %v3335, 0.0
      %v3417 = vmax.f32 %v3336, 0.0
      %v3418 = vmax.f32 %v3337, 0.0
      %v3419 = vmax.f32 %v3338, 0.0
      %v3420 = vmax.f32 %v3339, 0.0
      %v3421 = vmax.f32 %v3340, 0.0
      %v3422 = vmax.f32 %v3341, 0.0
      %v3423 = vmax.f32 %v3342, 0.0
      %v3424 = vmax.f32 %v3343, 0.0
      %v3425 = vmax.f32 %v3344, 0.0
      %v3426 = vmax.f32 %v3345, 0.0
      %v3427 = vmax.f32 %v3346, 0.0
      %3509 = vst [vmem:[#allocation1] ss:$9 sm:$0xff] %v3347
      %s3510 = scalar_lea.vmem [#allocation1], 1
      %3511 = vst [vmem:[%s3510] ss:$9 sm:$0xff] %v3348
      %s3512 = scalar_lea.vmem [#allocation1], 2
      %3513 = vst [vmem:[%s3512] ss:$9 sm:$0xff] %v3349
      %s3514 = scalar_lea.vmem [#allocation1], 3
      %3515 = vst [vmem:[%s3514] ss:$9 sm:$0xff] %v3350
      %s3516 = scalar_lea.vmem [#allocation1], 4
      %3517 = vst [vmem:[%s3516] ss:$9 sm:$0xff] %v3351
      %s3518 = scalar_lea.vmem [#allocation1], 5
      %3519 = vst [vmem:[%s3518] ss:$9 sm:$0xff] %v3352
      %s3520 = scalar_lea.vmem [#allocation1], 6
      %3521 = vst [vmem:[%s3520] ss:$9 sm:$0xff] %v3353
      %s3522 = scalar_lea.vmem [#allocation1], 7
      %3523 = vst [vmem:[%s3522] ss:$9 sm:$0xff] %v3354
      %v3524 = vld [vmem:[#allocation1] sm:$0xff]
      %3525 = vst [vmem:[#allocation1] ss:$9 sm:$0xff] %v3355
      %v3526 = vld [vmem:[#allocation1] sm:$0xff]
      %3527 = vst [vmem:[#allocation1] ss:$9 sm:$0xff] %v3356
      %3528 = vst [vmem:[%s3510] ss:$9 sm:$0xff] %v3357
      %3529 = vst [vmem:[%s3512] ss:$9 sm:$0xff] %v3358
      %3530 = vst [vmem:[%s3514] ss:$9 sm:$0xff] %v3359
      %3531 = vst [vmem:[%s3516] ss:$9 sm:$0xff] %v3360
      %3532 = vst [vmem:[%s3518] ss:$9 sm:$0xff] %v3361
      %3533 = vst [vmem:[%s3520] ss:$9 sm:$0xff] %v3362
      %3534 = vst [vmem:[%s3522] ss:$9 sm:$0xff] %v3363
      %v3535 = vld [vmem:[#allocation1] sm:$0xff]
      %3536 = vst [vmem:[#allocation1] ss:$9 sm:$0xff] %v3364
      %v3537 = vld [vmem:[#allocation1] sm:$0xff]
      %3538 = vst [vmem:[#allocation1] ss:$9 sm:$0xff] %v3365
      %3539 = vst [vmem:[%s3510] ss:$9 sm:$0xff] %v3366
      %3540 = vst [vmem:[%s3512] ss:$9 sm:$0xff] %v3367
      %3541 = vst [vmem:[%s3514] ss:$9 sm:$0xff] %v3368
      %3542 = vst [vmem:[%s3516] ss:$9 sm:$0xff] %v3369
      %3543 = vst [vmem:[%s3518] ss:$9 sm:$0xff] %v3370
      %3544 = vst [vmem:[%s3520] ss:$9 sm:$0xff] %v3371
      %3545 = vst [vmem:[%s3522] ss:$9 sm:$0xff] %v3372
      %v3546 = vld [vmem:[#allocation1] sm:$0xff]
      %3547 = vst [vmem:[#allocation1] ss:$9 sm:$0xff] %v3373
      %v3548 = vld [vmem:[#allocation1] sm:$0xff]
      %3549 = vst [vmem:[#allocation1] ss:$9 sm:$0xff] %v3374
      %3550 = vst [vmem:[%s3510] ss:$9 sm:$0xff] %v3375
      %3551 = vst [vmem:[%s3512] ss:$9 sm:$0xff] %v3376
      %3552 = vst [vmem:[%s3514] ss:$9 sm:$0xff] %v3377
      %3553 = vst [vmem:[%s3516] ss:$9 sm:$0xff] %v3378
      %3554 = vst [vmem:[%s3518] ss:$9 sm:$0xff] %v3379
      %3555 = vst [vmem:[%s3520] ss:$9 sm:$0xff] %v3380
      %3556 = vst [vmem:[%s3522] ss:$9 sm:$0xff] %v3381
      %v3557 = vld [vmem:[#allocation1] sm:$0xff]
      %3558 = vst [vmem:[#allocation1] ss:$9 sm:$0xff] %v3382
      %v3559 = vld [vmem:[#allocation1] sm:$0xff]
      %3560 = vst [vmem:[#allocation1] ss:$9 sm:$0xff] %v3383
      %3561 = vst [vmem:[%s3510] ss:$9 sm:$0xff] %v3384
      %3562 = vst [vmem:[%s3512] ss:$9 sm:$0xff] %v3385
      %3563 = vst [vmem:[%s3514] ss:$9 sm:$0xff] %v3386
      %3564 = vst [vmem:[%s3516] ss:$9 sm:$0xff] %v3387
      %3565 = vst [vmem:[%s3518] ss:$9 sm:$0xff] %v3388
      %3566 = vst [vmem:[%s3520] ss:$9 sm:$0xff] %v3389
      %3567 = vst [vmem:[%s3522] ss:$9 sm:$0xff] %v3390
      %v3568 = vld [vmem:[#allocation1] sm:$0xff]
      %3569 = vst [vmem:[#allocation1] ss:$9 sm:$0xff] %v3391
      %v3570 = vld [vmem:[#allocation1] sm:$0xff]
      %3571 = vst [vmem:[#allocation1] ss:$9 sm:$0xff] %v3392
      %3572 = vst [vmem:[%s3510] ss:$9 sm:$0xff] %v3393
      %3573 = vst [vmem:[%s3512] ss:$9 sm:$0xff] %v3394
      %3574 = vst [vmem:[%s3514] ss:$9 sm:$0xff] %v3395
      %3575 = vst [vmem:[%s3516] ss:$9 sm:$0xff] %v3396
      %3576 = vst [vmem:[%s3518] ss:$9 sm:$0xff] %v3397
      %3577 = vst [vmem:[%s3520] ss:$9 sm:$0xff] %v3398
      %3578 = vst [vmem:[%s3522] ss:$9 sm:$0xff] %v3399
      %v3579 = vld [vmem:[#allocation1] sm:$0xff]
      %3580 = vst [vmem:[#allocation1] ss:$9 sm:$0xff] %v3400
      %v3581 = vld [vmem:[#allocation1] sm:$0xff]
      %3582 = vst [vmem:[#allocation1] ss:$9 sm:$0xff] %v3401
      %3583 = vst [vmem:[%s3510] ss:$9 sm:$0xff] %v3402
      %3584 = vst [vmem:[%s3512] ss:$9 sm:$0xff] %v3403
      %3585 = vst [vmem:[%s3514] ss:$9 sm:$0xff] %v3404
      %3586 = vst [vmem:[%s3516] ss:$9 sm:$0xff] %v3405
      %3587 = vst [vmem:[%s3518] ss:$9 sm:$0xff] %v3406
      %3588 = vst [vmem:[%s3520] ss:$9 sm:$0xff] %v3407
      %3589 = vst [vmem:[%s3522] ss:$9 sm:$0xff] %v3408
      %v3590 = vld [vmem:[#allocation1] sm:$0xff]
      %3591 = vst [vmem:[#allocation1] ss:$9 sm:$0xff] %v3409
      %v3592 = vld [vmem:[#allocation1] sm:$0xff]
      %3593 = vst [vmem:[#allocation1] ss:$9 sm:$0xff] %v3410
      %3594 = vst [vmem:[%s3510] ss:$9 sm:$0xff] %v3411
      %3595 = vst [vmem:[%s3512] ss:$9 sm:$0xff] %v3412
      %3596 = vst [vmem:[%s3514] ss:$9 sm:$0xff] %v3413
      %3597 = vst [vmem:[%s3516] ss:$9 sm:$0xff] %v3414
      %3598 = vst [vmem:[%s3518] ss:$9 sm:$0xff] %v3415
      %3599 = vst [vmem:[%s3520] ss:$9 sm:$0xff] %v3416
      %3600 = vst [vmem:[%s3522] ss:$9 sm:$0xff] %v3417
      %v3601 = vld [vmem:[#allocation1] sm:$0xff]
      %3602 = vst [vmem:[#allocation1] ss:$9 sm:$0xff] %v3418
      %v3603 = vld [vmem:[#allocation1] sm:$0xff]
      %3604 = vst [vmem:[#allocation1] ss:$9 sm:$0xff] %v3419
      %3605 = vst [vmem:[%s3510] ss:$9 sm:$0xff] %v3420
      %3606 = vst [vmem:[%s3512] ss:$9 sm:$0xff] %v3421
      %3607 = vst [vmem:[%s3514] ss:$9 sm:$0xff] %v3422
      %3608 = vst [vmem:[%s3516] ss:$9 sm:$0xff] %v3423
      %3609 = vst [vmem:[%s3518] ss:$9 sm:$0xff] %v3424
      %3610 = vst [vmem:[%s3520] ss:$9 sm:$0xff] %v3425
      %3611 = vst [vmem:[%s3522] ss:$9 sm:$0xff] %v3426
      %v3612 = vld [vmem:[#allocation1] sm:$0xff]
      %3613 = vst [vmem:[#allocation1] ss:$9 sm:$0xff] %v3427
      %v3614 = vld [vmem:[#allocation1] sm:$0xff]
      %v3633 = vpack.c.bf16 %v3524, %v3524
      %v3634 = vpack.c.bf16 %v3526, %v3526
      %v3635 = vpack.c.bf16 %v3535, %v3535
      %v3636 = vpack.c.bf16 %v3537, %v3537
      %v3637 = vpack.c.bf16 %v3546, %v3546
      %v3638 = vpack.c.bf16 %v3548, %v3548
      %v3639 = vpack.c.bf16 %v3557, %v3557
      %v3640 = vpack.c.bf16 %v3559, %v3559
      %v3641 = vpack.c.bf16 %v3568, %v3568
      %v3642 = vpack.c.bf16 %v3570, %v3570
      %v3643 = vpack.c.bf16 %v3579, %v3579
      %v3644 = vpack.c.bf16 %v3581, %v3581
      %v3645 = vpack.c.bf16 %v3590, %v3590
      %v3646 = vpack.c.bf16 %v3592, %v3592
      %v3647 = vpack.c.bf16 %v3601, %v3601
      %v3648 = vpack.c.bf16 %v3603, %v3603
      %v3649 = vpack.c.bf16 %v3612, %v3612
      %v3650 = vpack.c.bf16 %v3614, %v3614
      %v3660 = vunpack.c.l.b16 %v3633
      %v3661 = vunpack.c.l.b16 %v3635
      %v3662 = vunpack.c.l.b16 %v3637
      %v3663 = vunpack.c.l.b16 %v3639
      %v3664 = vunpack.c.l.b16 %v3641
      %v3665 = vunpack.c.l.b16 %v3643
      %v3666 = vunpack.c.l.b16 %v3645
      %v3667 = vunpack.c.l.b16 %v3647
      %v3668 = vunpack.c.l.b16 %v3649
      %v3669 = vpack.c.b16 %v3660, %v3660
      %v3670 = vpack.c.b16 %v3661, %v3661
      %v3671 = vpack.c.b16 %v3662, %v3662
      %v3672 = vpack.c.b16 %v3663, %v3663
      %v3673 = vpack.c.b16 %v3664, %v3664
      %v3674 = vpack.c.b16 %v3665, %v3665
      %v3675 = vpack.c.b16 %v3666, %v3666
      %v3676 = vpack.c.b16 %v3667, %v3667
      %v3677 = vpack.c.b16 %v3668, %v3668
      %v3679 = vshrl.u32 %v3669, 16
      %v3681 = vshll.u32 %v3669, 16
      %v3683 = vrot.slane %v3681, 1
      %v3684 = vor.u32 %v3679, %v3683
      %v3686 = vshrl.u32 %v3670, 16
      %v3688 = vshll.u32 %v3670, 16
      %v3690 = vrot.slane %v3688, 1
      %v3691 = vor.u32 %v3686, %v3690
      %v3693 = vshrl.u32 %v3671, 16
      %v3695 = vshll.u32 %v3671, 16
      %v3697 = vrot.slane %v3695, 1
      %v3698 = vor.u32 %v3693, %v3697
      %v3700 = vshrl.u32 %v3672, 16
      %v3702 = vshll.u32 %v3672, 16
      %v3704 = vrot.slane %v3702, 1
      %v3705 = vor.u32 %v3700, %v3704
      %v3707 = vshrl.u32 %v3673, 16
      %v3709 = vshll.u32 %v3673, 16
      %v3711 = vrot.slane %v3709, 1
      %v3712 = vor.u32 %v3707, %v3711
      %v3714 = vshrl.u32 %v3674, 16
      %v3716 = vshll.u32 %v3674, 16
      %v3718 = vrot.slane %v3716, 1
      %v3719 = vor.u32 %v3714, %v3718
      %v3721 = vshrl.u32 %v3675, 16
      %v3723 = vshll.u32 %v3675, 16
      %v3725 = vrot.slane %v3723, 1
      %v3726 = vor.u32 %v3721, %v3725
      %v3728 = vshrl.u32 %v3676, 16
      %v3730 = vshll.u32 %v3676, 16
      %v3732 = vrot.slane %v3730, 1
      %v3733 = vor.u32 %v3728, %v3732
      %v3735 = vshrl.u32 %v3677, 16
      %v3737 = vshll.u32 %v3677, 16
      %v3739 = vrot.slane %v3737, 1
      %v3740 = vor.u32 %v3735, %v3739
      %3741 = vrot.lane.b32.xlu0 %v3684, 32
      %v3742 = vpop.permute.xlu0 %3741
      %3743 = vrot.lane.b32.xlu0 %v3691, 32
      %v3744 = vpop.permute.xlu0 %3743
      %3745 = vrot.lane.b32.xlu0 %v3698, 32
      %v3746 = vpop.permute.xlu0 %3745
      %3747 = vrot.lane.b32.xlu0 %v3705, 32
      %v3748 = vpop.permute.xlu0 %3747
      %3749 = vrot.lane.b32.xlu0 %v3712, 32
      %v3750 = vpop.permute.xlu0 %3749
      %3751 = vrot.lane.b32.xlu0 %v3719, 32
      %v3752 = vpop.permute.xlu0 %3751
      %3753 = vrot.lane.b32.xlu0 %v3726, 32
      %v3754 = vpop.permute.xlu0 %3753
      %3755 = vrot.lane.b32.xlu0 %v3733, 32
      %v3756 = vpop.permute.xlu0 %3755
      %3757 = vrot.lane.b32.xlu0 %v3740, 32
      %v3758 = vpop.permute.xlu0 %3757
      %v3768 = vunpack.c.l.b16 %v3634
      %v3769 = vunpack.c.l.b16 %v3636
      %v3770 = vunpack.c.l.b16 %v3638
      %v3771 = vunpack.c.l.b16 %v3640
      %v3772 = vunpack.c.l.b16 %v3642
      %v3773 = vunpack.c.l.b16 %v3644
      %v3774 = vunpack.c.l.b16 %v3646
      %v3775 = vunpack.c.l.b16 %v3648
      %v3776 = vunpack.c.l.b16 %v3650
      %v3777 = vpack.c.b16 %v3768, %v3660
      %v3778 = vpack.c.b16 %v3769, %v3661
      %v3779 = vpack.c.b16 %v3770, %v3662
      %v3780 = vpack.c.b16 %v3771, %v3663
      %v3781 = vpack.c.b16 %v3772, %v3664
      %v3782 = vpack.c.b16 %v3773, %v3665
      %v3783 = vpack.c.b16 %v3774, %v3666
      %v3784 = vpack.c.b16 %v3775, %v3667
      %v3785 = vpack.c.b16 %v3776, %v3668
      %v3786 = vrot.slane %v3777, 1
      %v3787 = vrot.slane %v3778, 1
      %v3788 = vrot.slane %v3779, 1
      %v3789 = vrot.slane %v3780, 1
      %v3790 = vrot.slane %v3781, 1
      %v3791 = vrot.slane %v3782, 1
      %v3792 = vrot.slane %v3783, 1
      %v3793 = vrot.slane %v3784, 1
      %v3794 = vrot.slane %v3785, 1
      %3795 = vrot.lane.b32.xlu0 %v3786, 64
      %v3796 = vpop.permute.xlu0 %3795
      %3797 = vrot.lane.b32.xlu0 %v3787, 64
      %v3798 = vpop.permute.xlu0 %3797
      %3799 = vrot.lane.b32.xlu0 %v3788, 64
      %v3800 = vpop.permute.xlu0 %3799
      %3801 = vrot.lane.b32.xlu0 %v3789, 64
      %v3802 = vpop.permute.xlu0 %3801
      %3803 = vrot.lane.b32.xlu0 %v3790, 64
      %v3804 = vpop.permute.xlu0 %3803
      %3805 = vrot.lane.b32.xlu0 %v3791, 64
      %v3806 = vpop.permute.xlu0 %3805
      %3807 = vrot.lane.b32.xlu0 %v3792, 64
      %v3808 = vpop.permute.xlu0 %3807
      %3809 = vrot.lane.b32.xlu0 %v3793, 64
      %v3810 = vpop.permute.xlu0 %3809
      %3811 = vrot.lane.b32.xlu0 %v3794, 64
      %v3812 = vpop.permute.xlu0 %3811
      %v3815 = vsel %vm1961, %v3633, %v3742
      %v3818 = vsel %vm1961, %v3635, %v3744
      %v3821 = vsel %vm1961, %v3637, %v3746
      %v3824 = vsel %vm1961, %v3639, %v3748
      %v3827 = vsel %vm1961, %v3641, %v3750
      %v3830 = vsel %vm1961, %v3643, %v3752
      %v3833 = vsel %vm1961, %v3645, %v3754
      %v3836 = vsel %vm1961, %v3647, %v3756
      %v3839 = vsel %vm1961, %v3649, %v3758
      %v3841 = vsel %vm1984, %v3815, %v3796
      %v3843 = vsel %vm1984, %v3818, %v3798
      %v3845 = vsel %vm1984, %v3821, %v3800
      %v3847 = vsel %vm1984, %v3824, %v3802
      %v3849 = vsel %vm1984, %v3827, %v3804
      %v3851 = vsel %vm1984, %v3830, %v3806
      %v3853 = vsel %vm1984, %v3833, %v3808
      %v3855 = vsel %vm1984, %v3836, %v3810
      %v3857 = vsel %vm1984, %v3839, %v3812
      %v3867 = vrot.slane %v3841, 1
      %v3868 = vrot.slane %v3841, 2
      %v3869 = vrot.slane %v3841, 3
      %v3870 = vrot.slane %v3843, 1
      %v3871 = vrot.slane %v3843, 2
      %v3872 = vrot.slane %v3843, 3
      %v3873 = vrot.slane %v3845, 1
      %v3874 = vrot.slane %v3845, 2
      %v3875 = vrot.slane %v3845, 3
      %v3876 = vrot.slane %v3847, 1
      %v3877 = vrot.slane %v3847, 2
      %v3878 = vrot.slane %v3847, 3
      %v3879 = vrot.slane %v3849, 1
      %v3880 = vrot.slane %v3849, 2
      %v3881 = vrot.slane %v3849, 3
      %v3882 = vrot.slane %v3851, 1
      %v3883 = vrot.slane %v3851, 2
      %v3884 = vrot.slane %v3851, 3
      %v3885 = vrot.slane %v3853, 1
      %v3886 = vrot.slane %v3853, 2
      %v3887 = vrot.slane %v3853, 3
      %v3888 = vrot.slane %v3855, 1
      %v3889 = vrot.slane %v3855, 2
      %v3890 = vrot.slane %v3855, 3
      %v3891 = vrot.slane %v3857, 1
      %v3892 = vrot.slane %v3857, 2
      %v3893 = vrot.slane %v3857, 3
      %v3894 = vunpack.i.l.s16 %v3841
      %v3895 = vunpack.i.h.s16 %v3841
      %v3896 = vunpack.i.l.s16 %v3867
      %v3897 = vunpack.i.h.s16 %v3867
      %v3898 = vunpack.i.l.s16 %v3868
      %v3899 = vunpack.i.h.s16 %v3868
      %v3900 = vunpack.i.l.s16 %v3869
      %v3901 = vunpack.i.l.s16 %v3843
      %v3902 = vunpack.i.h.s16 %v3843
      %v3903 = vunpack.i.l.s16 %v3870
      %v3904 = vunpack.i.h.s16 %v3870
      %v3905 = vunpack.i.l.s16 %v3871
      %v3906 = vunpack.i.h.s16 %v3871
      %v3907 = vunpack.i.l.s16 %v3872
      %v3908 = vunpack.i.l.s16 %v3845
      %v3909 = vunpack.i.h.s16 %v3845
      %v3910 = vunpack.i.l.s16 %v3873
      %v3911 = vunpack.i.h.s16 %v3873
      %v3912 = vunpack.i.l.s16 %v3874
      %v3913 = vunpack.i.h.s16 %v3874
      %v3914 = vunpack.i.l.s16 %v3875
      %v3915 = vunpack.i.l.s16 %v3847
      %v3916 = vunpack.i.h.s16 %v3847
      %v3917 = vunpack.i.l.s16 %v3876
      %v3918 = vunpack.i.h.s16 %v3876
      %v3919 = vunpack.i.l.s16 %v3877
      %v3920 = vunpack.i.h.s16 %v3877
      %v3921 = vunpack.i.l.s16 %v3878
      %v3922 = vunpack.i.l.s16 %v3849
      %v3923 = vunpack.i.h.s16 %v3849
      %v3924 = vunpack.i.l.s16 %v3879
      %v3925 = vunpack.i.h.s16 %v3879
      %v3926 = vunpack.i.l.s16 %v3880
      %v3927 = vunpack.i.h.s16 %v3880
      %v3928 = vunpack.i.l.s16 %v3881
      %v3929 = vunpack.i.l.s16 %v3851
      %v3930 = vunpack.i.h.s16 %v3851
      %v3931 = vunpack.i.l.s16 %v3882
      %v3932 = vunpack.i.h.s16 %v3882
      %v3933 = vunpack.i.l.s16 %v3883
      %v3934 = vunpack.i.h.s16 %v3883
      %v3935 = vunpack.i.l.s16 %v3884
      %v3936 = vunpack.i.l.s16 %v3853
      %v3937 = vunpack.i.h.s16 %v3853
      %v3938 = vunpack.i.l.s16 %v3885
      %v3939 = vunpack.i.h.s16 %v3885
      %v3940 = vunpack.i.l.s16 %v3886
      %v3941 = vunpack.i.h.s16 %v3886
      %v3942 = vunpack.i.l.s16 %v3887
      %v3943 = vunpack.i.l.s16 %v3855
      %v3944 = vunpack.i.h.s16 %v3855
      %v3945 = vunpack.i.l.s16 %v3888
      %v3946 = vunpack.i.h.s16 %v3888
      %v3947 = vunpack.i.l.s16 %v3889
      %v3948 = vunpack.i.h.s16 %v3889
      %v3949 = vunpack.i.l.s16 %v3890
      %v3950 = vunpack.i.l.s16 %v3857
      %v3951 = vunpack.i.h.s16 %v3857
      %v3952 = vunpack.i.l.s16 %v3891
      %v3953 = vunpack.i.h.s16 %v3891
      %v3954 = vunpack.i.l.s16 %v3892
      %v3955 = vunpack.i.h.s16 %v3892
      %v3956 = vunpack.i.l.s16 %v3893
      %v3957 = vld [vmem:[%s5] sm:$0xf]
      %v3958 = vld [vmem:[%s5 + $0x4] sm:$0xf]
      %v3959 = vld [vmem:[%s5 + $0x8] sm:$0xf]
      %v3960 = vld [vmem:[%s5 + $0xc] sm:$0xf]
      %v3961 = vld [vmem:[%s5 + $0x10] sm:$0xf]
      %v3962 = vld [vmem:[%s5 + $0x14] sm:$0xf]
      %v3963 = vld [vmem:[%s5 + $0x18] sm:$0xf]
      %v3964 = vld [vmem:[%s5 + $0x1c] sm:$0xf]
      %v3965 = vld [vmem:[%s5 + $0x20] sm:$0xf]
      %v3966 = vld [vmem:[%s5 + $0x24] sm:$0xf]
      %v3967 = vld [vmem:[%s5 + $0x28] sm:$0xf]
      %v3968 = vld [vmem:[%s5 + $0x2c] sm:$0xf]
      %v3969 = vpack.i.b16 %v3895, %v3894
      %v3970 = vpack.i.b16 %v3897, %v3896
      %v3971 = vpack.i.b16 %v3899, %v3898
      %v3972 = vpack.i.b16 %v3901, %v3900
      %v3973 = vpack.i.b16 %v3903, %v3902
      %v3974 = vpack.i.b16 %v3905, %v3904
      %v3975 = vpack.i.b16 %v3907, %v3906
      %v3976 = vpack.i.b16 %v3909, %v3908
      %v3977 = vpack.i.b16 %v3911, %v3910
      %v3978 = vpack.i.b16 %v3913, %v3912
      %v3979 = vpack.i.b16 %v3915, %v3914
      %v3980 = vpack.i.b16 %v3917, %v3916
      %v3981 = vpack.i.b16 %v3919, %v3918
      %v3982 = vpack.i.b16 %v3921, %v3920
      %v3983 = vpack.i.b16 %v3923, %v3922
      %v3984 = vpack.i.b16 %v3925, %v3924
      %v3985 = vpack.i.b16 %v3927, %v3926
      %v3986 = vpack.i.b16 %v3929, %v3928
      %v3987 = vpack.i.b16 %v3931, %v3930
      %v3988 = vpack.i.b16 %v3933, %v3932
      %v3989 = vpack.i.b16 %v3935, %v3934
      %v3990 = vpack.i.b16 %v3937, %v3936
      %v3991 = vpack.i.b16 %v3939, %v3938
      %v3992 = vpack.i.b16 %v3941, %v3940
      %v3993 = vpack.i.b16 %v3943, %v3942
      %v3994 = vpack.i.b16 %v3945, %v3944
      %v3995 = vpack.i.b16 %v3947, %v3946
      %v3996 = vpack.i.b16 %v3949, %v3948
      %v3997 = vpack.i.b16 %v3951, %v3950
      %v3998 = vpack.i.b16 %v3953, %v3952
      %v3999 = vpack.i.b16 %v3955, %v3954
      %4002 = vst [vmem:[#allocation1] ss:$9 sm:$0xff] %v3969
      %s4004 = scalar_lea.vmem [#allocation1], 1
      %4005 = vst [vmem:[%s4004] ss:$9 sm:$0xff] %v3970
      %s4007 = scalar_lea.vmem [#allocation1], 2
      %4008 = vst [vmem:[%s4007] ss:$9 sm:$0xff] %v3971
      %s4010 = scalar_lea.vmem [#allocation1], 3
      %4011 = vst [vmem:[%s4010] ss:$9 sm:$0xff] %v3972
      %s4013 = scalar_lea.vmem [#allocation1], 4
      %4014 = vst [vmem:[%s4013] ss:$9 sm:$0xff] %v3973
      %s4016 = scalar_lea.vmem [#allocation1], 5
      %4017 = vst [vmem:[%s4016] ss:$9 sm:$0xff] %v3974
      %s4019 = scalar_lea.vmem [#allocation1], 6
      %4020 = vst [vmem:[%s4019] ss:$9 sm:$0xff] %v3975
      %s4022 = scalar_lea.vmem [#allocation1], 7
      %4023 = vst [vmem:[%s4022] ss:$9 sm:$0xff] %v3976
      %v4024 = vld [vmem:[#allocation1] sm:$0xff]
      %4026 = vst [vmem:[#allocation1] ss:$9 sm:$0xff] %v3977
      %4028 = vst [vmem:[%s4004] ss:$9 sm:$0xff] %v3978
      %4030 = vst [vmem:[%s4007] ss:$9 sm:$0xff] %v3979
      %4032 = vst [vmem:[%s4010] ss:$9 sm:$0xff] %v3980
      %4034 = vst [vmem:[%s4013] ss:$9 sm:$0xff] %v3981
      %4036 = vst [vmem:[%s4016] ss:$9 sm:$0xff] %v3982
      %4038 = vst [vmem:[%s4019] ss:$9 sm:$0xff] %v3983
      %4040 = vst [vmem:[%s4022] ss:$9 sm:$0xff] %v3984
      %v4041 = vld [vmem:[#allocation1] sm:$0xff]
      %4043 = vst [vmem:[#allocation1] ss:$9 sm:$0xff] %v3985
      %4045 = vst [vmem:[%s4004] ss:$9 sm:$0xff] %v3986
      %4047 = vst [vmem:[%s4007] ss:$9 sm:$0xff] %v3987
      %4049 = vst [vmem:[%s4010] ss:$9 sm:$0xff] %v3988
      %4051 = vst [vmem:[%s4013] ss:$9 sm:$0xff] %v3989
      %4053 = vst [vmem:[%s4016] ss:$9 sm:$0xff] %v3990
      %4055 = vst [vmem:[%s4019] ss:$9 sm:$0xff] %v3991
      %4057 = vst [vmem:[%s4022] ss:$9 sm:$0xff] %v3992
      %v4058 = vld [vmem:[#allocation1] sm:$0xff]
      %4060 = vst [vmem:[#allocation1] ss:$9 sm:$0xff] %v3993
      %4062 = vst [vmem:[%s4004] ss:$9 sm:$0xff] %v3994
      %4064 = vst [vmem:[%s4007] ss:$9 sm:$0xff] %v3995
      %4066 = vst [vmem:[%s4010] ss:$9 sm:$0xff] %v3996
      %4068 = vst [vmem:[%s4013] ss:$9 sm:$0xff] %v3997
      %4070 = vst [vmem:[%s4016] ss:$9 sm:$0xff] %v3998
      %4072 = vst [vmem:[%s4019] ss:$9 sm:$0xff] %v3999
      %4074 = vst [vmem:[%s4022] ss:$9 sm:$0xff] %v3956
      %v4075 = vld [vmem:[#allocation1] sm:$0xff]
      %v4088 = vunpack.c.l.b16 %v3957
      %v4089 = vunpack.c.l.b16 %v3958
      %v4090 = vunpack.c.l.b16 %v3959
      %v4091 = vunpack.c.l.b16 %v3960
      %v4092 = vunpack.c.l.b16 %v3961
      %v4093 = vunpack.c.l.b16 %v3962
      %v4094 = vunpack.c.l.b16 %v3963
      %v4095 = vunpack.c.l.b16 %v3964
      %v4096 = vunpack.c.l.b16 %v3965
      %v4097 = vunpack.c.l.b16 %v3966
      %v4098 = vunpack.c.l.b16 %v3967
      %v4099 = vunpack.c.l.b16 %v3968
      %v4100 = vpack.c.b16 %v4089, %v4088
      %v4101 = vpack.c.b16 %v4091, %v4090
      %v4102 = vpack.c.b16 %v4093, %v4092
      %v4103 = vpack.c.b16 %v4095, %v4094
      %v4104 = vpack.c.b16 %v4097, %v4096
      %v4105 = vpack.c.b16 %v4099, %v4098
      %v4112 = vsel %vm2373, %v4024, 0
      %v4114 = vsel %vm2373, %v4041, 0
      %v4116 = vsel %vm2373, %v4058, 0
      %v4118 = vsel %vm2373, %v4075, 0
      %4120 = vmatpush.bf16.msra.mxu0 0
      %4121 = vmatpush.bf16.msra.mxu0 0
      %4122 = vmatpush.bf16.msra.mxu0 %v4105
      %4123 = vmatpush.bf16.msra.mxu0 %v4104
      %4124 = vmatpush.bf16.msra.mxu0 %v4103
      %4125 = vmatpush.bf16.msra.mxu0 %v4102
      %4126 = vmatpush.bf16.msra.mxu0 %v4101
      %4127 = vmatpush.bf16.msra.mxu0 %v4100
      %4128 = vmatmul.bf16.gmra.mxu0 %v4112
      %v4129 = vpop.f32.mrf.mxu0
      %v4130 = vadd.f32 0.0, %v4129
      %v4131 = vpop.f32.mrf.mxu0
      %v4132 = vadd.f32 0.0, %v4131
      %4133 = vmatmul.bf16.gmra.mxu0 %v4114
      %v4134 = vpop.f32.mrf.mxu0
      %v4135 = vadd.f32 0.0, %v4134
      %v4136 = vpop.f32.mrf.mxu0
      %v4137 = vadd.f32 0.0, %v4136
      %4138 = vmatmul.bf16.gmra.mxu0 %v4116
      %v4139 = vpop.f32.mrf.mxu0
      %v4140 = vadd.f32 0.0, %v4139
      %v4141 = vpop.f32.mrf.mxu0
      %v4142 = vadd.f32 0.0, %v4141
      %4143 = vmatmul.bf16.gmra.mxu0 %v4118
      %v4144 = vpop.f32.mrf.mxu0
      %v4145 = vadd.f32 0.0, %v4144
      %v4146 = vpop.f32.mrf.mxu0
      %v4147 = vadd.f32 0.0, %v4146
      %4148 = vdwg.mxu0
      %v4157 = vrot.slane %v4130, 1
      %v4158 = vrot.slane %v4130, 2
      %v4159 = vrot.slane %v4130, 3
      %v4160 = vrot.slane %v4130, 4
      %v4161 = vrot.slane %v4130, 5
      %v4162 = vrot.slane %v4130, 6
      %v4163 = vrot.slane %v4130, 7
      %v4164 = vrot.slane %v4132, 1
      %v4165 = vrot.slane %v4132, 2
      %v4166 = vrot.slane %v4132, 3
      %v4167 = vrot.slane %v4132, 4
      %v4168 = vrot.slane %v4132, 5
      %v4169 = vrot.slane %v4132, 6
      %v4170 = vrot.slane %v4132, 7
      %v4171 = vrot.slane %v4135, 1
      %v4172 = vrot.slane %v4135, 2
      %v4173 = vrot.slane %v4135, 3
      %v4174 = vrot.slane %v4135, 4
      %v4175 = vrot.slane %v4135, 5
      %v4176 = vrot.slane %v4135, 6
      %v4177 = vrot.slane %v4135, 7
      %v4178 = vrot.slane %v4137, 1
      %v4179 = vrot.slane %v4137, 2
      %v4180 = vrot.slane %v4137, 3
      %v4181 = vrot.slane %v4137, 4
      %v4182 = vrot.slane %v4137, 5
      %v4183 = vrot.slane %v4137, 6
      %v4184 = vrot.slane %v4137, 7
      %v4185 = vrot.slane %v4140, 1
      %v4186 = vrot.slane %v4140, 2
      %v4187 = vrot.slane %v4140, 3
      %v4188 = vrot.slane %v4140, 4
      %v4189 = vrot.slane %v4140, 5
      %v4190 = vrot.slane %v4140, 6
      %v4191 = vrot.slane %v4140, 7
      %v4192 = vrot.slane %v4142, 1
      %v4193 = vrot.slane %v4142, 2
      %v4194 = vrot.slane %v4142, 3
      %v4195 = vrot.slane %v4142, 4
      %v4196 = vrot.slane %v4142, 5
      %v4197 = vrot.slane %v4142, 6
      %v4198 = vrot.slane %v4142, 7
      %v4199 = vrot.slane %v4145, 1
      %v4200 = vrot.slane %v4145, 2
      %v4201 = vrot.slane %v4145, 3
      %v4202 = vrot.slane %v4145, 4
      %v4203 = vrot.slane %v4145, 5
      %v4204 = vrot.slane %v4145, 6
      %v4205 = vrot.slane %v4145, 7
      %v4206 = vrot.slane %v4147, 1
      %v4207 = vrot.slane %v4147, 2
      %v4208 = vrot.slane %v4147, 3
      %v4209 = vrot.slane %v4147, 4
      %v4210 = vrot.slane %v4147, 5
      %v4211 = vrot.slane %v4147, 6
      %4254 = vrot.lane.b32.xlu0 %v4163, 96
      %v4255 = vpop.permute.xlu0 %4254
      %4256 = vrot.lane.b32.xlu0 %v4132, 96
      %v4257 = vpop.permute.xlu0 %4256
      %4258 = vrot.lane.b32.xlu0 %v4164, 96
      %v4259 = vpop.permute.xlu0 %4258
      %4260 = vrot.lane.b32.xlu0 %v4165, 96
      %v4261 = vpop.permute.xlu0 %4260
      %4262 = vrot.lane.b32.xlu0 %v4166, 96
      %v4263 = vpop.permute.xlu0 %4262
      %4264 = vrot.lane.b32.xlu0 %v4167, 96
      %v4265 = vpop.permute.xlu0 %4264
      %4266 = vrot.lane.b32.xlu0 %v4168, 96
      %v4267 = vpop.permute.xlu0 %4266
      %4268 = vrot.lane.b32.xlu0 %v4169, 96
      %v4269 = vpop.permute.xlu0 %4268
      %4270 = vrot.lane.b32.xlu0 %v4170, 96
      %v4271 = vpop.permute.xlu0 %4270
      %4272 = vrot.lane.b32.xlu0 %v4135, 96
      %v4273 = vpop.permute.xlu0 %4272
      %4274 = vrot.lane.b32.xlu0 %v4171, 96
      %v4275 = vpop.permute.xlu0 %4274
      %4276 = vrot.lane.b32.xlu0 %v4172, 96
      %v4277 = vpop.permute.xlu0 %4276
      %4278 = vrot.lane.b32.xlu0 %v4173, 96
      %v4279 = vpop.permute.xlu0 %4278
      %4280 = vrot.lane.b32.xlu0 %v4174, 96
      %v4281 = vpop.permute.xlu0 %4280
      %4282 = vrot.lane.b32.xlu0 %v4175, 96
      %v4283 = vpop.permute.xlu0 %4282
      %4284 = vrot.lane.b32.xlu0 %v4176, 96
      %v4285 = vpop.permute.xlu0 %4284
      %4286 = vrot.lane.b32.xlu0 %v4177, 96
      %v4287 = vpop.permute.xlu0 %4286
      %4288 = vrot.lane.b32.xlu0 %v4137, 96
      %v4289 = vpop.permute.xlu0 %4288
      %4290 = vrot.lane.b32.xlu0 %v4178, 96
      %v4291 = vpop.permute.xlu0 %4290
      %4292 = vrot.lane.b32.xlu0 %v4179, 96
      %v4293 = vpop.permute.xlu0 %4292
      %4294 = vrot.lane.b32.xlu0 %v4180, 96
      %v4295 = vpop.permute.xlu0 %4294
      %4296 = vrot.lane.b32.xlu0 %v4181, 96
      %v4297 = vpop.permute.xlu0 %4296
      %4298 = vrot.lane.b32.xlu0 %v4182, 96
      %v4299 = vpop.permute.xlu0 %4298
      %4300 = vrot.lane.b32.xlu0 %v4183, 96
      %v4301 = vpop.permute.xlu0 %4300
      %4302 = vrot.lane.b32.xlu0 %v4184, 96
      %v4303 = vpop.permute.xlu0 %4302
      %4304 = vrot.lane.b32.xlu0 %v4140, 96
      %v4305 = vpop.permute.xlu0 %4304
      %4306 = vrot.lane.b32.xlu0 %v4185, 96
      %v4307 = vpop.permute.xlu0 %4306
      %4308 = vrot.lane.b32.xlu0 %v4186, 96
      %v4309 = vpop.permute.xlu0 %4308
      %4310 = vrot.lane.b32.xlu0 %v4187, 96
      %v4311 = vpop.permute.xlu0 %4310
      %4312 = vrot.lane.b32.xlu0 %v4188, 96
      %v4313 = vpop.permute.xlu0 %4312
      %4314 = vrot.lane.b32.xlu0 %v4189, 96
      %v4315 = vpop.permute.xlu0 %4314
      %4316 = vrot.lane.b32.xlu0 %v4190, 96
      %v4317 = vpop.permute.xlu0 %4316
      %4318 = vrot.lane.b32.xlu0 %v4191, 96
      %v4319 = vpop.permute.xlu0 %4318
      %4320 = vrot.lane.b32.xlu0 %v4142, 96
      %v4321 = vpop.permute.xlu0 %4320
      %4322 = vrot.lane.b32.xlu0 %v4192, 96
      %v4323 = vpop.permute.xlu0 %4322
      %4324 = vrot.lane.b32.xlu0 %v4193, 96
      %v4325 = vpop.permute.xlu0 %4324
      %4326 = vrot.lane.b32.xlu0 %v4194, 96
      %v4327 = vpop.permute.xlu0 %4326
      %4328 = vrot.lane.b32.xlu0 %v4195, 96
      %v4329 = vpop.permute.xlu0 %4328
      %4330 = vrot.lane.b32.xlu0 %v4196, 96
      %v4331 = vpop.permute.xlu0 %4330
      %4332 = vrot.lane.b32.xlu0 %v4197, 96
      %v4333 = vpop.permute.xlu0 %4332
      %4334 = vrot.lane.b32.xlu0 %v4198, 96
      %v4335 = vpop.permute.xlu0 %4334
      %4336 = vrot.lane.b32.xlu0 %v4145, 96
      %v4337 = vpop.permute.xlu0 %4336
      %4338 = vrot.lane.b32.xlu0 %v4199, 96
      %v4339 = vpop.permute.xlu0 %4338
      %4340 = vrot.lane.b32.xlu0 %v4200, 96
      %v4341 = vpop.permute.xlu0 %4340
      %4342 = vrot.lane.b32.xlu0 %v4201, 96
      %v4343 = vpop.permute.xlu0 %4342
      %4344 = vrot.lane.b32.xlu0 %v4202, 96
      %v4345 = vpop.permute.xlu0 %4344
      %4346 = vrot.lane.b32.xlu0 %v4203, 96
      %v4347 = vpop.permute.xlu0 %4346
      %4348 = vrot.lane.b32.xlu0 %v4204, 96
      %v4349 = vpop.permute.xlu0 %4348
      %4350 = vrot.lane.b32.xlu0 %v4205, 96
      %v4351 = vpop.permute.xlu0 %4350
      %v4401 = vadd.f32 %v4130, %v4255
      %v4402 = vadd.f32 %v4157, %v4257
      %v4403 = vadd.f32 %v4158, %v4259
      %v4404 = vadd.f32 %v4159, %v4261
      %v4405 = vadd.f32 %v4160, %v4263
      %v4406 = vadd.f32 %v4161, %v4265
      %v4407 = vadd.f32 %v4162, %v4267
      %v4408 = vadd.f32 %v4163, %v4269
      %v4409 = vadd.f32 %v4132, %v4271
      %v4410 = vadd.f32 %v4164, %v4273
      %v4411 = vadd.f32 %v4165, %v4275
      %v4412 = vadd.f32 %v4166, %v4277
      %v4413 = vadd.f32 %v4167, %v4279
      %v4414 = vadd.f32 %v4168, %v4281
      %v4415 = vadd.f32 %v4169, %v4283
      %v4416 = vadd.f32 %v4170, %v4285
      %v4417 = vadd.f32 %v4135, %v4287
      %v4418 = vadd.f32 %v4171, %v4289
      %v4419 = vadd.f32 %v4172, %v4291
      %v4420 = vadd.f32 %v4173, %v4293
      %v4421 = vadd.f32 %v4174, %v4295
      %v4422 = vadd.f32 %v4175, %v4297
      %v4423 = vadd.f32 %v4176, %v4299
      %v4424 = vadd.f32 %v4177, %v4301
      %v4425 = vadd.f32 %v4137, %v4303
      %v4426 = vadd.f32 %v4178, %v4305
      %v4427 = vadd.f32 %v4179, %v4307
      %v4428 = vadd.f32 %v4180, %v4309
      %v4429 = vadd.f32 %v4181, %v4311
      %v4430 = vadd.f32 %v4182, %v4313
      %v4431 = vadd.f32 %v4183, %v4315
      %v4432 = vadd.f32 %v4184, %v4317
      %v4433 = vadd.f32 %v4140, %v4319
      %v4434 = vadd.f32 %v4185, %v4321
      %v4435 = vadd.f32 %v4186, %v4323
      %v4436 = vadd.f32 %v4187, %v4325
      %v4437 = vadd.f32 %v4188, %v4327
      %v4438 = vadd.f32 %v4189, %v4329
      %v4439 = vadd.f32 %v4190, %v4331
      %v4440 = vadd.f32 %v4191, %v4333
      %v4441 = vadd.f32 %v4142, %v4335
      %v4442 = vadd.f32 %v4192, %v4337
      %v4443 = vadd.f32 %v4193, %v4339
      %v4444 = vadd.f32 %v4194, %v4341
      %v4445 = vadd.f32 %v4195, %v4343
      %v4446 = vadd.f32 %v4196, %v4345
      %v4447 = vadd.f32 %v4197, %v4347
      %v4448 = vadd.f32 %v4198, %v4349
      %v4449 = vadd.f32 %v4145, %v4351
      %4450 = vrot.lane.b32.xlu0 %v4169, 64
      %v4451 = vpop.permute.xlu0 %4450
      %4452 = vrot.lane.b32.xlu0 %v4170, 64
      %v4453 = vpop.permute.xlu0 %4452
      %4454 = vrot.lane.b32.xlu0 %v4135, 64
      %v4455 = vpop.permute.xlu0 %4454
      %4456 = vrot.lane.b32.xlu0 %v4171, 64
      %v4457 = vpop.permute.xlu0 %4456
      %4458 = vrot.lane.b32.xlu0 %v4172, 64
      %v4459 = vpop.permute.xlu0 %4458
      %4460 = vrot.lane.b32.xlu0 %v4173, 64
      %v4461 = vpop.permute.xlu0 %4460
      %4462 = vrot.lane.b32.xlu0 %v4174, 64
      %v4463 = vpop.permute.xlu0 %4462
      %4464 = vrot.lane.b32.xlu0 %v4175, 64
      %v4465 = vpop.permute.xlu0 %4464
      %4466 = vrot.lane.b32.xlu0 %v4176, 64
      %v4467 = vpop.permute.xlu0 %4466
      %4468 = vrot.lane.b32.xlu0 %v4177, 64
      %v4469 = vpop.permute.xlu0 %4468
      %4470 = vrot.lane.b32.xlu0 %v4137, 64
      %v4471 = vpop.permute.xlu0 %4470
      %4472 = vrot.lane.b32.xlu0 %v4178, 64
      %v4473 = vpop.permute.xlu0 %4472
      %4474 = vrot.lane.b32.xlu0 %v4179, 64
      %v4475 = vpop.permute.xlu0 %4474
      %4476 = vrot.lane.b32.xlu0 %v4180, 64
      %v4477 = vpop.permute.xlu0 %4476
      %4478 = vrot.lane.b32.xlu0 %v4181, 64
      %v4479 = vpop.permute.xlu0 %4478
      %4480 = vrot.lane.b32.xlu0 %v4182, 64
      %v4481 = vpop.permute.xlu0 %4480
      %4482 = vrot.lane.b32.xlu0 %v4183, 64
      %v4483 = vpop.permute.xlu0 %4482
      %4484 = vrot.lane.b32.xlu0 %v4184, 64
      %v4485 = vpop.permute.xlu0 %4484
      %4486 = vrot.lane.b32.xlu0 %v4140, 64
      %v4487 = vpop.permute.xlu0 %4486
      %4488 = vrot.lane.b32.xlu0 %v4185, 64
      %v4489 = vpop.permute.xlu0 %4488
      %4490 = vrot.lane.b32.xlu0 %v4186, 64
      %v4491 = vpop.permute.xlu0 %4490
      %4492 = vrot.lane.b32.xlu0 %v4187, 64
      %v4493 = vpop.permute.xlu0 %4492
      %4494 = vrot.lane.b32.xlu0 %v4188, 64
      %v4495 = vpop.permute.xlu0 %4494
      %4496 = vrot.lane.b32.xlu0 %v4189, 64
      %v4497 = vpop.permute.xlu0 %4496
      %4498 = vrot.lane.b32.xlu0 %v4190, 64
      %v4499 = vpop.permute.xlu0 %4498
      %4500 = vrot.lane.b32.xlu0 %v4191, 64
      %v4501 = vpop.permute.xlu0 %4500
      %4502 = vrot.lane.b32.xlu0 %v4142, 64
      %v4503 = vpop.permute.xlu0 %4502
      %4504 = vrot.lane.b32.xlu0 %v4192, 64
      %v4505 = vpop.permute.xlu0 %4504
      %4506 = vrot.lane.b32.xlu0 %v4193, 64
      %v4507 = vpop.permute.xlu0 %4506
      %4508 = vrot.lane.b32.xlu0 %v4194, 64
      %v4509 = vpop.permute.xlu0 %4508
      %4510 = vrot.lane.b32.xlu0 %v4195, 64
      %v4511 = vpop.permute.xlu0 %4510
      %4512 = vrot.lane.b32.xlu0 %v4196, 64
      %v4513 = vpop.permute.xlu0 %4512
      %4514 = vrot.lane.b32.xlu0 %v4197, 64
      %v4515 = vpop.permute.xlu0 %4514
      %4516 = vrot.lane.b32.xlu0 %v4198, 64
      %v4517 = vpop.permute.xlu0 %4516
      %4518 = vrot.lane.b32.xlu0 %v4145, 64
      %v4519 = vpop.permute.xlu0 %4518
      %4520 = vrot.lane.b32.xlu0 %v4199, 64
      %v4521 = vpop.permute.xlu0 %4520
      %4522 = vrot.lane.b32.xlu0 %v4200, 64
      %v4523 = vpop.permute.xlu0 %4522
      %4524 = vrot.lane.b32.xlu0 %v4201, 64
      %v4525 = vpop.permute.xlu0 %4524
      %4526 = vrot.lane.b32.xlu0 %v4202, 64
      %v4527 = vpop.permute.xlu0 %4526
      %4528 = vrot.lane.b32.xlu0 %v4203, 64
      %v4529 = vpop.permute.xlu0 %4528
      %4530 = vrot.lane.b32.xlu0 %v4204, 64
      %v4531 = vpop.permute.xlu0 %4530
      %4532 = vrot.lane.b32.xlu0 %v4205, 64
      %v4533 = vpop.permute.xlu0 %4532
      %4534 = vrot.lane.b32.xlu0 %v4147, 64
      %v4535 = vpop.permute.xlu0 %4534
      %4536 = vrot.lane.b32.xlu0 %v4206, 64
      %v4537 = vpop.permute.xlu0 %4536
      %4538 = vrot.lane.b32.xlu0 %v4207, 64
      %v4539 = vpop.permute.xlu0 %4538
      %4540 = vrot.lane.b32.xlu0 %v4208, 64
      %v4541 = vpop.permute.xlu0 %4540
      %4542 = vrot.lane.b32.xlu0 %v4209, 64
      %v4543 = vpop.permute.xlu0 %4542
      %4544 = vrot.lane.b32.xlu0 %v4210, 64
      %v4545 = vpop.permute.xlu0 %4544
      %4546 = vrot.lane.b32.xlu0 %v4211, 64
      %v4547 = vpop.permute.xlu0 %4546
      %v4597 = vadd.f32 %v4401, %v4451
      %v4598 = vadd.f32 %v4402, %v4453
      %v4599 = vadd.f32 %v4403, %v4455
      %v4600 = vadd.f32 %v4404, %v4457
      %v4601 = vadd.f32 %v4405, %v4459
      %v4602 = vadd.f32 %v4406, %v4461
      %v4603 = vadd.f32 %v4407, %v4463
      %v4604 = vadd.f32 %v4408, %v4465
      %v4605 = vadd.f32 %v4409, %v4467
      %v4606 = vadd.f32 %v4410, %v4469
      %v4607 = vadd.f32 %v4411, %v4471
      %v4608 = vadd.f32 %v4412, %v4473
      %v4609 = vadd.f32 %v4413, %v4475
      %v4610 = vadd.f32 %v4414, %v4477
      %v4611 = vadd.f32 %v4415, %v4479
      %v4612 = vadd.f32 %v4416, %v4481
      %v4613 = vadd.f32 %v4417, %v4483
      %v4614 = vadd.f32 %v4418, %v4485
      %v4615 = vadd.f32 %v4419, %v4487
      %v4616 = vadd.f32 %v4420, %v4489
      %v4617 = vadd.f32 %v4421, %v4491
      %v4618 = vadd.f32 %v4422, %v4493
      %v4619 = vadd.f32 %v4423, %v4495
      %v4620 = vadd.f32 %v4424, %v4497
      %v4621 = vadd.f32 %v4425, %v4499
      %v4622 = vadd.f32 %v4426, %v4501
      %v4623 = vadd.f32 %v4427, %v4503
      %v4624 = vadd.f32 %v4428, %v4505
      %v4625 = vadd.f32 %v4429, %v4507
      %v4626 = vadd.f32 %v4430, %v4509
      %v4627 = vadd.f32 %v4431, %v4511
      %v4628 = vadd.f32 %v4432, %v4513
      %v4629 = vadd.f32 %v4433, %v4515
      %v4630 = vadd.f32 %v4434, %v4517
      %v4631 = vadd.f32 %v4435, %v4519
      %v4632 = vadd.f32 %v4436, %v4521
      %v4633 = vadd.f32 %v4437, %v4523
      %v4634 = vadd.f32 %v4438, %v4525
      %v4635 = vadd.f32 %v4439, %v4527
      %v4636 = vadd.f32 %v4440, %v4529
      %v4637 = vadd.f32 %v4441, %v4531
      %v4638 = vadd.f32 %v4442, %v4533
      %v4639 = vadd.f32 %v4443, %v4535
      %v4640 = vadd.f32 %v4444, %v4537
      %v4641 = vadd.f32 %v4445, %v4539
      %v4642 = vadd.f32 %v4446, %v4541
      %v4643 = vadd.f32 %v4447, %v4543
      %v4644 = vadd.f32 %v4448, %v4545
      %v4645 = vadd.f32 %v4449, %v4547
      %v4646 = vld [vmem:[%s6] sm:$0x1]
      %v4648 = vperm.slane %v4646, 0
      %v4650 = vrot.slane %v4648, 1
      %v4651 = vrot.slane %v4648, 2
      %v4652 = vrot.slane %v4648, 3
      %v4653 = vrot.slane %v4648, 4
      %v4654 = vrot.slane %v4648, 5
      %v4655 = vrot.slane %v4648, 6
      %v4662 = vadd.f32 %v4597, %v4648
      %v4663 = vadd.f32 %v4598, %v4650
      %v4664 = vadd.f32 %v4599, %v4651
      %v4665 = vadd.f32 %v4600, %v4652
      %v4666 = vadd.f32 %v4601, %v4653
      %v4667 = vadd.f32 %v4602, %v4654
      %v4668 = vadd.f32 %v4603, %v4655
      %v4669 = vadd.f32 %v4604, %v4648
      %v4670 = vadd.f32 %v4605, %v4650
      %v4671 = vadd.f32 %v4606, %v4651
      %v4672 = vadd.f32 %v4607, %v4652
      %v4673 = vadd.f32 %v4608, %v4653
      %v4674 = vadd.f32 %v4609, %v4654
      %v4675 = vadd.f32 %v4610, %v4655
      %v4676 = vadd.f32 %v4611, %v4648
      %v4677 = vadd.f32 %v4612, %v4650
      %v4678 = vadd.f32 %v4613, %v4651
      %v4679 = vadd.f32 %v4614, %v4652
      %v4680 = vadd.f32 %v4615, %v4653
      %v4681 = vadd.f32 %v4616, %v4654
      %v4682 = vadd.f32 %v4617, %v4655
      %v4683 = vadd.f32 %v4618, %v4648
      %v4684 = vadd.f32 %v4619, %v4650
      %v4685 = vadd.f32 %v4620, %v4651
      %v4686 = vadd.f32 %v4621, %v4652
      %v4687 = vadd.f32 %v4622, %v4653
      %v4688 = vadd.f32 %v4623, %v4654
      %v4689 = vadd.f32 %v4624, %v4655
      %v4690 = vadd.f32 %v4625, %v4648
      %v4691 = vadd.f32 %v4626, %v4650
      %v4692 = vadd.f32 %v4627, %v4651
      %v4693 = vadd.f32 %v4628, %v4652
      %v4694 = vadd.f32 %v4629, %v4653
      %v4695 = vadd.f32 %v4630, %v4654
      %v4696 = vadd.f32 %v4631, %v4655
      %v4697 = vadd.f32 %v4632, %v4648
      %v4698 = vadd.f32 %v4633, %v4650
      %v4699 = vadd.f32 %v4634, %v4651
      %v4700 = vadd.f32 %v4635, %v4652
      %v4701 = vadd.f32 %v4636, %v4653
      %v4702 = vadd.f32 %v4637, %v4654
      %v4703 = vadd.f32 %v4638, %v4655
      %v4704 = vadd.f32 %v4639, %v4648
      %v4705 = vadd.f32 %v4640, %v4650
      %v4706 = vadd.f32 %v4641, %v4651
      %v4707 = vadd.f32 %v4642, %v4652
      %v4708 = vadd.f32 %v4643, %v4653
      %v4709 = vadd.f32 %v4644, %v4654
      %v4710 = vadd.f32 %v4645, %v4655
      %v4711 = vmax.f32 %v4662, 0.0
      %v4712 = vmax.f32 %v4663, 0.0
      %v4713 = vmax.f32 %v4664, 0.0
      %v4714 = vmax.f32 %v4665, 0.0
      %v4715 = vmax.f32 %v4666, 0.0
      %v4716 = vmax.f32 %v4667, 0.0
      %v4717 = vmax.f32 %v4668, 0.0
      %v4718 = vmax.f32 %v4669, 0.0
      %v4719 = vmax.f32 %v4670, 0.0
      %v4720 = vmax.f32 %v4671, 0.0
      %v4721 = vmax.f32 %v4672, 0.0
      %v4722 = vmax.f32 %v4673, 0.0
      %v4723 = vmax.f32 %v4674, 0.0
      %v4724 = vmax.f32 %v4675, 0.0
      %v4725 = vmax.f32 %v4676, 0.0
      %v4726 = vmax.f32 %v4677, 0.0
      %v4727 = vmax.f32 %v4678, 0.0
      %v4728 = vmax.f32 %v4679, 0.0
      %v4729 = vmax.f32 %v4680, 0.0
      %v4730 = vmax.f32 %v4681, 0.0
      %v4731 = vmax.f32 %v4682, 0.0
      %v4732 = vmax.f32 %v4683, 0.0
      %v4733 = vmax.f32 %v4684, 0.0
      %v4734 = vmax.f32 %v4685, 0.0
      %v4735 = vmax.f32 %v4686, 0.0
      %v4736 = vmax.f32 %v4687, 0.0
      %v4737 = vmax.f32 %v4688, 0.0
      %v4738 = vmax.f32 %v4689, 0.0
      %v4739 = vmax.f32 %v4690, 0.0
      %v4740 = vmax.f32 %v4691, 0.0
      %v4741 = vmax.f32 %v4692, 0.0
      %v4742 = vmax.f32 %v4693, 0.0
      %v4743 = vmax.f32 %v4694, 0.0
      %v4744 = vmax.f32 %v4695, 0.0
      %v4745 = vmax.f32 %v4696, 0.0
      %v4746 = vmax.f32 %v4697, 0.0
      %v4747 = vmax.f32 %v4698, 0.0
      %v4748 = vmax.f32 %v4699, 0.0
      %v4749 = vmax.f32 %v4700, 0.0
      %v4750 = vmax.f32 %v4701, 0.0
      %v4751 = vmax.f32 %v4702, 0.0
      %v4752 = vmax.f32 %v4703, 0.0
      %v4753 = vmax.f32 %v4704, 0.0
      %v4754 = vmax.f32 %v4705, 0.0
      %v4755 = vmax.f32 %v4706, 0.0
      %v4756 = vmax.f32 %v4707, 0.0
      %v4757 = vmax.f32 %v4708, 0.0
      %v4758 = vmax.f32 %v4709, 0.0
      %v4759 = vmax.f32 %v4710, 0.0
      %4809 = vst [vmem:[#allocation1] ss:$9 sm:$0xff] %v4711
      %s4810 = scalar_lea.vmem [#allocation1], 1
      %4811 = vst [vmem:[%s4810] ss:$9 sm:$0xff] %v4712
      %s4812 = scalar_lea.vmem [#allocation1], 2
      %4813 = vst [vmem:[%s4812] ss:$9 sm:$0xff] %v4713
      %s4814 = scalar_lea.vmem [#allocation1], 3
      %4815 = vst [vmem:[%s4814] ss:$9 sm:$0xff] %v4714
      %s4816 = scalar_lea.vmem [#allocation1], 4
      %4817 = vst [vmem:[%s4816] ss:$9 sm:$0xff] %v4715
      %s4818 = scalar_lea.vmem [#allocation1], 5
      %4819 = vst [vmem:[%s4818] ss:$9 sm:$0xff] %v4716
      %s4820 = scalar_lea.vmem [#allocation1], 6
      %4821 = vst [vmem:[%s4820] ss:$9 sm:$0xff] %v4717
      %v4822 = vld [vmem:[#allocation1] sm:$0xff]
      %4823 = vst [vmem:[#allocation1] ss:$9 sm:$0xff] %v4718
      %4824 = vst [vmem:[%s4810] ss:$9 sm:$0xff] %v4719
      %4825 = vst [vmem:[%s4812] ss:$9 sm:$0xff] %v4720
      %4826 = vst [vmem:[%s4814] ss:$9 sm:$0xff] %v4721
      %4827 = vst [vmem:[%s4816] ss:$9 sm:$0xff] %v4722
      %4828 = vst [vmem:[%s4818] ss:$9 sm:$0xff] %v4723
      %4829 = vst [vmem:[%s4820] ss:$9 sm:$0xff] %v4724
      %v4830 = vld [vmem:[#allocation1] sm:$0xff]
      %4831 = vst [vmem:[#allocation1] ss:$9 sm:$0xff] %v4725
      %4832 = vst [vmem:[%s4810] ss:$9 sm:$0xff] %v4726
      %4833 = vst [vmem:[%s4812] ss:$9 sm:$0xff] %v4727
      %4834 = vst [vmem:[%s4814] ss:$9 sm:$0xff] %v4728
      %4835 = vst [vmem:[%s4816] ss:$9 sm:$0xff] %v4729
      %4836 = vst [vmem:[%s4818] ss:$9 sm:$0xff] %v4730
      %4837 = vst [vmem:[%s4820] ss:$9 sm:$0xff] %v4731
      %v4838 = vld [vmem:[#allocation1] sm:$0xff]
      %4839 = vst [vmem:[#allocation1] ss:$9 sm:$0xff] %v4732
      %4840 = vst [vmem:[%s4810] ss:$9 sm:$0xff] %v4733
      %4841 = vst [vmem:[%s4812] ss:$9 sm:$0xff] %v4734
      %4842 = vst [vmem:[%s4814] ss:$9 sm:$0xff] %v4735
      %4843 = vst [vmem:[%s4816] ss:$9 sm:$0xff] %v4736
      %4844 = vst [vmem:[%s4818] ss:$9 sm:$0xff] %v4737
      %4845 = vst [vmem:[%s4820] ss:$9 sm:$0xff] %v4738
      %v4846 = vld [vmem:[#allocation1] sm:$0xff]
      %4847 = vst [vmem:[#allocation1] ss:$9 sm:$0xff] %v4739
      %4848 = vst [vmem:[%s4810] ss:$9 sm:$0xff] %v4740
      %4849 = vst [vmem:[%s4812] ss:$9 sm:$0xff] %v4741
      %4850 = vst [vmem:[%s4814] ss:$9 sm:$0xff] %v4742
      %4851 = vst [vmem:[%s4816] ss:$9 sm:$0xff] %v4743
      %4852 = vst [vmem:[%s4818] ss:$9 sm:$0xff] %v4744
      %4853 = vst [vmem:[%s4820] ss:$9 sm:$0xff] %v4745
      %v4854 = vld [vmem:[#allocation1] sm:$0xff]
      %4855 = vst [vmem:[#allocation1] ss:$9 sm:$0xff] %v4746
      %4856 = vst [vmem:[%s4810] ss:$9 sm:$0xff] %v4747
      %4857 = vst [vmem:[%s4812] ss:$9 sm:$0xff] %v4748
      %4858 = vst [vmem:[%s4814] ss:$9 sm:$0xff] %v4749
      %4859 = vst [vmem:[%s4816] ss:$9 sm:$0xff] %v4750
      %4860 = vst [vmem:[%s4818] ss:$9 sm:$0xff] %v4751
      %4861 = vst [vmem:[%s4820] ss:$9 sm:$0xff] %v4752
      %v4862 = vld [vmem:[#allocation1] sm:$0xff]
      %4863 = vst [vmem:[#allocation1] ss:$9 sm:$0xff] %v4753
      %4864 = vst [vmem:[%s4810] ss:$9 sm:$0xff] %v4754
      %4865 = vst [vmem:[%s4812] ss:$9 sm:$0xff] %v4755
      %4866 = vst [vmem:[%s4814] ss:$9 sm:$0xff] %v4756
      %4867 = vst [vmem:[%s4816] ss:$9 sm:$0xff] %v4757
      %4868 = vst [vmem:[%s4818] ss:$9 sm:$0xff] %v4758
      %4869 = vst [vmem:[%s4820] ss:$9 sm:$0xff] %v4759
      %v4870 = vld [vmem:[#allocation1] sm:$0xff]
      %v4878 = vpack.c.bf16 %v4822, %v4822
      %v4879 = vpack.c.bf16 %v4830, %v4830
      %v4880 = vpack.c.bf16 %v4838, %v4838
      %v4881 = vpack.c.bf16 %v4846, %v4846
      %v4882 = vpack.c.bf16 %v4854, %v4854
      %v4883 = vpack.c.bf16 %v4862, %v4862
      %v4884 = vpack.c.bf16 %v4870, %v4870
      %v4892 = vunpack.c.l.b16 %v4878
      %v4893 = vunpack.c.l.b16 %v4879
      %v4894 = vunpack.c.l.b16 %v4880
      %v4895 = vunpack.c.l.b16 %v4881
      %v4896 = vunpack.c.l.b16 %v4882
      %v4897 = vunpack.c.l.b16 %v4883
      %v4898 = vunpack.c.l.b16 %v4884
      %v4899 = vpack.c.b16 %v4892, %v4892
      %v4900 = vpack.c.b16 %v4893, %v4893
      %v4901 = vpack.c.b16 %v4894, %v4894
      %v4902 = vpack.c.b16 %v4895, %v4895
      %v4903 = vpack.c.b16 %v4896, %v4896
      %v4904 = vpack.c.b16 %v4897, %v4897
      %v4905 = vpack.c.b16 %v4898, %v4898
      %v4907 = vshrl.u32 %v4899, 16
      %v4909 = vshll.u32 %v4899, 16
      %v4911 = vrot.slane %v4909, 1
      %v4912 = vor.u32 %v4907, %v4911
      %v4914 = vshrl.u32 %v4900, 16
      %v4916 = vshll.u32 %v4900, 16
      %v4918 = vrot.slane %v4916, 1
      %v4919 = vor.u32 %v4914, %v4918
      %v4921 = vshrl.u32 %v4901, 16
      %v4923 = vshll.u32 %v4901, 16
      %v4925 = vrot.slane %v4923, 1
      %v4926 = vor.u32 %v4921, %v4925
      %v4928 = vshrl.u32 %v4902, 16
      %v4930 = vshll.u32 %v4902, 16
      %v4932 = vrot.slane %v4930, 1
      %v4933 = vor.u32 %v4928, %v4932
      %v4935 = vshrl.u32 %v4903, 16
      %v4937 = vshll.u32 %v4903, 16
      %v4939 = vrot.slane %v4937, 1
      %v4940 = vor.u32 %v4935, %v4939
      %v4942 = vshrl.u32 %v4904, 16
      %v4944 = vshll.u32 %v4904, 16
      %v4946 = vrot.slane %v4944, 1
      %v4947 = vor.u32 %v4942, %v4946
      %v4949 = vshrl.u32 %v4905, 16
      %v4951 = vshll.u32 %v4905, 16
      %v4953 = vrot.slane %v4951, 1
      %v4954 = vor.u32 %v4949, %v4953
      %4955 = vrot.lane.b32.xlu0 %v4912, 32
      %v4956 = vpop.permute.xlu0 %4955
      %4957 = vrot.lane.b32.xlu0 %v4919, 32
      %v4958 = vpop.permute.xlu0 %4957
      %4959 = vrot.lane.b32.xlu0 %v4926, 32
      %v4960 = vpop.permute.xlu0 %4959
      %4961 = vrot.lane.b32.xlu0 %v4933, 32
      %v4962 = vpop.permute.xlu0 %4961
      %4963 = vrot.lane.b32.xlu0 %v4940, 32
      %v4964 = vpop.permute.xlu0 %4963
      %4965 = vrot.lane.b32.xlu0 %v4947, 32
      %v4966 = vpop.permute.xlu0 %4965
      %4967 = vrot.lane.b32.xlu0 %v4954, 32
      %v4968 = vpop.permute.xlu0 %4967
      %v4969 = vrot.slane %v4899, 1
      %v4970 = vrot.slane %v4900, 1
      %v4971 = vrot.slane %v4901, 1
      %v4972 = vrot.slane %v4902, 1
      %v4973 = vrot.slane %v4903, 1
      %v4974 = vrot.slane %v4904, 1
      %v4975 = vrot.slane %v4905, 1
      %4976 = vrot.lane.b32.xlu0 %v4969, 64
      %v4977 = vpop.permute.xlu0 %4976
      %4978 = vrot.lane.b32.xlu0 %v4970, 64
      %v4979 = vpop.permute.xlu0 %4978
      %4980 = vrot.lane.b32.xlu0 %v4971, 64
      %v4981 = vpop.permute.xlu0 %4980
      %4982 = vrot.lane.b32.xlu0 %v4972, 64
      %v4983 = vpop.permute.xlu0 %4982
      %4984 = vrot.lane.b32.xlu0 %v4973, 64
      %v4985 = vpop.permute.xlu0 %4984
      %4986 = vrot.lane.b32.xlu0 %v4974, 64
      %v4987 = vpop.permute.xlu0 %4986
      %4988 = vrot.lane.b32.xlu0 %v4975, 64
      %v4989 = vpop.permute.xlu0 %4988
      %v4992 = vsel %vm1961, %v4878, %v4956
      %v4995 = vsel %vm1961, %v4879, %v4958
      %v4998 = vsel %vm1961, %v4880, %v4960
      %v5001 = vsel %vm1961, %v4881, %v4962
      %v5004 = vsel %vm1961, %v4882, %v4964
      %v5007 = vsel %vm1961, %v4883, %v4966
      %v5010 = vsel %vm1961, %v4884, %v4968
      %v5012 = vsel %vm1984, %v4992, %v4977
      %v5014 = vsel %vm1984, %v4995, %v4979
      %v5016 = vsel %vm1984, %v4998, %v4981
      %v5018 = vsel %vm1984, %v5001, %v4983
      %v5020 = vsel %vm1984, %v5004, %v4985
      %v5022 = vsel %vm1984, %v5007, %v4987
      %v5024 = vsel %vm1984, %v5010, %v4989
      %v5032 = vrot.slane %v5012, 1
      %v5033 = vrot.slane %v5012, 2
      %v5034 = vrot.slane %v5014, 1
      %v5035 = vrot.slane %v5014, 2
      %v5036 = vrot.slane %v5016, 1
      %v5037 = vrot.slane %v5016, 2
      %v5038 = vrot.slane %v5018, 1
      %v5039 = vrot.slane %v5018, 2
      %v5040 = vrot.slane %v5020, 1
      %v5041 = vrot.slane %v5020, 2
      %v5042 = vrot.slane %v5022, 1
      %v5043 = vrot.slane %v5022, 2
      %v5044 = vrot.slane %v5024, 1
      %v5045 = vrot.slane %v5024, 2
      %v5046 = vunpack.i.l.s16 %v5012
      %v5047 = vunpack.i.h.s16 %v5012
      %v5048 = vunpack.i.l.s16 %v5032
      %v5049 = vunpack.i.h.s16 %v5032
      %v5050 = vunpack.i.l.s16 %v5033
      %v5051 = vunpack.i.l.s16 %v5014
      %v5052 = vunpack.i.h.s16 %v5014
      %v5053 = vunpack.i.l.s16 %v5034
      %v5054 = vunpack.i.h.s16 %v5034
      %v5055 = vunpack.i.l.s16 %v5035
      %v5056 = vunpack.i.l.s16 %v5016
      %v5057 = vunpack.i.h.s16 %v5016
      %v5058 = vunpack.i.l.s16 %v5036
      %v5059 = vunpack.i.h.s16 %v5036
      %v5060 = vunpack.i.l.s16 %v5037
      %v5061 = vunpack.i.l.s16 %v5018
      %v5062 = vunpack.i.h.s16 %v5018
      %v5063 = vunpack.i.l.s16 %v5038
      %v5064 = vunpack.i.h.s16 %v5038
      %v5065 = vunpack.i.l.s16 %v5039
      %v5066 = vunpack.i.l.s16 %v5020
      %v5067 = vunpack.i.h.s16 %v5020
      %v5068 = vunpack.i.l.s16 %v5040
      %v5069 = vunpack.i.h.s16 %v5040
      %v5070 = vunpack.i.l.s16 %v5041
      %v5071 = vunpack.i.l.s16 %v5022
      %v5072 = vunpack.i.h.s16 %v5022
      %v5073 = vunpack.i.l.s16 %v5042
      %v5074 = vunpack.i.h.s16 %v5042
      %v5075 = vunpack.i.l.s16 %v5043
      %v5076 = vunpack.i.l.s16 %v5024
      %v5077 = vunpack.i.h.s16 %v5024
      %v5078 = vunpack.i.l.s16 %v5044
      %v5079 = vunpack.i.h.s16 %v5044
      %v5080 = vunpack.i.l.s16 %v5045
      %v5081 = vld [vmem:[%s7] sm:$0xf]
      %v5082 = vld [vmem:[%s7 + $0x4] sm:$0xf]
      %v5083 = vld [vmem:[%s7 + $0x8] sm:$0xf]
      %v5084 = vld [vmem:[%s7 + $0xc] sm:$0xf]
      %v5085 = vld [vmem:[%s7 + $0x10] sm:$0xf]
      %v5086 = vld [vmem:[%s7 + $0x14] sm:$0xf]
      %v5087 = vld [vmem:[%s7 + $0x18] sm:$0xf]
      %v5088 = vld [vmem:[%s7 + $0x1c] sm:$0xf]
      %v5089 = vld [vmem:[%s7 + $0x20] sm:$0xf]
      %v5090 = vld [vmem:[%s7 + $0x24] sm:$0xf]
      %v5091 = vld [vmem:[%s7 + $0x28] sm:$0xf]
      %v5092 = vld [vmem:[%s7 + $0x2c] sm:$0xf]
      %v5093 = vpack.i.b16 %v5047, %v5046
      %v5094 = vpack.i.b16 %v5049, %v5048
      %v5095 = vpack.i.b16 %v5051, %v5050
      %v5096 = vpack.i.b16 %v5053, %v5052
      %v5097 = vpack.i.b16 %v5055, %v5054
      %v5098 = vpack.i.b16 %v5057, %v5056
      %v5099 = vpack.i.b16 %v5059, %v5058
      %v5100 = vpack.i.b16 %v5061, %v5060
      %v5101 = vpack.i.b16 %v5063, %v5062
      %v5102 = vpack.i.b16 %v5065, %v5064
      %v5103 = vpack.i.b16 %v5067, %v5066
      %v5104 = vpack.i.b16 %v5069, %v5068
      %v5105 = vpack.i.b16 %v5071, %v5070
      %v5106 = vpack.i.b16 %v5073, %v5072
      %v5107 = vpack.i.b16 %v5075, %v5074
      %v5108 = vpack.i.b16 %v5077, %v5076
      %v5109 = vpack.i.b16 %v5079, %v5078
      %5112 = vst [vmem:[#allocation1] ss:$9 sm:$0xff] %v5093
      %s5114 = scalar_lea.vmem [#allocation1], 1
      %5115 = vst [vmem:[%s5114] ss:$9 sm:$0xff] %v5094
      %s5117 = scalar_lea.vmem [#allocation1], 2
      %5118 = vst [vmem:[%s5117] ss:$9 sm:$0xff] %v5095
      %s5120 = scalar_lea.vmem [#allocation1], 3
      %5121 = vst [vmem:[%s5120] ss:$9 sm:$0xff] %v5096
      %s5123 = scalar_lea.vmem [#allocation1], 4
      %5124 = vst [vmem:[%s5123] ss:$9 sm:$0xff] %v5097
      %s5126 = scalar_lea.vmem [#allocation1], 5
      %5127 = vst [vmem:[%s5126] ss:$9 sm:$0xff] %v5098
      %s5129 = scalar_lea.vmem [#allocation1], 6
      %5130 = vst [vmem:[%s5129] ss:$9 sm:$0xff] %v5099
      %s5132 = scalar_lea.vmem [#allocation1], 7
      %5133 = vst [vmem:[%s5132] ss:$9 sm:$0xff] %v5100
      %v5134 = vld [vmem:[#allocation1] sm:$0xff]
      %5136 = vst [vmem:[#allocation1] ss:$9 sm:$0xff] %v5101
      %5138 = vst [vmem:[%s5114] ss:$9 sm:$0xff] %v5102
      %5140 = vst [vmem:[%s5117] ss:$9 sm:$0xff] %v5103
      %5142 = vst [vmem:[%s5120] ss:$9 sm:$0xff] %v5104
      %5144 = vst [vmem:[%s5123] ss:$9 sm:$0xff] %v5105
      %5146 = vst [vmem:[%s5126] ss:$9 sm:$0xff] %v5106
      %5148 = vst [vmem:[%s5129] ss:$9 sm:$0xff] %v5107
      %5150 = vst [vmem:[%s5132] ss:$9 sm:$0xff] %v5108
      %v5151 = vld [vmem:[#allocation1] sm:$0xff]
      %5153 = vst [vmem:[#allocation1] ss:$9 sm:$0xff] %v5109
      %5155 = vst [vmem:[%s5114] ss:$9 sm:$0xff] %v5080
      %v5156 = vld [vmem:[#allocation1] sm:$0xff]
      %v5169 = vunpack.c.l.b16 %v5081
      %v5170 = vunpack.c.l.b16 %v5082
      %v5171 = vunpack.c.l.b16 %v5083
      %v5172 = vunpack.c.l.b16 %v5084
      %v5173 = vunpack.c.l.b16 %v5085
      %v5174 = vunpack.c.l.b16 %v5086
      %v5175 = vunpack.c.l.b16 %v5087
      %v5176 = vunpack.c.l.b16 %v5088
      %v5177 = vunpack.c.l.b16 %v5089
      %v5178 = vunpack.c.l.b16 %v5090
      %v5179 = vunpack.c.l.b16 %v5091
      %v5180 = vunpack.c.l.b16 %v5092
      %v5181 = vpack.c.b16 %v5170, %v5169
      %v5182 = vpack.c.b16 %v5172, %v5171
      %v5183 = vpack.c.b16 %v5174, %v5173
      %v5184 = vpack.c.b16 %v5176, %v5175
      %v5185 = vpack.c.b16 %v5178, %v5177
      %v5186 = vpack.c.b16 %v5180, %v5179
      %v5193 = vsel %vm2373, %v5134, 0
      %v5195 = vsel %vm2373, %v5151, 0
      %v5197 = vsel %vm2373, %v5156, 0
      %5199 = vmatpush.bf16.msra.mxu0 0
      %5200 = vmatpush.bf16.msra.mxu0 0
      %5201 = vmatpush.bf16.msra.mxu0 %v5186
      %5202 = vmatpush.bf16.msra.mxu0 %v5185
      %5203 = vmatpush.bf16.msra.mxu0 %v5184
      %5204 = vmatpush.bf16.msra.mxu0 %v5183
      %5205 = vmatpush.bf16.msra.mxu0 %v5182
      %5206 = vmatpush.bf16.msra.mxu0 %v5181
      %5207 = vmatmul.bf16.gmra.mxu0 %v5193
      %v5208 = vpop.f32.mrf.mxu0
      %v5209 = vadd.f32 0.0, %v5208
      %v5210 = vpop.f32.mrf.mxu0
      %v5211 = vadd.f32 0.0, %v5210
      %5212 = vmatmul.bf16.gmra.mxu0 %v5195
      %v5213 = vpop.f32.mrf.mxu0
      %v5214 = vadd.f32 0.0, %v5213
      %v5215 = vpop.f32.mrf.mxu0
      %v5216 = vadd.f32 0.0, %v5215
      %5217 = vmatmul.bf16.gmra.mxu0 %v5197
      %v5218 = vpop.f32.mrf.mxu0
      %v5219 = vadd.f32 0.0, %v5218
      %v5220 = vpop.f32.mrf.mxu0
      %5221 = vdwg.mxu0
      %v5227 = vrot.slane %v5209, 1
      %v5228 = vrot.slane %v5209, 2
      %v5229 = vrot.slane %v5209, 3
      %v5230 = vrot.slane %v5209, 4
      %v5231 = vrot.slane %v5209, 5
      %v5232 = vrot.slane %v5209, 6
      %v5233 = vrot.slane %v5209, 7
      %v5234 = vrot.slane %v5211, 1
      %v5235 = vrot.slane %v5211, 2
      %v5236 = vrot.slane %v5211, 3
      %v5237 = vrot.slane %v5211, 4
      %v5238 = vrot.slane %v5211, 5
      %v5239 = vrot.slane %v5211, 6
      %v5240 = vrot.slane %v5211, 7
      %v5241 = vrot.slane %v5214, 1
      %v5242 = vrot.slane %v5214, 2
      %v5243 = vrot.slane %v5214, 3
      %v5244 = vrot.slane %v5214, 4
      %v5245 = vrot.slane %v5214, 5
      %v5246 = vrot.slane %v5214, 6
      %v5247 = vrot.slane %v5214, 7
      %v5248 = vrot.slane %v5216, 1
      %v5249 = vrot.slane %v5216, 2
      %v5250 = vrot.slane %v5216, 3
      %v5251 = vrot.slane %v5216, 4
      %v5252 = vrot.slane %v5216, 5
      %v5253 = vrot.slane %v5216, 6
      %v5254 = vrot.slane %v5216, 7
      %v5255 = vrot.slane %v5219, 1
      %v5256 = vrot.slane %v5219, 2
      %5278 = vrot.lane.b32.xlu0 %v5231, 96
      %v5279 = vpop.permute.xlu0 %5278
      %5280 = vrot.lane.b32.xlu0 %v5232, 96
      %v5281 = vpop.permute.xlu0 %5280
      %5282 = vrot.lane.b32.xlu0 %v5233, 96
      %v5283 = vpop.permute.xlu0 %5282
      %5284 = vrot.lane.b32.xlu0 %v5211, 96
      %v5285 = vpop.permute.xlu0 %5284
      %5286 = vrot.lane.b32.xlu0 %v5234, 96
      %v5287 = vpop.permute.xlu0 %5286
      %5288 = vrot.lane.b32.xlu0 %v5235, 96
      %v5289 = vpop.permute.xlu0 %5288
      %5290 = vrot.lane.b32.xlu0 %v5236, 96
      %v5291 = vpop.permute.xlu0 %5290
      %5292 = vrot.lane.b32.xlu0 %v5237, 96
      %v5293 = vpop.permute.xlu0 %5292
      %5294 = vrot.lane.b32.xlu0 %v5238, 96
      %v5295 = vpop.permute.xlu0 %5294
      %5296 = vrot.lane.b32.xlu0 %v5239, 96
      %v5297 = vpop.permute.xlu0 %5296
      %5298 = vrot.lane.b32.xlu0 %v5240, 96
      %v5299 = vpop.permute.xlu0 %5298
      %5300 = vrot.lane.b32.xlu0 %v5214, 96
      %v5301 = vpop.permute.xlu0 %5300
      %5302 = vrot.lane.b32.xlu0 %v5241, 96
      %v5303 = vpop.permute.xlu0 %5302
      %5304 = vrot.lane.b32.xlu0 %v5242, 96
      %v5305 = vpop.permute.xlu0 %5304
      %5306 = vrot.lane.b32.xlu0 %v5243, 96
      %v5307 = vpop.permute.xlu0 %5306
      %5308 = vrot.lane.b32.xlu0 %v5244, 96
      %v5309 = vpop.permute.xlu0 %5308
      %5310 = vrot.lane.b32.xlu0 %v5245, 96
      %v5311 = vpop.permute.xlu0 %5310
      %5312 = vrot.lane.b32.xlu0 %v5246, 96
      %v5313 = vpop.permute.xlu0 %5312
      %5314 = vrot.lane.b32.xlu0 %v5247, 96
      %v5315 = vpop.permute.xlu0 %5314
      %5316 = vrot.lane.b32.xlu0 %v5216, 96
      %v5317 = vpop.permute.xlu0 %5316
      %5318 = vrot.lane.b32.xlu0 %v5248, 96
      %v5319 = vpop.permute.xlu0 %5318
      %5320 = vrot.lane.b32.xlu0 %v5249, 96
      %v5321 = vpop.permute.xlu0 %5320
      %5322 = vrot.lane.b32.xlu0 %v5250, 96
      %v5323 = vpop.permute.xlu0 %5322
      %5324 = vrot.lane.b32.xlu0 %v5251, 96
      %v5325 = vpop.permute.xlu0 %5324
      %5326 = vrot.lane.b32.xlu0 %v5252, 96
      %v5327 = vpop.permute.xlu0 %5326
      %v5353 = vadd.f32 %v5209, %v5279
      %v5354 = vadd.f32 %v5227, %v5281
      %v5355 = vadd.f32 %v5228, %v5283
      %v5356 = vadd.f32 %v5229, %v5285
      %v5357 = vadd.f32 %v5230, %v5287
      %v5358 = vadd.f32 %v5231, %v5289
      %v5359 = vadd.f32 %v5232, %v5291
      %v5360 = vadd.f32 %v5233, %v5293
      %v5361 = vadd.f32 %v5211, %v5295
      %v5362 = vadd.f32 %v5234, %v5297
      %v5363 = vadd.f32 %v5235, %v5299
      %v5364 = vadd.f32 %v5236, %v5301
      %v5365 = vadd.f32 %v5237, %v5303
      %v5366 = vadd.f32 %v5238, %v5305
      %v5367 = vadd.f32 %v5239, %v5307
      %v5368 = vadd.f32 %v5240, %v5309
      %v5369 = vadd.f32 %v5214, %v5311
      %v5370 = vadd.f32 %v5241, %v5313
      %v5371 = vadd.f32 %v5242, %v5315
      %v5372 = vadd.f32 %v5243, %v5317
      %v5373 = vadd.f32 %v5244, %v5319
      %v5374 = vadd.f32 %v5245, %v5321
      %v5375 = vadd.f32 %v5246, %v5323
      %v5376 = vadd.f32 %v5247, %v5325
      %v5377 = vadd.f32 %v5216, %v5327
      %5378 = vrot.lane.b32.xlu0 %v5235, 64
      %v5379 = vpop.permute.xlu0 %5378
      %5380 = vrot.lane.b32.xlu0 %v5236, 64
      %v5381 = vpop.permute.xlu0 %5380
      %5382 = vrot.lane.b32.xlu0 %v5237, 64
      %v5383 = vpop.permute.xlu0 %5382
      %5384 = vrot.lane.b32.xlu0 %v5238, 64
      %v5385 = vpop.permute.xlu0 %5384
      %5386 = vrot.lane.b32.xlu0 %v5239, 64
      %v5387 = vpop.permute.xlu0 %5386
      %5388 = vrot.lane.b32.xlu0 %v5240, 64
      %v5389 = vpop.permute.xlu0 %5388
      %5390 = vrot.lane.b32.xlu0 %v5214, 64
      %v5391 = vpop.permute.xlu0 %5390
      %5392 = vrot.lane.b32.xlu0 %v5241, 64
      %v5393 = vpop.permute.xlu0 %5392
      %5394 = vrot.lane.b32.xlu0 %v5242, 64
      %v5395 = vpop.permute.xlu0 %5394
      %5396 = vrot.lane.b32.xlu0 %v5243, 64
      %v5397 = vpop.permute.xlu0 %5396
      %5398 = vrot.lane.b32.xlu0 %v5244, 64
      %v5399 = vpop.permute.xlu0 %5398
      %5400 = vrot.lane.b32.xlu0 %v5245, 64
      %v5401 = vpop.permute.xlu0 %5400
      %5402 = vrot.lane.b32.xlu0 %v5246, 64
      %v5403 = vpop.permute.xlu0 %5402
      %5404 = vrot.lane.b32.xlu0 %v5247, 64
      %v5405 = vpop.permute.xlu0 %5404
      %5406 = vrot.lane.b32.xlu0 %v5216, 64
      %v5407 = vpop.permute.xlu0 %5406
      %5408 = vrot.lane.b32.xlu0 %v5248, 64
      %v5409 = vpop.permute.xlu0 %5408
      %5410 = vrot.lane.b32.xlu0 %v5249, 64
      %v5411 = vpop.permute.xlu0 %5410
      %5412 = vrot.lane.b32.xlu0 %v5250, 64
      %v5413 = vpop.permute.xlu0 %5412
      %5414 = vrot.lane.b32.xlu0 %v5251, 64
      %v5415 = vpop.permute.xlu0 %5414
      %5416 = vrot.lane.b32.xlu0 %v5252, 64
      %v5417 = vpop.permute.xlu0 %5416
      %5418 = vrot.lane.b32.xlu0 %v5253, 64
      %v5419 = vpop.permute.xlu0 %5418
      %5420 = vrot.lane.b32.xlu0 %v5254, 64
      %v5421 = vpop.permute.xlu0 %5420
      %5422 = vrot.lane.b32.xlu0 %v5219, 64
      %v5423 = vpop.permute.xlu0 %5422
      %5424 = vrot.lane.b32.xlu0 %v5255, 64
      %v5425 = vpop.permute.xlu0 %5424
      %5426 = vrot.lane.b32.xlu0 %v5256, 64
      %v5427 = vpop.permute.xlu0 %5426
      %v5453 = vadd.f32 %v5353, %v5379
      %v5454 = vadd.f32 %v5354, %v5381
      %v5455 = vadd.f32 %v5355, %v5383
      %v5456 = vadd.f32 %v5356, %v5385
      %v5457 = vadd.f32 %v5357, %v5387
      %v5458 = vadd.f32 %v5358, %v5389
      %v5459 = vadd.f32 %v5359, %v5391
      %v5460 = vadd.f32 %v5360, %v5393
      %v5461 = vadd.f32 %v5361, %v5395
      %v5462 = vadd.f32 %v5362, %v5397
      %v5463 = vadd.f32 %v5363, %v5399
      %v5464 = vadd.f32 %v5364, %v5401
      %v5465 = vadd.f32 %v5365, %v5403
      %v5466 = vadd.f32 %v5366, %v5405
      %v5467 = vadd.f32 %v5367, %v5407
      %v5468 = vadd.f32 %v5368, %v5409
      %v5469 = vadd.f32 %v5369, %v5411
      %v5470 = vadd.f32 %v5370, %v5413
      %v5471 = vadd.f32 %v5371, %v5415
      %v5472 = vadd.f32 %v5372, %v5417
      %v5473 = vadd.f32 %v5373, %v5419
      %v5474 = vadd.f32 %v5374, %v5421
      %v5475 = vadd.f32 %v5375, %v5423
      %v5476 = vadd.f32 %v5376, %v5425
      %v5477 = vadd.f32 %v5377, %v5427
      %v5478 = vld [vmem:[%s8] sm:$0x1]
      %v5480 = vperm.slane %v5478, 0
      %v5482 = vrot.slane %v5480, 1
      %v5483 = vrot.slane %v5480, 2
      %v5484 = vrot.slane %v5480, 3
      %v5485 = vrot.slane %v5480, 4
      %v5490 = vadd.f32 %v5453, %v5480
      %v5491 = vadd.f32 %v5454, %v5482
      %v5492 = vadd.f32 %v5455, %v5483
      %v5493 = vadd.f32 %v5456, %v5484
      %v5494 = vadd.f32 %v5457, %v5485
      %v5495 = vadd.f32 %v5458, %v5480
      %v5496 = vadd.f32 %v5459, %v5482
      %v5497 = vadd.f32 %v5460, %v5483
      %v5498 = vadd.f32 %v5461, %v5484
      %v5499 = vadd.f32 %v5462, %v5485
      %v5500 = vadd.f32 %v5463, %v5480
      %v5501 = vadd.f32 %v5464, %v5482
      %v5502 = vadd.f32 %v5465, %v5483
      %v5503 = vadd.f32 %v5466, %v5484
      %v5504 = vadd.f32 %v5467, %v5485
      %v5505 = vadd.f32 %v5468, %v5480
      %v5506 = vadd.f32 %v5469, %v5482
      %v5507 = vadd.f32 %v5470, %v5483
      %v5508 = vadd.f32 %v5471, %v5484
      %v5509 = vadd.f32 %v5472, %v5485
      %v5510 = vadd.f32 %v5473, %v5480
      %v5511 = vadd.f32 %v5474, %v5482
      %v5512 = vadd.f32 %v5475, %v5483
      %v5513 = vadd.f32 %v5476, %v5484
      %v5514 = vadd.f32 %v5477, %v5485
      %v5515 = vmax.f32 %v5490, 0.0
      %v5516 = vmax.f32 %v5491, 0.0
      %v5517 = vmax.f32 %v5492, 0.0
      %v5518 = vmax.f32 %v5493, 0.0
      %v5519 = vmax.f32 %v5494, 0.0
      %v5520 = vmax.f32 %v5495, 0.0
      %v5521 = vmax.f32 %v5496, 0.0
      %v5522 = vmax.f32 %v5497, 0.0
      %v5523 = vmax.f32 %v5498, 0.0
      %v5524 = vmax.f32 %v5499, 0.0
      %v5525 = vmax.f32 %v5500, 0.0
      %v5526 = vmax.f32 %v5501, 0.0
      %v5527 = vmax.f32 %v5502, 0.0
      %v5528 = vmax.f32 %v5503, 0.0
      %v5529 = vmax.f32 %v5504, 0.0
      %v5530 = vmax.f32 %v5505, 0.0
      %v5531 = vmax.f32 %v5506, 0.0
      %v5532 = vmax.f32 %v5507, 0.0
      %v5533 = vmax.f32 %v5508, 0.0
      %v5534 = vmax.f32 %v5509, 0.0
      %v5535 = vmax.f32 %v5510, 0.0
      %v5536 = vmax.f32 %v5511, 0.0
      %v5537 = vmax.f32 %v5512, 0.0
      %v5538 = vmax.f32 %v5513, 0.0
      %v5539 = vmax.f32 %v5514, 0.0
      %5565 = vst [vmem:[#allocation1] ss:$9 sm:$0xff] %v5515
      %s5566 = scalar_lea.vmem [#allocation1], 1
      %5567 = vst [vmem:[%s5566] ss:$9 sm:$0xff] %v5516
      %s5568 = scalar_lea.vmem [#allocation1], 2
      %5569 = vst [vmem:[%s5568] ss:$9 sm:$0xff] %v5517
      %s5570 = scalar_lea.vmem [#allocation1], 3
      %5571 = vst [vmem:[%s5570] ss:$9 sm:$0xff] %v5518
      %s5572 = scalar_lea.vmem [#allocation1], 4
      %5573 = vst [vmem:[%s5572] ss:$9 sm:$0xff] %v5519
      %s5574 = scalar_lea.vmem [#allocation1], 5
      %5575 = vst [vmem:[%s5574] ss:$9 sm:$0xff] %v5520
      %s5576 = scalar_lea.vmem [#allocation1], 6
      %5577 = vst [vmem:[%s5576] ss:$9 sm:$0xff] %v5521
      %s5578 = scalar_lea.vmem [#allocation1], 7
      %5579 = vst [vmem:[%s5578] ss:$9 sm:$0xff] %v5522
      %v5580 = vld [vmem:[#allocation1] sm:$0xff]
      %5581 = vst [vmem:[#allocation1] ss:$9 sm:$0xff] %v5523
      %5582 = vst [vmem:[%s5566] ss:$9 sm:$0xff] %v5524
      %5583 = vst [vmem:[%s5568] ss:$9 sm:$0xff] %v5525
      %5584 = vst [vmem:[%s5570] ss:$9 sm:$0xff] %v5526
      %5585 = vst [vmem:[%s5572] ss:$9 sm:$0xff] %v5527
      %5586 = vst [vmem:[%s5574] ss:$9 sm:$0xff] %v5528
      %5587 = vst [vmem:[%s5576] ss:$9 sm:$0xff] %v5529
      %5588 = vst [vmem:[%s5578] ss:$9 sm:$0xff] %v5530
      %v5589 = vld [vmem:[#allocation1] sm:$0xff]
      %5590 = vst [vmem:[#allocation1] ss:$9 sm:$0xff] %v5531
      %5591 = vst [vmem:[%s5566] ss:$9 sm:$0xff] %v5532
      %5592 = vst [vmem:[%s5568] ss:$9 sm:$0xff] %v5533
      %5593 = vst [vmem:[%s5570] ss:$9 sm:$0xff] %v5534
      %5594 = vst [vmem:[%s5572] ss:$9 sm:$0xff] %v5535
      %5595 = vst [vmem:[%s5574] ss:$9 sm:$0xff] %v5536
      %5596 = vst [vmem:[%s5576] ss:$9 sm:$0xff] %v5537
      %5597 = vst [vmem:[%s5578] ss:$9 sm:$0xff] %v5538
      %v5598 = vld [vmem:[#allocation1] sm:$0xff]
      %5599 = vst [vmem:[#allocation1] ss:$9 sm:$0xff] %v5539
      %v5600 = vld [vmem:[#allocation1] sm:$0xff]
      %5605 = vxpose.xlu0.b32.start [1/16] %v5580, 128
      %5606 = vxpose.xlu0.b32.cont [2/16] %v5589, 128
      %5607 = vxpose.xlu0.b32.cont [3/16] %v5598, 128
      %5608 = vxpose.xlu0.b32.cont [4/16] %v5600, 128
      %5609 = vxpose.xlu0.b32.cont [5/16] 0.0, 128
      %5610 = vxpose.xlu0.b32.cont [6/16] 0.0, 128
      %5611 = vxpose.xlu0.b32.cont [7/16] 0.0, 128
      %5612 = vxpose.xlu0.b32.cont [8/16] 0.0, 128
      %5613 = vxpose.xlu0.b32.cont [9/16] 0.0, 128
      %5614 = vxpose.xlu0.b32.cont [10/16] 0.0, 128
      %5615 = vxpose.xlu0.b32.cont [11/16] 0.0, 128
      %5616 = vxpose.xlu0.b32.cont [12/16] 0.0, 128
      %5617 = vxpose.xlu0.b32.cont [13/16] 0.0, 128
      %5618 = vxpose.xlu0.b32.cont [14/16] 0.0, 128
      %5619 = vxpose.xlu0.b32.cont [15/16] 0.0, 128
      %5620 = vxpose.xlu0.b32.end [16/16] 0.0, 128
      %v5621 = vpop.trf.xlu0
      %v5622 = vpop.trf.xlu0
      %v5623 = vpop.trf.xlu0
      %v5624 = vpop.trf.xlu0
      %v5625 = vpop.trf.xlu0
      %v5626 = vpop.trf.xlu0
      %v5627 = vpop.trf.xlu0
      %v5628 = vpop.trf.xlu0
      %v5629 = vpop.trf.xlu0
      %v5630 = vpop.trf.xlu0
      %v5631 = vpop.trf.xlu0
      %v5632 = vpop.trf.xlu0
      %v5633 = vpop.trf.xlu0
      %v5634 = vpop.trf.xlu0
      %v5635 = vpop.trf.xlu0
      %v5636 = vpop.trf.xlu0
      %vm5637 = vcmask 203776
      %5638 = vst.msk [vmem:[%s332] sm:$0xff] %vm5637, %v5621
      %5639 = vst.msk [vmem:[%s332 + $0x8] sm:$0xff] %vm5637, %v5622
      %5640 = vst.msk [vmem:[%s332 + $0x10] sm:$0xff] %vm5637, %v5623
      %5641 = vst.msk [vmem:[%s332 + $0x18] sm:$0xff] %vm5637, %v5624
      %p5642 = scmp.lt.s32.totalorder %s20, 1
      %s5643 = scalar_select %p5642, %s20, 1
      %s5644 = smul.addr %s5643, 4
      %s5645 = smul.addr %s5644, 8
      %s5646 = scalar_lea.vmem %s9, %s5645
      // Predicated region
      $region57: #{tpu_custom_call.1} parent=55 // pred_check
        %p5647 = pneg %p232
      $region58: #{tpu_custom_call.1} parent=55 // pred_check_branch
        %5649 = sbr.rel (%p5647) target = $region60
      $region59: #{tpu_custom_call.1} parent=55 // pred_region
        _
      $region60: #{tpu_custom_call.1} parent=55 // pred_fallthru
        _
    $region56: #{tpu_custom_call.1} parent=5 // pred_fallthru
      _
    %p5650 = scmp.le.s32.totalorder 2, %s15
    // Predicated region
    $region61: #{tpu_custom_call.1} parent=5 // pred_check
      %p5651 = pneg %p5650
    $region62: #{tpu_custom_call.1} parent=5 // pred_check_branch
      %5653 = sbr.rel (%p5651) target = $region64
    $region63: #{tpu_custom_call.1} parent=5 // pred_region
      %s5654 = ssub.s32 %s15, 2
      // Predicated region
      $region65: #{tpu_custom_call.1} parent=63 // pred_check
        %p5655 = pneg %p238
      $region66: #{tpu_custom_call.1} parent=63 // pred_check_branch
        %5657 = sbr.rel (%p5655) target = $region68
      $region67: #{tpu_custom_call.1} parent=63 // pred_region
        %p5658 = scmp.lt.s32.totalorder %s21, 1
        %s5659 = scalar_select %p5658, %s21, 1
        %s5660 = smul.addr %s5659, 4
        %s5661 = smul.addr %s5660, 8
        %s5662 = scalar_lea.vmem %s9, %s5661
      $region68: #{tpu_custom_call.1} parent=63 // pred_fallthru
        _
    $region64: #{tpu_custom_call.1} parent=5 // pred_fallthru
      _
  $region6: #{tpu_custom_call.1} parent=0 // loop_footer
    %s19 = sadd.s32 1, %s15
  $region7: #{tpu_custom_call.1} parent=0 // loop_footer_branch
    %14 = sbr.rel target = $region3
  $region8: #{tpu_custom_call.1} parent=0 // loop_exit
    _

</llo_original>
